<compile_context>
chip_gen: v7x
topology: tpu7x:2x2x1
jax: 0.10.0
libtpu: 0.0.40
codegen_flags: <defaults>
</compile_context>

<pallas_src>
import math

import jax
import jax.numpy as jnp
from jax import lax
from jax.experimental import pallas as pl
from jax.experimental.pallas import tpu as pltpu


# ------------------------------------------------------------------ kernel

def _make_encoder_kernel(num_head, eps, posenc, compute_dtype):
    f32 = jnp.float32
    cd = compute_dtype

    def kernel(*refs):
        if posenc:
            (mask_ref, x_ref, pos_ref,
             ln1_a_ref, ln1_b_ref, wq_ref, bq_ref, wk_ref, bk_ref,
             wv_ref, bv_ref, wo_ref, bo_ref,
             ln2_a_ref, ln2_b_ref, w1_ref, b1_ref, w2_ref, b2_ref,
             fin_a_ref, fin_b_ref, out_ref, x_sc) = refs
        else:
            (mask_ref, x_ref,
             ln1_a_ref, ln1_b_ref, wq_ref, bq_ref, wk_ref, bk_ref,
             wv_ref, bv_ref, wo_ref, bo_ref,
             ln2_a_ref, ln2_b_ref, w1_ref, b1_ref, w2_ref, b2_ref,
             fin_a_ref, fin_b_ref, out_ref, x_sc) = refs
            pos_ref = None

        l = pl.program_id(1)
        n_layers = pl.num_programs(1)
        L, H = out_ref.shape
        d_k = H // num_head

        # ---- residual-stream carry: init at the first layer ----------------
        @pl.when(l == 0)
        def _():
            x0 = x_ref[...]
            if posenc:
                x0 = x0 + pos_ref[...]
            x_sc[...] = x0

        # ---- attention mask: (input_mask[j]==0) & (j<=i) -> replace w/ -1e9
        col = lax.broadcasted_iota(jnp.int32, (L, L), 1)
        row = lax.broadcasted_iota(jnp.int32, (L, L), 0)
        pad = mask_ref[...] == 0                      # (1, L)
        masked = pad & (col <= row)                   # (L, L) bool

        inv_hm1 = 1.0 / (H - 1)

        def layer_norm(v, a, b):
            # torch: a * (x - mean) / (std + eps) + b, std unbiased (n-1)
            mean = jnp.mean(v, axis=-1, keepdims=True)
            c = v - mean
            std = jnp.sqrt(jnp.sum(c * c, axis=-1, keepdims=True) * inv_hm1)
            return a * c / (std + eps) + b            # exact divide (LN path)

        x = x_sc[...]                                  # (L, H) f32 residual

        # ================= self-attention sublayer ==========================
        xn = layer_norm(x, ln1_a_ref[...], ln1_b_ref[...]).astype(cd)
        # full-width lane-dense projections; 1/sqrt(d_k) folded into Wq/bq
        q = jnp.dot(xn, wq_ref[...], preferred_element_type=f32) + bq_ref[...]
        k = jnp.dot(xn, wk_ref[...], preferred_element_type=f32) + bk_ref[...]
        v = jnp.dot(xn, wv_ref[...], preferred_element_type=f32) + bv_ref[...]

        # TODO(synk): for production L, tile queries / loop KV blocks with
        # flash-style online softmax instead of the full (L, L) score tile.
        ctx_parts = []
        for h in range(num_head):                      # static unroll (heads)
            sl = slice(h * d_k, (h + 1) * d_k)
            qh = q[:, sl].astype(cd)
            kh = k[:, sl].astype(cd)
            vh = v[:, sl].astype(cd)
            s = lax.dot_general(qh, kh, (((1,), (1,)), ((), ())),
                                preferred_element_type=f32)   # q @ k.T (L, L)
            s = jnp.where(masked, -1000000000.0, s)           # replace (f32)
            s = s - jnp.max(s, axis=-1, keepdims=True)        # stable softmax
            p = jnp.exp(s)
            p = p * pl.reciprocal(jnp.sum(p, axis=-1, keepdims=True),
                                  approx=True)
            ctx_parts.append(jnp.dot(p.astype(cd), vh,
                                     preferred_element_type=f32))
        ctx = jnp.concatenate(ctx_parts, axis=-1).astype(cd)  # (L, H)
        # single output projection with K = H (head reduction fused)
        x = x + jnp.dot(ctx, wo_ref[...], preferred_element_type=f32) \
              + bo_ref[...]                   # dropout == identity (eval)

        # ================= position-wise feed-forward =======================
        # TODO(synk): tile d_ff in chunks for large d_ff to cap the (L, d_ff)
        # intermediate and per-step W1/W2 VMEM residency.
        xn2 = layer_norm(x, ln2_a_ref[...], ln2_b_ref[...]).astype(cd)
        h1 = jnp.maximum(
            jnp.dot(xn2, w1_ref[...], preferred_element_type=f32)
            + b1_ref[...], 0.0).astype(cd)
        x = x + jnp.dot(h1, w2_ref[...], preferred_element_type=f32) \
              + b2_ref[...]

        x_sc[...] = x                                  # carry to next layer

        # ---- last layer: final LayerNorm, emit output -----------------------
        @pl.when(l == n_layers - 1)
        def _():
            out_ref[...] = layer_norm(x, fin_a_ref[...], fin_b_ref[...])

    return kernel


# ------------------------------------------------------------------ wrapper

def transformer_encoder(x, input_mask, params, num_head, posenc=True,
                        eps=1e-6, compute_dtype=jnp.float32):
    """compute_dtype: dtype fed to the MXU (use jnp.bfloat16 on v6e/v7x for
    production; stats / residual / accumulations stay f32 in-kernel)."""
    B, L, H = x.shape
    layers = params["layers"]
    nl = len(layers)
    d_k = H // num_head
    d_ff = layers[0]["w1"].shape[1]
    scale = 1.0 / math.sqrt(d_k)
    cd = compute_dtype

    stack = lambda name: jnp.stack([lp[name] for lp in layers], axis=0)

    # trace-time repacking (free): fold 1/sqrt(d_k) into Wq/bq, cast MXU
    # weights to compute_dtype (biases / norm params stay f32).
    wq = (stack("wq") * scale).astype(cd)
    bq = stack("bq") * scale
    wk = stack("wk").astype(cd)
    bk = stack("bk")
    wv = stack("wv").astype(cd)
    bv = stack("bv")
    wo = stack("wo").astype(cd)
    bo = stack("bo")
    ln1_a, ln1_b = stack("ln1_a"), stack("ln1_b")
    ln2_a, ln2_b = stack("ln2_a"), stack("ln2_b")
    w1, b1 = stack("w1").astype(cd), stack("b1")
    w2, b2 = stack("w2").astype(cd), stack("b2")

    mask3 = input_mask.astype(jnp.int32)[:, None, :]          # (B, 1, L)

    def per_batch(shape):
        nd = len(shape)
        return pl.BlockSpec((None,) + shape,
                            lambda b, l, nd=nd: (b,) + (0,) * nd)

    def per_layer(shape):                 # streamed one layer at a time
        nd = len(shape)
        return pl.BlockSpec((None,) + shape,
                            lambda b, l, nd=nd: (l,) + (0,) * nd)

    def const(shape):
        nd = len(shape)
        return pl.BlockSpec(shape, lambda b, l, nd=nd: (0,) * nd)

    in_specs = [per_batch((1, L)), per_batch((L, H))]
    args = [mask3, x]
    if posenc:
        in_specs.append(const((L, H)))
        args.append(params["pos_emb"][:L])

    in_specs += [
        per_layer((1, H)), per_layer((1, H)),                 # ln1 a, b
        per_layer((H, H)), per_layer((1, H)),                 # Wq, bq
        per_layer((H, H)), per_layer((1, H)),                 # Wk, bk
        per_layer((H, H)), per_layer((1, H)),                 # Wv, bv
        per_layer((H, H)), per_layer((1, H)),                 # Wo, bo
        per_layer((1, H)), per_layer((1, H)),                 # ln2 a, b
        per_layer((H, d_ff)), per_layer((1, d_ff)),           # W1, b1
        per_layer((d_ff, H)), per_layer((1, H)),              # W2, b2
        const((1, H)), const((1, H)),                         # final norm a, b
    ]
    args += [ln1_a, ln1_b, wq, bq, wk, bk, wv, bv, wo, bo,
             ln2_a, ln2_b, w1, b1, w2, b2,
             params["norm_a"], params["norm_b"]]

    # advisory cost estimate so XLA schedules around the fused call
    flops = B * nl * (8 * L * H * H + 4 * L * L * H + 4 * L * H * d_ff)
    transcendentals = B * nl * num_head * L * L
    bytes_accessed = (sum(int(a.size) * a.dtype.itemsize for a in args)
                      + B * L * H * 4)

    kernel = _make_encoder_kernel(num_head, eps, posenc, cd)
    return pl.pallas_call(
        kernel,
        grid=(B, nl),
        in_specs=in_specs,
        out_specs=pl.BlockSpec((None, L, H), lambda b, l: (b, 0, 0)),
        out_shape=jax.ShapeDtypeStruct((B, L, H), jnp.float32),
        scratch_shapes=[pltpu.VMEM((L, H), jnp.float32)],      # residual carry
        compiler_params=pltpu.CompilerParams(
            dimension_semantics=("parallel", "arbitrary"),
            vmem_limit_bytes=48 * 1024 * 1024),
        cost_estimate=pl.CostEstimate(flops=flops,
                                      transcendentals=transcendentals,
                                      bytes_accessed=bytes_accessed),
    )(*args)


# ------------------------------------------------------------------ pure-JAX reference

def make_std_mask(input_mask):
    # mask[b,i,j] = (input_mask[b,j]==0) & (j<=i); True => fill with -1e9
    B, L = input_mask.shape
    pad = (input_mask == 0)[:, None, :]                                   # (B,1,L)
    sub = (jnp.triu(jnp.ones((L, L), jnp.int32), k=1) == 0)[None]         # (1,L,L)
    return pad & sub


def ref_forward(x, input_mask, params, num_head, posenc=True, eps=1e-6):
    B, L, H = x.shape
    d_k = H // num_head
    mask = make_std_mask(input_mask)
    if posenc:
        x = x + params["pos_emb"][:L][None]

    def ln(v, a, b):
        mean = jnp.mean(v, -1, keepdims=True)
        std = jnp.sqrt(jnp.sum((v - mean) ** 2, -1, keepdims=True) / (H - 1))
        return a * (v - mean) / (std + eps) + b

    for p in params["layers"]:
        xn = ln(x, p["ln1_a"], p["ln1_b"])
        q = (xn @ p["wq"] + p["bq"]).reshape(B, L, num_head, d_k).transpose(0, 2, 1, 3)
        k = (xn @ p["wk"] + p["bk"]).reshape(B, L, num_head, d_k).transpose(0, 2, 1, 3)
        v = (xn @ p["wv"] + p["bv"]).reshape(B, L, num_head, d_k).transpose(0, 2, 1, 3)
        s = jnp.einsum("bhld,bhmd->bhlm", q, k) / math.sqrt(d_k)
        s = jnp.where(mask[:, None], -1000000000.0, s)
        pa = jax.nn.softmax(s, -1)
        ctx = jnp.einsum("bhlm,bhmd->bhld", pa, v).transpose(0, 2, 1, 3).reshape(B, L, H)
        x = x + ctx @ p["wo"] + p["bo"]
        xn2 = ln(x, p["ln2_a"], p["ln2_b"])
        x = x + jnp.maximum(xn2 @ p["w1"] + p["b1"], 0.0) @ p["w2"] + p["b2"]
    return ln(x, params["norm_a"], params["norm_b"])


# ------------------------------------------------------------------ main

if __name__ == "__main__":
    B, L, H = 2, 8, 32
    num_layers, num_head, d_ff, max_len = 2, 4, 64, 50

    key = jax.random.PRNGKey(0)
    keys = jax.random.split(key, 64)
    ki = iter(keys)

    def nrm(shape, scale=0.05):
        return (scale * jax.random.normal(next(ki), shape)).astype(jnp.float32)

    layers = []
    for _ in range(num_layers):
        layers.append(dict(
            ln1_a=jnp.ones((1, H), jnp.float32), ln1_b=jnp.zeros((1, H), jnp.float32),
            wq=nrm((H, H)), bq=nrm((1, H)),
            wk=nrm((H, H)), bk=nrm((1, H)),
            wv=nrm((H, H)), bv=nrm((1, H)),
            wo=nrm((H, H)), bo=nrm((1, H)),
            ln2_a=jnp.ones((1, H), jnp.float32), ln2_b=jnp.zeros((1, H), jnp.float32),
            w1=nrm((H, d_ff)), b1=nrm((1, d_ff)),
            w2=nrm((d_ff, H)), b2=nrm((1, H)),
        ))
    params = dict(
        layers=layers,
        pos_emb=nrm((max_len, H), 0.1),
        norm_a=jnp.ones((1, H), jnp.float32),
        norm_b=jnp.zeros((1, H), jnp.float32),
    )

    x = jax.random.normal(next(ki), (B, L, H), dtype=jnp.float32)
    # token-id-like mask: 0 == pad
    input_mask = jnp.array([[1, 1, 1, 1, 1, 1, 0, 0],
                            [1, 1, 1, 1, 0, 0, 0, 0]], dtype=jnp.int32)

    out = transformer_encoder(x, input_mask, params, num_head)
    out = jax.block_until_ready(out)

    ref = ref_forward(x, input_mask, params, num_head)
    assert out.shape == (B, L, H)
    assert bool(jnp.all(jnp.isfinite(out)))
    assert bool(jnp.allclose(out, ref, atol=1e-2, rtol=1e-2)), \
        float(jnp.max(jnp.abs(out - ref)))

    # TODO(synk): dropout layers are treated as identity (inference/eval mode).
    print("KERNEL_OK")
</pallas_src>

<mosaic_0001>
module attributes {stable_mosaic.version = 11 : i64} {
  func.func @kernel(%arg0: i32, %arg1: i32, %arg2: memref<1x1x8xi32, #tpu.memory_space<vmem>>, %arg3: memref<1x8x32xf32, #tpu.memory_space<vmem>>, %arg4: memref<8x32xf32, #tpu.memory_space<vmem>>, %arg5: memref<1x1x32xf32, #tpu.memory_space<vmem>>, %arg6: memref<1x1x32xf32, #tpu.memory_space<vmem>>, %arg7: memref<1x32x32xf32, #tpu.memory_space<vmem>>, %arg8: memref<1x1x32xf32, #tpu.memory_space<vmem>>, %arg9: memref<1x32x32xf32, #tpu.memory_space<vmem>>, %arg10: memref<1x1x32xf32, #tpu.memory_space<vmem>>, %arg11: memref<1x32x32xf32, #tpu.memory_space<vmem>>, %arg12: memref<1x1x32xf32, #tpu.memory_space<vmem>>, %arg13: memref<1x32x32xf32, #tpu.memory_space<vmem>>, %arg14: memref<1x1x32xf32, #tpu.memory_space<vmem>>, %arg15: memref<1x1x32xf32, #tpu.memory_space<vmem>>, %arg16: memref<1x1x32xf32, #tpu.memory_space<vmem>>, %arg17: memref<1x32x64xf32, #tpu.memory_space<vmem>>, %arg18: memref<1x1x64xf32, #tpu.memory_space<vmem>>, %arg19: memref<1x64x32xf32, #tpu.memory_space<vmem>>, %arg20: memref<1x1x32xf32, #tpu.memory_space<vmem>>, %arg21: memref<1x32xf32, #tpu.memory_space<vmem>>, %arg22: memref<1x32xf32, #tpu.memory_space<vmem>>, %arg23: memref<1x8x32xf32, #tpu.memory_space<vmem>>, %arg24: memref<8x32xf32, #tpu.memory_space<vmem>>) attributes {dimension_semantics = [#tpu.dimension_semantics<parallel>, #tpu.dimension_semantics<arbitrary>], iteration_bounds = array<i64: 2, 2>, scalar_prefetch = 0 : i64, scratch_operands = 1 : i64, tpu.core_type = #tpu.core_type<tc>, window_params = [{transform_indices = @transform_0, window_bounds = array<i64: 1, 1, 8>}, {transform_indices = @transform_1, window_bounds = array<i64: 1, 8, 32>}, {pipeline_mode = #tpu.pipeline_mode<synchronous>, transform_indices = @transform_2, window_bounds = array<i64: 8, 32>}, {transform_indices = @transform_3, window_bounds = array<i64: 1, 1, 32>}, {transform_indices = @transform_4, window_bounds = array<i64: 1, 1, 32>}, {transform_indices = @transform_5, window_bounds = array<i64: 1, 32, 32>}, {transform_indices = @transform_6, window_bounds = array<i64: 1, 1, 32>}, {transform_indices = @transform_7, window_bounds = array<i64: 1, 32, 32>}, {transform_indices = @transform_8, window_bounds = array<i64: 1, 1, 32>}, {transform_indices = @transform_9, window_bounds = array<i64: 1, 32, 32>}, {transform_indices = @transform_10, window_bounds = array<i64: 1, 1, 32>}, {transform_indices = @transform_11, window_bounds = array<i64: 1, 32, 32>}, {transform_indices = @transform_12, window_bounds = array<i64: 1, 1, 32>}, {transform_indices = @transform_13, window_bounds = array<i64: 1, 1, 32>}, {transform_indices = @transform_14, window_bounds = array<i64: 1, 1, 32>}, {transform_indices = @transform_15, window_bounds = array<i64: 1, 32, 64>}, {transform_indices = @transform_16, window_bounds = array<i64: 1, 1, 64>}, {transform_indices = @transform_17, window_bounds = array<i64: 1, 64, 32>}, {transform_indices = @transform_18, window_bounds = array<i64: 1, 1, 32>}, {pipeline_mode = #tpu.pipeline_mode<synchronous>, transform_indices = @transform_19, window_bounds = array<i64: 1, 32>}, {pipeline_mode = #tpu.pipeline_mode<synchronous>, transform_indices = @transform_20, window_bounds = array<i64: 1, 32>}, {transform_indices = @transform_21, window_bounds = array<i64: 1, 8, 32>}]} {
    %c0_i32 = arith.constant 0 : i32
    %0 = arith.cmpi eq, %arg1, %c0_i32 : i32
    %1 = arith.extui %0 : i1 to i32
    %c0_i32_0 = arith.constant 0 : i32
    %2 = arith.cmpi ne, %1, %c0_i32_0 : i32
    scf.if %2 {
      %c0_93 = arith.constant 0 : index
      %c0_94 = arith.constant 0 : index
      %c0_95 = arith.constant 0 : index
      %180 = vector.load %arg3[%c0_93, %c0_94, %c0_95] : memref<1x8x32xf32, #tpu.memory_space<vmem>>, vector<1x8x32xf32>
      %181 = vector.shape_cast %180 : vector<1x8x32xf32> to vector<8x32xf32>
      %c0_96 = arith.constant 0 : index
      %c0_97 = arith.constant 0 : index
      %182 = vector.load %arg4[%c0_96, %c0_97] : memref<8x32xf32, #tpu.memory_space<vmem>>, vector<8x32xf32>
      %183 = arith.addf %181, %182 : vector<8x32xf32>
      %c0_98 = arith.constant 0 : index
      %c0_99 = arith.constant 0 : index
      %184 = vector.load %arg24[%c0_98, %c0_99] : memref<8x32xf32, #tpu.memory_space<vmem>>, vector<8x32xf32>
      tpu.vector_store %arg24[%c0_98, %c0_99], %183 {strides = array<i32>} : memref<8x32xf32, #tpu.memory_space<vmem>>, vector<8x32xf32>,
    } else {
    }
    %3 = tpu.iota {dimensions = array<i32: 1>} : vector<8x8xi32>
    %4 = tpu.iota {dimensions = array<i32: 0>} : vector<8x8xi32>
    %c0 = arith.constant 0 : index
    %c0_1 = arith.constant 0 : index
    %c0_2 = arith.constant 0 : index
    %5 = vector.load %arg2[%c0, %c0_1, %c0_2] : memref<1x1x8xi32, #tpu.memory_space<vmem>>, vector<1x1x8xi32>
    %6 = vector.shape_cast %5 : vector<1x1x8xi32> to vector<1x8xi32>
    %c0_i32_3 = arith.constant 0 : i32
    %7 = vector.broadcast %c0_i32_3 : i32 to vector<1x8xi32>
    %8 = arith.cmpi eq, %6, %7 : vector<1x8xi32>
    %9 = arith.cmpi sle, %3, %4 : vector<8x8xi32>
    %10 = vector.broadcast %8 : vector<1x8xi1> to vector<8x8xi1>
    %11 = arith.andi %10, %9 : vector<8x8xi1>
    %c0_4 = arith.constant 0 : index
    %c0_5 = arith.constant 0 : index
    %12 = vector.load %arg24[%c0_4, %c0_5] : memref<8x32xf32, #tpu.memory_space<vmem>>, vector<8x32xf32>
    %c0_6 = arith.constant 0 : index
    %c0_7 = arith.constant 0 : index
    %c0_8 = arith.constant 0 : index
    %13 = vector.load %arg5[%c0_6, %c0_7, %c0_8] : memref<1x1x32xf32, #tpu.memory_space<vmem>>, vector<1x1x32xf32>
    %14 = vector.shape_cast %13 : vector<1x1x32xf32> to vector<1x32xf32>
    %c0_9 = arith.constant 0 : index
    %c0_10 = arith.constant 0 : index
    %c0_11 = arith.constant 0 : index
    %15 = vector.load %arg6[%c0_9, %c0_10, %c0_11] : memref<1x1x32xf32, #tpu.memory_space<vmem>>, vector<1x1x32xf32>
    %16 = vector.shape_cast %15 : vector<1x1x32xf32> to vector<1x32xf32>
    %cst = arith.constant dense<0.000000e+00> : vector<8xf32>
    %17 = vector.multi_reduction <add>, %12, %cst [1] : vector<8x32xf32> to vector<8xf32>
    %18 = vector.shape_cast %17 : vector<8xf32> to vector<8x1xf32>
    %cst_12 = arith.constant 3.200000e+01 : f32
    %19 = vector.broadcast %cst_12 : f32 to vector<8x1xf32>
    %20 = arith.divf %18, %19 : vector<8x1xf32>
    %21 = vector.broadcast %20 : vector<8x1xf32> to vector<8x32xf32>
    %22 = arith.subf %12, %21 : vector<8x32xf32>
    %23 = arith.mulf %22, %22 : vector<8x32xf32>
    %cst_13 = arith.constant dense<0.000000e+00> : vector<8xf32>
    %24 = vector.multi_reduction <add>, %23, %cst_13 [1] : vector<8x32xf32> to vector<8xf32>
    %25 = vector.shape_cast %24 : vector<8xf32> to vector<8x1xf32>
    %cst_14 = arith.constant 0.0322580636 : f32
    %26 = vector.broadcast %cst_14 : f32 to vector<8x1xf32>
    %27 = arith.mulf %25, %26 : vector<8x1xf32>
    %28 = math.sqrt %27 : vector<8x1xf32>
    %29 = vector.broadcast %14 : vector<1x32xf32> to vector<8x32xf32>
    %30 = arith.mulf %29, %22 : vector<8x32xf32>
    %cst_15 = arith.constant 9.99999997E-7 : f32
    %31 = vector.broadcast %cst_15 : f32 to vector<8x1xf32>
    %32 = arith.addf %28, %31 : vector<8x1xf32>
    %33 = vector.broadcast %32 : vector<8x1xf32> to vector<8x32xf32>
    %34 = arith.divf %30, %33 : vector<8x32xf32>
    %35 = vector.broadcast %16 : vector<1x32xf32> to vector<8x32xf32>
    %36 = arith.addf %34, %35 : vector<8x32xf32>
    %c0_16 = arith.constant 0 : index
    %c0_17 = arith.constant 0 : index
    %c0_18 = arith.constant 0 : index
    %37 = vector.load %arg7[%c0_16, %c0_17, %c0_18] : memref<1x32x32xf32, #tpu.memory_space<vmem>>, vector<1x32x32xf32>
    %38 = vector.shape_cast %37 : vector<1x32x32xf32> to vector<32x32xf32>
    %cst_19 = arith.constant dense<0.000000e+00> : vector<8x32xf32>
    %39 = tpu.matmul %36, %38, %cst_19 {dimension_numbers = #tpu.dot_dimension_numbers<[1], [0], [0], [1], [0, 0, 1, 1], [], []>} : vector<8x32xf32>, vector<32x32xf32>, vector<8x32xf32> -> vector<8x32xf32>
    %c0_20 = arith.constant 0 : index
    %c0_21 = arith.constant 0 : index
    %c0_22 = arith.constant 0 : index
    %40 = vector.load %arg8[%c0_20, %c0_21, %c0_22] : memref<1x1x32xf32, #tpu.memory_space<vmem>>, vector<1x1x32xf32>
    %41 = vector.shape_cast %40 : vector<1x1x32xf32> to vector<1x32xf32>
    %42 = vector.broadcast %41 : vector<1x32xf32> to vector<8x32xf32>
    %43 = arith.addf %39, %42 : vector<8x32xf32>
    %c0_23 = arith.constant 0 : index
    %c0_24 = arith.constant 0 : index
    %c0_25 = arith.constant 0 : index
    %44 = vector.load %arg9[%c0_23, %c0_24, %c0_25] : memref<1x32x32xf32, #tpu.memory_space<vmem>>, vector<1x32x32xf32>
    %45 = vector.shape_cast %44 : vector<1x32x32xf32> to vector<32x32xf32>
    %cst_26 = arith.constant dense<0.000000e+00> : vector<8x32xf32>
    %46 = tpu.matmul %36, %45, %cst_26 {dimension_numbers = #tpu.dot_dimension_numbers<[1], [0], [0], [1], [0, 0, 1, 1], [], []>} : vector<8x32xf32>, vector<32x32xf32>, vector<8x32xf32> -> vector<8x32xf32>
    %c0_27 = arith.constant 0 : index
    %c0_28 = arith.constant 0 : index
    %c0_29 = arith.constant 0 : index
    %47 = vector.load %arg10[%c0_27, %c0_28, %c0_29] : memref<1x1x32xf32, #tpu.memory_space<vmem>>, vector<1x1x32xf32>
    %48 = vector.shape_cast %47 : vector<1x1x32xf32> to vector<1x32xf32>
    %49 = vector.broadcast %48 : vector<1x32xf32> to vector<8x32xf32>
    %50 = arith.addf %46, %49 : vector<8x32xf32>
    %c0_30 = arith.constant 0 : index
    %c0_31 = arith.constant 0 : index
    %c0_32 = arith.constant 0 : index
    %51 = vector.load %arg11[%c0_30, %c0_31, %c0_32] : memref<1x32x32xf32, #tpu.memory_space<vmem>>, vector<1x32x32xf32>
    %52 = vector.shape_cast %51 : vector<1x32x32xf32> to vector<32x32xf32>
    %cst_33 = arith.constant dense<0.000000e+00> : vector<8x32xf32>
    %53 = tpu.matmul %36, %52, %cst_33 {dimension_numbers = #tpu.dot_dimension_numbers<[1], [0], [0], [1], [0, 0, 1, 1], [], []>} : vector<8x32xf32>, vector<32x32xf32>, vector<8x32xf32> -> vector<8x32xf32>
    %c0_34 = arith.constant 0 : index
    %c0_35 = arith.constant 0 : index
    %c0_36 = arith.constant 0 : index
    %54 = vector.load %arg12[%c0_34, %c0_35, %c0_36] : memref<1x1x32xf32, #tpu.memory_space<vmem>>, vector<1x1x32xf32>
    %55 = vector.shape_cast %54 : vector<1x1x32xf32> to vector<1x32xf32>
    %56 = vector.broadcast %55 : vector<1x32xf32> to vector<8x32xf32>
    %57 = arith.addf %53, %56 : vector<8x32xf32>
    %58 = vector.extract_strided_slice %43 {offsets = [0, 0], sizes = [8, 8], strides = [1, 1]} : vector<8x32xf32> to vector<8x8xf32>
    %59 = vector.extract_strided_slice %50 {offsets = [0, 0], sizes = [8, 8], strides = [1, 1]} : vector<8x32xf32> to vector<8x8xf32>
    %60 = vector.extract_strided_slice %57 {offsets = [0, 0], sizes = [8, 8], strides = [1, 1]} : vector<8x32xf32> to vector<8x8xf32>
    %cst_37 = arith.constant dense<0.000000e+00> : vector<8x8xf32>
    %61 = tpu.matmul %58, %59, %cst_37 {dimension_numbers = #tpu.dot_dimension_numbers<[1], [1], [0], [0], [0, 0, 1, 0], [], []>} : vector<8x8xf32>, vector<8x8xf32>, vector<8x8xf32> -> vector<8x8xf32>
    %cst_38 = arith.constant -1.000000e+09 : f32
    %62 = vector.broadcast %cst_38 : f32 to vector<8x8xf32>
    %63 = arith.select %11, %62, %61 : vector<8x8xi1>, vector<8x8xf32>
    %cst_39 = arith.constant dense<0xFF800000> : vector<8xf32>
    %64 = vector.multi_reduction <maximumf>, %63, %cst_39 [1] : vector<8x8xf32> to vector<8xf32>
    %65 = vector.shape_cast %64 : vector<8xf32> to vector<8x1xf32>
    %66 = vector.broadcast %65 : vector<8x1xf32> to vector<8x8xf32>
    %67 = arith.subf %63, %66 : vector<8x8xf32>
    %68 = math.exp %67 : vector<8x8xf32>
    %cst_40 = arith.constant dense<0.000000e+00> : vector<8xf32>
    %69 = vector.multi_reduction <add>, %68, %cst_40 [1] : vector<8x8xf32> to vector<8xf32>
    %70 = vector.shape_cast %69 : vector<8xf32> to vector<8x1xf32>
    %71 = tpu.reciprocal %70 {approx = true} : vector<8x1xf32> -> vector<8x1xf32>
    %72 = vector.broadcast %71 : vector<8x1xf32> to vector<8x8xf32>
    %73 = arith.mulf %68, %72 : vector<8x8xf32>
    %cst_41 = arith.constant dense<0.000000e+00> : vector<8x8xf32>
    %74 = tpu.matmul %73, %60, %cst_41 {dimension_numbers = #tpu.dot_dimension_numbers<[1], [0], [0], [1], [0, 0, 1, 1], [], []>} : vector<8x8xf32>, vector<8x8xf32>, vector<8x8xf32> -> vector<8x8xf32>
    %75 = vector.extract_strided_slice %43 {offsets = [0, 8], sizes = [8, 8], strides = [1, 1]} : vector<8x32xf32> to vector<8x8xf32>
    %76 = vector.extract_strided_slice %50 {offsets = [0, 8], sizes = [8, 8], strides = [1, 1]} : vector<8x32xf32> to vector<8x8xf32>
    %77 = vector.extract_strided_slice %57 {offsets = [0, 8], sizes = [8, 8], strides = [1, 1]} : vector<8x32xf32> to vector<8x8xf32>
    %cst_42 = arith.constant dense<0.000000e+00> : vector<8x8xf32>
    %78 = tpu.matmul %75, %76, %cst_42 {dimension_numbers = #tpu.dot_dimension_numbers<[1], [1], [0], [0], [0, 0, 1, 0], [], []>} : vector<8x8xf32>, vector<8x8xf32>, vector<8x8xf32> -> vector<8x8xf32>
    %cst_43 = arith.constant -1.000000e+09 : f32
    %79 = vector.broadcast %cst_43 : f32 to vector<8x8xf32>
    %80 = arith.select %11, %79, %78 : vector<8x8xi1>, vector<8x8xf32>
    %cst_44 = arith.constant dense<0xFF800000> : vector<8xf32>
    %81 = vector.multi_reduction <maximumf>, %80, %cst_44 [1] : vector<8x8xf32> to vector<8xf32>
    %82 = vector.shape_cast %81 : vector<8xf32> to vector<8x1xf32>
    %83 = vector.broadcast %82 : vector<8x1xf32> to vector<8x8xf32>
    %84 = arith.subf %80, %83 : vector<8x8xf32>
    %85 = math.exp %84 : vector<8x8xf32>
    %cst_45 = arith.constant dense<0.000000e+00> : vector<8xf32>
    %86 = vector.multi_reduction <add>, %85, %cst_45 [1] : vector<8x8xf32> to vector<8xf32>
    %87 = vector.shape_cast %86 : vector<8xf32> to vector<8x1xf32>
    %88 = tpu.reciprocal %87 {approx = true} : vector<8x1xf32> -> vector<8x1xf32>
    %89 = vector.broadcast %88 : vector<8x1xf32> to vector<8x8xf32>
    %90 = arith.mulf %85, %89 : vector<8x8xf32>
    %cst_46 = arith.constant dense<0.000000e+00> : vector<8x8xf32>
    %91 = tpu.matmul %90, %77, %cst_46 {dimension_numbers = #tpu.dot_dimension_numbers<[1], [0], [0], [1], [0, 0, 1, 1], [], []>} : vector<8x8xf32>, vector<8x8xf32>, vector<8x8xf32> -> vector<8x8xf32>
    %92 = vector.extract_strided_slice %43 {offsets = [0, 16], sizes = [8, 8], strides = [1, 1]} : vector<8x32xf32> to vector<8x8xf32>
    %93 = vector.extract_strided_slice %50 {offsets = [0, 16], sizes = [8, 8], strides = [1, 1]} : vector<8x32xf32> to vector<8x8xf32>
    %94 = vector.extract_strided_slice %57 {offsets = [0, 16], sizes = [8, 8], strides = [1, 1]} : vector<8x32xf32> to vector<8x8xf32>
    %cst_47 = arith.constant dense<0.000000e+00> : vector<8x8xf32>
    %95 = tpu.matmul %92, %93, %cst_47 {dimension_numbers = #tpu.dot_dimension_numbers<[1], [1], [0], [0], [0, 0, 1, 0], [], []>} : vector<8x8xf32>, vector<8x8xf32>, vector<8x8xf32> -> vector<8x8xf32>
    %cst_48 = arith.constant -1.000000e+09 : f32
    %96 = vector.broadcast %cst_48 : f32 to vector<8x8xf32>
    %97 = arith.select %11, %96, %95 : vector<8x8xi1>, vector<8x8xf32>
    %cst_49 = arith.constant dense<0xFF800000> : vector<8xf32>
    %98 = vector.multi_reduction <maximumf>, %97, %cst_49 [1] : vector<8x8xf32> to vector<8xf32>
    %99 = vector.shape_cast %98 : vector<8xf32> to vector<8x1xf32>
    %100 = vector.broadcast %99 : vector<8x1xf32> to vector<8x8xf32>
    %101 = arith.subf %97, %100 : vector<8x8xf32>
    %102 = math.exp %101 : vector<8x8xf32>
    %cst_50 = arith.constant dense<0.000000e+00> : vector<8xf32>
    %103 = vector.multi_reduction <add>, %102, %cst_50 [1] : vector<8x8xf32> to vector<8xf32>
    %104 = vector.shape_cast %103 : vector<8xf32> to vector<8x1xf32>
    %105 = tpu.reciprocal %104 {approx = true} : vector<8x1xf32> -> vector<8x1xf32>
    %106 = vector.broadcast %105 : vector<8x1xf32> to vector<8x8xf32>
    %107 = arith.mulf %102, %106 : vector<8x8xf32>
    %cst_51 = arith.constant dense<0.000000e+00> : vector<8x8xf32>
    %108 = tpu.matmul %107, %94, %cst_51 {dimension_numbers = #tpu.dot_dimension_numbers<[1], [0], [0], [1], [0, 0, 1, 1], [], []>} : vector<8x8xf32>, vector<8x8xf32>, vector<8x8xf32> -> vector<8x8xf32>
    %109 = vector.extract_strided_slice %43 {offsets = [0, 24], sizes = [8, 8], strides = [1, 1]} : vector<8x32xf32> to vector<8x8xf32>
    %110 = vector.extract_strided_slice %50 {offsets = [0, 24], sizes = [8, 8], strides = [1, 1]} : vector<8x32xf32> to vector<8x8xf32>
    %111 = vector.extract_strided_slice %57 {offsets = [0, 24], sizes = [8, 8], strides = [1, 1]} : vector<8x32xf32> to vector<8x8xf32>
    %cst_52 = arith.constant dense<0.000000e+00> : vector<8x8xf32>
    %112 = tpu.matmul %109, %110, %cst_52 {dimension_numbers = #tpu.dot_dimension_numbers<[1], [1], [0], [0], [0, 0, 1, 0], [], []>} : vector<8x8xf32>, vector<8x8xf32>, vector<8x8xf32> -> vector<8x8xf32>
    %cst_53 = arith.constant -1.000000e+09 : f32
    %113 = vector.broadcast %cst_53 : f32 to vector<8x8xf32>
    %114 = arith.select %11, %113, %112 : vector<8x8xi1>, vector<8x8xf32>
    %cst_54 = arith.constant dense<0xFF800000> : vector<8xf32>
    %115 = vector.multi_reduction <maximumf>, %114, %cst_54 [1] : vector<8x8xf32> to vector<8xf32>
    %116 = vector.shape_cast %115 : vector<8xf32> to vector<8x1xf32>
    %117 = vector.broadcast %116 : vector<8x1xf32> to vector<8x8xf32>
    %118 = arith.subf %114, %117 : vector<8x8xf32>
    %119 = math.exp %118 : vector<8x8xf32>
    %cst_55 = arith.constant dense<0.000000e+00> : vector<8xf32>
    %120 = vector.multi_reduction <add>, %119, %cst_55 [1] : vector<8x8xf32> to vector<8xf32>
    %121 = vector.shape_cast %120 : vector<8xf32> to vector<8x1xf32>
    %122 = tpu.reciprocal %121 {approx = true} : vector<8x1xf32> -> vector<8x1xf32>
    %123 = vector.broadcast %122 : vector<8x1xf32> to vector<8x8xf32>
    %124 = arith.mulf %119, %123 : vector<8x8xf32>
    %cst_56 = arith.constant dense<0.000000e+00> : vector<8x8xf32>
    %125 = tpu.matmul %124, %111, %cst_56 {dimension_numbers = #tpu.dot_dimension_numbers<[1], [0], [0], [1], [0, 0, 1, 1], [], []>} : vector<8x8xf32>, vector<8x8xf32>, vector<8x8xf32> -> vector<8x8xf32>
    %126 = tpu.concatenate %74, %91, %108, %125 in 1 : vector<8x8xf32>, vector<8x8xf32>, vector<8x8xf32>, vector<8x8xf32> -> vector<8x32xf32>
    %c0_57 = arith.constant 0 : index
    %c0_58 = arith.constant 0 : index
    %c0_59 = arith.constant 0 : index
    %127 = vector.load %arg13[%c0_57, %c0_58, %c0_59] : memref<1x32x32xf32, #tpu.memory_space<vmem>>, vector<1x32x32xf32>
    %128 = vector.shape_cast %127 : vector<1x32x32xf32> to vector<32x32xf32>
    %cst_60 = arith.constant dense<0.000000e+00> : vector<8x32xf32>
    %129 = tpu.matmul %126, %128, %cst_60 {dimension_numbers = #tpu.dot_dimension_numbers<[1], [0], [0], [1], [0, 0, 1, 1], [], []>} : vector<8x32xf32>, vector<32x32xf32>, vector<8x32xf32> -> vector<8x32xf32>
    %130 = arith.addf %12, %129 : vector<8x32xf32>
    %c0_61 = arith.constant 0 : index
    %c0_62 = arith.constant 0 : index
    %c0_63 = arith.constant 0 : index
    %131 = vector.load %arg14[%c0_61, %c0_62, %c0_63] : memref<1x1x32xf32, #tpu.memory_space<vmem>>, vector<1x1x32xf32>
    %132 = vector.shape_cast %131 : vector<1x1x32xf32> to vector<1x32xf32>
    %133 = vector.broadcast %132 : vector<1x32xf32> to vector<8x32xf32>
    %134 = arith.addf %130, %133 : vector<8x32xf32>
    %c0_64 = arith.constant 0 : index
    %c0_65 = arith.constant 0 : index
    %c0_66 = arith.constant 0 : index
    %135 = vector.load %arg15[%c0_64, %c0_65, %c0_66] : memref<1x1x32xf32, #tpu.memory_space<vmem>>, vector<1x1x32xf32>
    %136 = vector.shape_cast %135 : vector<1x1x32xf32> to vector<1x32xf32>
    %c0_67 = arith.constant 0 : index
    %c0_68 = arith.constant 0 : index
    %c0_69 = arith.constant 0 : index
    %137 = vector.load %arg16[%c0_67, %c0_68, %c0_69] : memref<1x1x32xf32, #tpu.memory_space<vmem>>, vector<1x1x32xf32>
    %138 = vector.shape_cast %137 : vector<1x1x32xf32> to vector<1x32xf32>
    %cst_70 = arith.constant dense<0.000000e+00> : vector<8xf32>
    %139 = vector.multi_reduction <add>, %134, %cst_70 [1] : vector<8x32xf32> to vector<8xf32>
    %140 = vector.shape_cast %139 : vector<8xf32> to vector<8x1xf32>
    %cst_71 = arith.constant 3.200000e+01 : f32
    %141 = vector.broadcast %cst_71 : f32 to vector<8x1xf32>
    %142 = arith.divf %140, %141 : vector<8x1xf32>
    %143 = vector.broadcast %142 : vector<8x1xf32> to vector<8x32xf32>
    %144 = arith.subf %134, %143 : vector<8x32xf32>
    %145 = arith.mulf %144, %144 : vector<8x32xf32>
    %cst_72 = arith.constant dense<0.000000e+00> : vector<8xf32>
    %146 = vector.multi_reduction <add>, %145, %cst_72 [1] : vector<8x32xf32> to vector<8xf32>
    %147 = vector.shape_cast %146 : vector<8xf32> to vector<8x1xf32>
    %cst_73 = arith.constant 0.0322580636 : f32
    %148 = vector.broadcast %cst_73 : f32 to vector<8x1xf32>
    %149 = arith.mulf %147, %148 : vector<8x1xf32>
    %150 = math.sqrt %149 : vector<8x1xf32>
    %151 = vector.broadcast %136 : vector<1x32xf32> to vector<8x32xf32>
    %152 = arith.mulf %151, %144 : vector<8x32xf32>
    %cst_74 = arith.constant 9.99999997E-7 : f32
    %153 = vector.broadcast %cst_74 : f32 to vector<8x1xf32>
    %154 = arith.addf %150, %153 : vector<8x1xf32>
    %155 = vector.broadcast %154 : vector<8x1xf32> to vector<8x32xf32>
    %156 = arith.divf %152, %155 : vector<8x32xf32>
    %157 = vector.broadcast %138 : vector<1x32xf32> to vector<8x32xf32>
    %158 = arith.addf %156, %157 : vector<8x32xf32>
    %c0_75 = arith.constant 0 : index
    %c0_76 = arith.constant 0 : index
    %c0_77 = arith.constant 0 : index
    %159 = vector.load %arg17[%c0_75, %c0_76, %c0_77] : memref<1x32x64xf32, #tpu.memory_space<vmem>>, vector<1x32x64xf32>
    %160 = vector.shape_cast %159 : vector<1x32x64xf32> to vector<32x64xf32>
    %cst_78 = arith.constant dense<0.000000e+00> : vector<8x64xf32>
    %161 = tpu.matmul %158, %160, %cst_78 {dimension_numbers = #tpu.dot_dimension_numbers<[1], [0], [0], [1], [0, 0, 1, 1], [], []>} : vector<8x32xf32>, vector<32x64xf32>, vector<8x64xf32> -> vector<8x64xf32>
    %c0_79 = arith.constant 0 : index
    %c0_80 = arith.constant 0 : index
    %c0_81 = arith.constant 0 : index
    %162 = vector.load %arg18[%c0_79, %c0_80, %c0_81] : memref<1x1x64xf32, #tpu.memory_space<vmem>>, vector<1x1x64xf32>
    %163 = vector.shape_cast %162 : vector<1x1x64xf32> to vector<1x64xf32>
    %164 = vector.broadcast %163 : vector<1x64xf32> to vector<8x64xf32>
    %165 = arith.addf %161, %164 : vector<8x64xf32>
    %cst_82 = arith.constant 0.000000e+00 : f32
    %166 = vector.broadcast %cst_82 : f32 to vector<8x64xf32>
    %167 = arith.maximumf %165, %166 : vector<8x64xf32>
    %c0_83 = arith.constant 0 : index
    %c0_84 = arith.constant 0 : index
    %c0_85 = arith.constant 0 : index
    %168 = vector.load %arg19[%c0_83, %c0_84, %c0_85] : memref<1x64x32xf32, #tpu.memory_space<vmem>>, vector<1x64x32xf32>
    %169 = vector.shape_cast %168 : vector<1x64x32xf32> to vector<64x32xf32>
    %cst_86 = arith.constant dense<0.000000e+00> : vector<8x32xf32>
    %170 = tpu.matmul %167, %169, %cst_86 {dimension_numbers = #tpu.dot_dimension_numbers<[1], [0], [0], [1], [0, 0, 1, 1], [], []>} : vector<8x64xf32>, vector<64x32xf32>, vector<8x32xf32> -> vector<8x32xf32>
    %171 = arith.addf %134, %170 : vector<8x32xf32>
    %c0_87 = arith.constant 0 : index
    %c0_88 = arith.constant 0 : index
    %c0_89 = arith.constant 0 : index
    %172 = vector.load %arg20[%c0_87, %c0_88, %c0_89] : memref<1x1x32xf32, #tpu.memory_space<vmem>>, vector<1x1x32xf32>
    %173 = vector.shape_cast %172 : vector<1x1x32xf32> to vector<1x32xf32>
    %174 = vector.broadcast %173 : vector<1x32xf32> to vector<8x32xf32>
    %175 = arith.addf %171, %174 : vector<8x32xf32>
    %c0_90 = arith.constant 0 : index
    %c0_91 = arith.constant 0 : index
    %176 = vector.load %arg24[%c0_90, %c0_91] : memref<8x32xf32, #tpu.memory_space<vmem>>, vector<8x32xf32>
    tpu.vector_store %arg24[%c0_90, %c0_91], %175 {strides = array<i32>} : memref<8x32xf32, #tpu.memory_space<vmem>>, vector<8x32xf32>,
    %c1_i32 = arith.constant 1 : i32
    %177 = arith.cmpi eq, %arg1, %c1_i32 : i32
    %178 = arith.extui %177 : i1 to i32
    %c0_i32_92 = arith.constant 0 : i32
    %179 = arith.cmpi ne, %178, %c0_i32_92 : i32
    scf.if %179 {
      %c0_93 = arith.constant 0 : index
      %c0_94 = arith.constant 0 : index
      %180 = vector.load %arg21[%c0_93, %c0_94] : memref<1x32xf32, #tpu.memory_space<vmem>>, vector<1x32xf32>
      %c0_95 = arith.constant 0 : index
      %c0_96 = arith.constant 0 : index
      %181 = vector.load %arg22[%c0_95, %c0_96] : memref<1x32xf32, #tpu.memory_space<vmem>>, vector<1x32xf32>
      %cst_97 = arith.constant dense<0.000000e+00> : vector<8xf32>
      %182 = vector.multi_reduction <add>, %175, %cst_97 [1] : vector<8x32xf32> to vector<8xf32>
      %183 = vector.shape_cast %182 : vector<8xf32> to vector<8x1xf32>
      %cst_98 = arith.constant 3.200000e+01 : f32
      %184 = vector.broadcast %cst_98 : f32 to vector<8x1xf32>
      %185 = arith.divf %183, %184 : vector<8x1xf32>
      %186 = vector.broadcast %185 : vector<8x1xf32> to vector<8x32xf32>
      %187 = arith.subf %175, %186 : vector<8x32xf32>
      %188 = arith.mulf %187, %187 : vector<8x32xf32>
      %cst_99 = arith.constant dense<0.000000e+00> : vector<8xf32>
      %189 = vector.multi_reduction <add>, %188, %cst_99 [1] : vector<8x32xf32> to vector<8xf32>
      %190 = vector.shape_cast %189 : vector<8xf32> to vector<8x1xf32>
      %cst_100 = arith.constant 0.0322580636 : f32
      %191 = vector.broadcast %cst_100 : f32 to vector<8x1xf32>
      %192 = arith.mulf %190, %191 : vector<8x1xf32>
      %193 = math.sqrt %192 : vector<8x1xf32>
      %194 = vector.broadcast %180 : vector<1x32xf32> to vector<8x32xf32>
      %195 = arith.mulf %194, %187 : vector<8x32xf32>
      %cst_101 = arith.constant 9.99999997E-7 : f32
      %196 = vector.broadcast %cst_101 : f32 to vector<8x1xf32>
      %197 = arith.addf %193, %196 : vector<8x1xf32>
      %198 = vector.broadcast %197 : vector<8x1xf32> to vector<8x32xf32>
      %199 = arith.divf %195, %198 : vector<8x32xf32>
      %200 = vector.broadcast %181 : vector<1x32xf32> to vector<8x32xf32>
      %201 = arith.addf %199, %200 : vector<8x32xf32>
      %c0_102 = arith.constant 0 : index
      %c0_103 = arith.constant 0 : index
      %c0_104 = arith.constant 0 : index
      %202 = vector.load %arg23[%c0_102, %c0_103, %c0_104] : memref<1x8x32xf32, #tpu.memory_space<vmem>>, vector<1x8x32xf32>
      %203 = vector.shape_cast %202 : vector<1x8x32xf32> to vector<8x32xf32>
      %204 = vector.shape_cast %201 : vector<8x32xf32> to vector<1x8x32xf32>
      tpu.vector_store %arg23[%c0_102, %c0_103, %c0_104], %204 {strides = array<i32>} : memref<1x8x32xf32, #tpu.memory_space<vmem>>, vector<1x8x32xf32>,
    } else {
    }
    return
  }
  func.func @transform_0(%arg0: i32, %arg1: i32) -> (i32, i32, i32) {
    %c0_i32 = arith.constant 0 : i32
    %c0_i32_0 = arith.constant 0 : i32
    %c0_i32_1 = arith.constant 0 : i32
    return %arg0, %c0_i32, %c0_i32_0 : i32, i32, i32
  }
  func.func @transform_1(%arg0: i32, %arg1: i32) -> (i32, i32, i32) {
    %c0_i32 = arith.constant 0 : i32
    %c0_i32_0 = arith.constant 0 : i32
    %c0_i32_1 = arith.constant 0 : i32
    return %arg0, %c0_i32, %c0_i32_0 : i32, i32, i32
  }
  func.func @transform_2(%arg0: i32, %arg1: i32) -> (i32, i32) {
    %c0_i32 = arith.constant 0 : i32
    %c0_i32_0 = arith.constant 0 : i32
    %c0_i32_1 = arith.constant 0 : i32
    return %c0_i32, %c0_i32_0 : i32, i32
  }
  func.func @transform_3(%arg0: i32, %arg1: i32) -> (i32, i32, i32) {
    %c0_i32 = arith.constant 0 : i32
    %c0_i32_0 = arith.constant 0 : i32
    %c0_i32_1 = arith.constant 0 : i32
    return %arg1, %c0_i32, %c0_i32_0 : i32, i32, i32
  }
  func.func @transform_4(%arg0: i32, %arg1: i32) -> (i32, i32, i32) {
    %c0_i32 = arith.constant 0 : i32
    %c0_i32_0 = arith.constant 0 : i32
    %c0_i32_1 = arith.constant 0 : i32
    return %arg1, %c0_i32, %c0_i32_0 : i32, i32, i32
  }
  func.func @transform_5(%arg0: i32, %arg1: i32) -> (i32, i32, i32) {
    %c0_i32 = arith.constant 0 : i32
    %c0_i32_0 = arith.constant 0 : i32
    %c0_i32_1 = arith.constant 0 : i32
    return %arg1, %c0_i32, %c0_i32_0 : i32, i32, i32
  }
  func.func @transform_6(%arg0: i32, %arg1: i32) -> (i32, i32, i32) {
    %c0_i32 = arith.constant 0 : i32
    %c0_i32_0 = arith.constant 0 : i32
    %c0_i32_1 = arith.constant 0 : i32
    return %arg1, %c0_i32, %c0_i32_0 : i32, i32, i32
  }
  func.func @transform_7(%arg0: i32, %arg1: i32) -> (i32, i32, i32) {
    %c0_i32 = arith.constant 0 : i32
    %c0_i32_0 = arith.constant 0 : i32
    %c0_i32_1 = arith.constant 0 : i32
    return %arg1, %c0_i32, %c0_i32_0 : i32, i32, i32
  }
  func.func @transform_8(%arg0: i32, %arg1: i32) -> (i32, i32, i32) {
    %c0_i32 = arith.constant 0 : i32
    %c0_i32_0 = arith.constant 0 : i32
    %c0_i32_1 = arith.constant 0 : i32
    return %arg1, %c0_i32, %c0_i32_0 : i32, i32, i32
  }
  func.func @transform_9(%arg0: i32, %arg1: i32) -> (i32, i32, i32) {
    %c0_i32 = arith.constant 0 : i32
    %c0_i32_0 = arith.constant 0 : i32
    %c0_i32_1 = arith.constant 0 : i32
    return %arg1, %c0_i32, %c0_i32_0 : i32, i32, i32
  }
  func.func @transform_10(%arg0: i32, %arg1: i32) -> (i32, i32, i32) {
    %c0_i32 = arith.constant 0 : i32
    %c0_i32_0 = arith.constant 0 : i32
    %c0_i32_1 = arith.constant 0 : i32
    return %arg1, %c0_i32, %c0_i32_0 : i32, i32, i32
  }
  func.func @transform_11(%arg0: i32, %arg1: i32) -> (i32, i32, i32) {
    %c0_i32 = arith.constant 0 : i32
    %c0_i32_0 = arith.constant 0 : i32
    %c0_i32_1 = arith.constant 0 : i32
    return %arg1, %c0_i32, %c0_i32_0 : i32, i32, i32
  }
  func.func @transform_12(%arg0: i32, %arg1: i32) -> (i32, i32, i32) {
    %c0_i32 = arith.constant 0 : i32
    %c0_i32_0 = arith.constant 0 : i32
    %c0_i32_1 = arith.constant 0 : i32
    return %arg1, %c0_i32, %c0_i32_0 : i32, i32, i32
  }
  func.func @transform_13(%arg0: i32, %arg1: i32) -> (i32, i32, i32) {
    %c0_i32 = arith.constant 0 : i32
    %c0_i32_0 = arith.constant 0 : i32
    %c0_i32_1 = arith.constant 0 : i32
    return %arg1, %c0_i32, %c0_i32_0 : i32, i32, i32
  }
  func.func @transform_14(%arg0: i32, %arg1: i32) -> (i32, i32, i32) {
    %c0_i32 = arith.constant 0 : i32
    %c0_i32_0 = arith.constant 0 : i32
    %c0_i32_1 = arith.constant 0 : i32
    return %arg1, %c0_i32, %c0_i32_0 : i32, i32, i32
  }
  func.func @transform_15(%arg0: i32, %arg1: i32) -> (i32, i32, i32) {
    %c0_i32 = arith.constant 0 : i32
    %c0_i32_0 = arith.constant 0 : i32
    %c0_i32_1 = arith.constant 0 : i32
    return %arg1, %c0_i32, %c0_i32_0 : i32, i32, i32
  }
  func.func @transform_16(%arg0: i32, %arg1: i32) -> (i32, i32, i32) {
    %c0_i32 = arith.constant 0 : i32
    %c0_i32_0 = arith.constant 0 : i32
    %c0_i32_1 = arith.constant 0 : i32
    return %arg1, %c0_i32, %c0_i32_0 : i32, i32, i32
  }
  func.func @transform_17(%arg0: i32, %arg1: i32) -> (i32, i32, i32) {
    %c0_i32 = arith.constant 0 : i32
    %c0_i32_0 = arith.constant 0 : i32
    %c0_i32_1 = arith.constant 0 : i32
    return %arg1, %c0_i32, %c0_i32_0 : i32, i32, i32
  }
  func.func @transform_18(%arg0: i32, %arg1: i32) -> (i32, i32, i32) {
    %c0_i32 = arith.constant 0 : i32
    %c0_i32_0 = arith.constant 0 : i32
    %c0_i32_1 = arith.constant 0 : i32
    return %arg1, %c0_i32, %c0_i32_0 : i32, i32, i32
  }
  func.func @transform_19(%arg0: i32, %arg1: i32) -> (i32, i32) {
    %c0_i32 = arith.constant 0 : i32
    %c0_i32_0 = arith.constant 0 : i32
    %c0_i32_1 = arith.constant 0 : i32
    return %c0_i32, %c0_i32_0 : i32, i32
  }
  func.func @transform_20(%arg0: i32, %arg1: i32) -> (i32, i32) {
    %c0_i32 = arith.constant 0 : i32
    %c0_i32_0 = arith.constant 0 : i32
    %c0_i32_1 = arith.constant 0 : i32
    return %c0_i32, %c0_i32_0 : i32, i32
  }
  func.func @transform_21(%arg0: i32, %arg1: i32) -> (i32, i32, i32) {
    %c0_i32 = arith.constant 0 : i32
    %c0_i32_0 = arith.constant 0 : i32
    %c0_i32_1 = arith.constant 0 : i32
    return %arg0, %c0_i32, %c0_i32_0 : i32, i32, i32
  }
}

</mosaic_0001>

<llo_original>
// kernel: tpu_custom_call.1
$region0: #{tpu_custom_call.1}
  #allocation0 [shape = 'u32[]', space=smem, size = 0x4, offset = 0x4, fixed_abs, tag = 'smem constant byte address 0x4 - core index']
  #allocation1 [shape = 'u32[144,128]{1,0:T(1,128)}', space=vmem, size = 0x12000, scoped, tag = 'internal scratch']
  #allocation2 [shape = 'f32[8,32]{1,0:T(8,128)}', space=vmem, size = 0x1000, scoped, tag = 'scratch operand']
  %s0 = inlined_call_operand.hbm [shape: s32[2,1,8], index: 0, kind: input, shape index: {}]
  %s1 = inlined_call_operand.hbm [shape: f32[2,8,32], index: 1, kind: input, shape index: {}]
  %s2 = inlined_call_operand.hbm [shape: f32[8,32], index: 2, kind: input, shape index: {}]
  %s3 = inlined_call_operand.hbm [shape: f32[2,1,32], index: 3, kind: input, shape index: {}]
  %s4 = inlined_call_operand.hbm [shape: f32[2,1,32], index: 4, kind: input, shape index: {}]
  %s5 = inlined_call_operand.vmem [shape: f32[2,32,32], index: 5, kind: input, shape index: {}]
  %s6 = inlined_call_operand.hbm [shape: f32[2,1,32], index: 6, kind: input, shape index: {}]
  %s7 = inlined_call_operand.vmem [shape: f32[2,32,32], index: 7, kind: input, shape index: {}]
  %s8 = inlined_call_operand.hbm [shape: f32[2,1,32], index: 8, kind: input, shape index: {}]
  %s9 = inlined_call_operand.vmem [shape: f32[2,32,32], index: 9, kind: input, shape index: {}]
  %s10 = inlined_call_operand.hbm [shape: f32[2,1,32], index: 10, kind: input, shape index: {}]
  %s11 = inlined_call_operand.hbm [shape: f32[2,32,32], index: 11, kind: input, shape index: {}]
  %s12 = inlined_call_operand.hbm [shape: f32[2,1,32], index: 12, kind: input, shape index: {}]
  %s13 = inlined_call_operand.hbm [shape: f32[2,1,32], index: 13, kind: input, shape index: {}]
  %s14 = inlined_call_operand.hbm [shape: f32[2,1,32], index: 14, kind: input, shape index: {}]
  %s15 = inlined_call_operand.hbm [shape: f32[2,32,64], index: 15, kind: input, shape index: {}]
  %s16 = inlined_call_operand.hbm [shape: f32[2,1,64], index: 16, kind: input, shape index: {}]
  %s17 = inlined_call_operand.vmem [shape: f32[2,64,32], index: 17, kind: input, shape index: {}]
  %s18 = inlined_call_operand.vmem [shape: f32[2,1,32], index: 18, kind: input, shape index: {}]
  %s19 = inlined_call_operand.vmem [shape: f32[1,32], index: 19, kind: input, shape index: {}]
  %s20 = inlined_call_operand.vmem [shape: f32[1,32], index: 20, kind: input, shape index: {}]
  %s21 = inlined_call_operand.hbm [shape: f32[2,8,32], index: 21, kind: output, shape index: {}]
  %s22 = sld [smem:[#allocation0]]
  $region181: #{tpu_custom_call.1} parent=0
    _
  %s24 = ssub.s32 1, %s22
  %s25 = scalar_select 0, %s24, %s22
  $region1: #{tpu_custom_call.1} parent=0
    #allocation3 [shape = 'u8[1024]{0}', space=vmem, size = 0x400, scoped, tag = 'input window, operand 0']
    #allocation4 [shape = 's32[2]{0}', space=sflag, size = 0x8, scoped, tag = 'scoped memory for tpu_custom_call.1']
    #allocation5 [shape = 's32[2]{0}', space=sflag, size = 0x8, scoped, tag = 'scoped memory for tpu_custom_call.1']
    #allocation6 [shape = 'u8[8192]{0}', space=vmem, size = 0x2000, scoped, tag = 'input window, operand 1']
    #allocation7 [shape = 's32[2]{0}', space=sflag, size = 0x8, scoped, tag = 'scoped memory for tpu_custom_call.1']
    #allocation8 [shape = 'u8[4096]{0}', space=vmem, size = 0x1000, scoped, tag = 'input window, operand 2, single buffered']
    #allocation9 [shape = 'u8[1024]{0}', space=vmem, size = 0x400, scoped, tag = 'input window, operand 3']
    #allocation10 [shape = 's32[2]{0}', space=sflag, size = 0x8, scoped, tag = 'scoped memory for tpu_custom_call.1']
    #allocation11 [shape = 'u8[1024]{0}', space=vmem, size = 0x400, scoped, tag = 'input window, operand 4']
    #allocation12 [shape = 'u8[1024]{0}', space=vmem, size = 0x400, scoped, tag = 'input window, operand 6']
    #allocation13 [shape = 's32[2]{0}', space=sflag, size = 0x8, scoped, tag = 'scoped memory for tpu_custom_call.1']
    #allocation14 [shape = 'u8[1024]{0}', space=vmem, size = 0x400, scoped, tag = 'input window, operand 8']
    #allocation15 [shape = 'u8[1024]{0}', space=vmem, size = 0x400, scoped, tag = 'input window, operand 10']
    #allocation16 [shape = 's32[2]{0}', space=sflag, size = 0x8, scoped, tag = 'scoped memory for tpu_custom_call.1']
    #allocation17 [shape = 'u8[32768]{0}', space=vmem, size = 0x8000, scoped, tag = 'input window, operand 11']
    #allocation18 [shape = 'u8[1024]{0}', space=vmem, size = 0x400, scoped, tag = 'input window, operand 12']
    #allocation19 [shape = 's32[2]{0}', space=sflag, size = 0x8, scoped, tag = 'scoped memory for tpu_custom_call.1']
    #allocation20 [shape = 'u8[1024]{0}', space=vmem, size = 0x400, scoped, tag = 'input window, operand 13']
    #allocation21 [shape = 'u8[1024]{0}', space=vmem, size = 0x400, scoped, tag = 'input window, operand 14']
    #allocation22 [shape = 's32[2]{0}', space=sflag, size = 0x8, scoped, tag = 'scoped memory for tpu_custom_call.1']
    #allocation23 [shape = 'u8[32768]{0}', space=vmem, size = 0x8000, scoped, tag = 'input window, operand 15']
    #allocation24 [shape = 'u8[1024]{0}', space=vmem, size = 0x400, scoped, tag = 'input window, operand 16']
    #allocation25 [shape = 's32[2]{0}', space=sflag, size = 0x8, scoped, tag = 'scoped memory for tpu_custom_call.1']
    #allocation26 [shape = 'u8[8192]{0}', space=vmem, size = 0x2000, scoped, tag = 'output window, operand 0']
    %26 = vsyncpa [#allocation4], 0
    %s27 = scalar_lea.sflag [#allocation4], 1
    %28 = vsyncpa %s27, 0
    %29 = vsyncpa [#allocation7], 0
    %s30 = scalar_lea.sflag [#allocation7], 1
    %31 = vsyncpa %s30, 0
    %32 = vsyncpa [#allocation10], 0
    %s33 = scalar_lea.sflag [#allocation10], 1
    %34 = vsyncpa %s33, 0
    %35 = vsyncpa [#allocation13], 0
    %s36 = scalar_lea.sflag [#allocation13], 1
    %37 = vsyncpa %s36, 0
    %38 = vsyncpa [#allocation16], 0
    %s39 = scalar_lea.sflag [#allocation16], 1
    %40 = vsyncpa %s39, 0
    %41 = vsyncpa [#allocation19], 0
    %s42 = scalar_lea.sflag [#allocation19], 1
    %43 = vsyncpa %s42, 0
    %44 = vsyncpa [#allocation22], 0
    %s45 = scalar_lea.sflag [#allocation22], 1
    %46 = vsyncpa %s45, 0
    %47 = vsyncpa [#allocation25], 0
    %s48 = scalar_lea.sflag [#allocation25], 1
    %49 = vsyncpa %s48, 0
    %50 = vsyncpa [#allocation5], 0
    %s51 = scalar_lea.sflag [#allocation5], 1
    %52 = vsyncpa %s51, 0
    loop: start=0, step=1, limit=6
    $region2: #{tpu_custom_call.1} parent=1 // loop_pre_header
      _
    $region3: #{tpu_custom_call.1} parent=1 // loop_header
      %s54 = sphi 0, %s58
      %p55 = scmp.ge.s32.totalorder %s54, 6
      %s61 = sphi 0, %s73
      %s62 = sphi 0, %s69
      %s63 = sphi 0, %s61
      %s64 = sphi 0, %s62
      %s65 = sphi 0, %s63
      %s66 = sphi 0, %s64
      %s76 = sphi 0, %s78
      %s79 = sphi 0, %s76
      %s80 = sphi 0, %s79
      %s96 = sphi 0, %s80
      %s102 = sphi 0, %s104
      %s105 = sphi 0, %s102
      %s106 = sphi 0, %s105
      %s122 = sphi 0, %s106
      %s126 = sphi 0, %s126
      %s128 = sphi 0, %s126
      %s129 = sphi 0, %s128
      %s143 = sphi 0, %s129
      %s149 = sphi 0, %s151
      %s152 = sphi 0, %s149
      %s153 = sphi 0, %s152
      %s169 = sphi 0, %s153
      %s175 = sphi 0, %s177
      %s178 = sphi 0, %s175
      %s179 = sphi 0, %s178
      %s195 = sphi 0, %s179
      %s201 = sphi 0, %s203
      %s204 = sphi 0, %s201
      %s205 = sphi 0, %s204
      %s221 = sphi 0, %s205
      %s227 = sphi 0, %s229
      %s230 = sphi 0, %s227
      %s231 = sphi 0, %s230
      %s247 = sphi 0, %s231
      %s253 = sphi 0, %s255
      %s256 = sphi 0, %s253
      %s257 = sphi 0, %s256
      %s273 = sphi 0, %s257
      %s279 = sphi 0, %s281
      %s282 = sphi 0, %s279
      %s283 = sphi 0, %s282
      %s299 = sphi 0, %s283
      %s305 = sphi 0, %s307
      %s308 = sphi 0, %s305
      %s309 = sphi 0, %s308
      %s325 = sphi 0, %s309
      %s331 = sphi 0, %s333
      %s334 = sphi 0, %s331
      %s335 = sphi 0, %s334
      %s351 = sphi 0, %s335
      %s357 = sphi 0, %s359
      %s360 = sphi 0, %s357
      %s361 = sphi 0, %s360
      %s377 = sphi 0, %s361
      %s383 = sphi 0, %s385
      %s386 = sphi 0, %s383
      %s387 = sphi 0, %s386
      %s403 = sphi 0, %s387
      %s409 = sphi 0, %s411
      %s412 = sphi 0, %s409
      %s413 = sphi 0, %s412
      %s429 = sphi 0, %s413
      %s435 = sphi 0, %s437
      %s438 = sphi 0, %s435
      %s439 = sphi 0, %s438
      %s455 = sphi 0, %s439
      %s461 = sphi 0, %s463
      %s464 = sphi 0, %s461
      %s465 = sphi 0, %s464
      %s481 = sphi 0, %s465
      %s487 = sphi 0, %s489
      %s490 = sphi 0, %s487
      %s491 = sphi 0, %s490
      %s507 = sphi 0, %s491
      %s513 = sphi 0, %s515
      %s516 = sphi 0, %s513
      %s517 = sphi 0, %s516
      %s533 = sphi 0, %s517
      %s539 = sphi 0, %s541
      %s542 = sphi 0, %s539
      %s543 = sphi 0, %s542
      %s559 = sphi 0, %s543
      %s563 = sphi 0, %s563
      %s565 = sphi 0, %s563
      %s566 = sphi 0, %s565
      %s580 = sphi 0, %s566
      %s584 = sphi 0, %s584
      %s586 = sphi 0, %s584
      %s587 = sphi 0, %s586
      %s601 = sphi 0, %s587
      %s607 = sphi 0, %s609
      %s610 = sphi 0, %s607
      %s611 = sphi 0, %s610
      %s627 = sphi 0, %s611
    $region4: #{tpu_custom_call.1} parent=1 // loop_header_branch
      %57 = sbr.rel (%p55) target = $region8
    $region5: #{tpu_custom_call.1} parent=1 // loop_body
      %s59 = ssub.s32 %s54, 1
      %s60 = ssub.s32 %s54, 2
      %s67 = sadd.s32 1, %s62
      %p68 = scmp.ge.s32.totalorder %s67, 2
      %s69 = scalar_select %p68, 0, %s67
      %s70 = sadd.s32 1, %s61
      %s71 = scalar_select %p68, %s70, %s61
      %p72 = scmp.ge.s32.totalorder %s71, 2
      %s73 = scalar_select %p72, 0, %s71
      %s74 = ssub.s32 %s61, %s73
      %p75 = scmp.eq.s32.totalorder %s74, 0
      %s77 = sadd.s32 %s76, 1
      %s78 = scalar_select %p75, %s76, %s77
      %p81 = pneg %p75
      %p82 = scmp.eq.s32.totalorder %s54, 3
      %p83 = por %p81, %p82
      %p84 = scmp.ne.s32.totalorder %s76, %s79
      %p85 = scmp.eq.s32.totalorder %s54, 0
      %p86 = por %p84, %p85
      %p87 = scmp.ne.s32.totalorder %s76, %s79
      %p88 = scmp.eq.s32.totalorder %s59, 3
      %p89 = por %p87, %p88
      %p90 = scmp.ne.s32.totalorder %s79, %s80
      %p91 = scmp.eq.s32.totalorder %s59, 0
      %p92 = por %p90, %p91
      %p93 = scmp.ne.s32.totalorder %s79, %s80
      %p94 = scmp.eq.s32.totalorder %s60, 3
      %p95 = por %p93, %p94
      %p97 = scmp.ne.s32.totalorder %s80, %s96
      %p98 = scmp.eq.s32.totalorder %s60, 0
      %p99 = por %p97, %p98
      %s100 = ssub.s32 %s61, %s73
      %p101 = scmp.eq.s32.totalorder %s100, 0
      %s103 = sadd.s32 %s102, 1
      %s104 = scalar_select %p101, %s102, %s103
      %p107 = pneg %p101
      %p108 = scmp.eq.s32.totalorder %s54, 3
      %p109 = por %p107, %p108
      %p110 = scmp.ne.s32.totalorder %s102, %s105
      %p111 = scmp.eq.s32.totalorder %s54, 0
      %p112 = por %p110, %p111
      %p113 = scmp.ne.s32.totalorder %s102, %s105
      %p114 = scmp.eq.s32.totalorder %s59, 3
      %p115 = por %p113, %p114
      %p116 = scmp.ne.s32.totalorder %s105, %s106
      %p117 = scmp.eq.s32.totalorder %s59, 0
      %p118 = por %p116, %p117
      %p119 = scmp.ne.s32.totalorder %s105, %s106
      %p120 = scmp.eq.s32.totalorder %s60, 3
      %p121 = por %p119, %p120
      %p123 = scmp.ne.s32.totalorder %s106, %s122
      %p124 = scmp.eq.s32.totalorder %s60, 0
      %p125 = por %p123, %p124
      %s127 = sadd.s32 %s126, 1
      %p130 = scmp.eq.s32.totalorder %s54, 3
      %p131 = scmp.ne.s32.totalorder %s126, %s128
      %p132 = scmp.eq.s32.totalorder %s54, 0
      %p133 = por %p131, %p132
      %p134 = scmp.ne.s32.totalorder %s126, %s128
      %p135 = scmp.eq.s32.totalorder %s59, 3
      %p136 = por %p134, %p135
      %p137 = scmp.ne.s32.totalorder %s128, %s129
      %p138 = scmp.eq.s32.totalorder %s59, 0
      %p139 = por %p137, %p138
      %p140 = scmp.ne.s32.totalorder %s128, %s129
      %p141 = scmp.eq.s32.totalorder %s60, 3
      %p142 = por %p140, %p141
      %p144 = scmp.ne.s32.totalorder %s129, %s143
      %p145 = scmp.eq.s32.totalorder %s60, 0
      %p146 = por %p144, %p145
      %s147 = ssub.s32 %s62, %s69
      %p148 = scmp.eq.s32.totalorder %s147, 0
      %s150 = sadd.s32 %s149, 1
      %s151 = scalar_select %p148, %s149, %s150
      %p154 = pneg %p148
      %p155 = scmp.eq.s32.totalorder %s54, 3
      %p156 = por %p154, %p155
      %p157 = scmp.ne.s32.totalorder %s149, %s152
      %p158 = scmp.eq.s32.totalorder %s54, 0
      %p159 = por %p157, %p158
      %p160 = scmp.ne.s32.totalorder %s149, %s152
      %p161 = scmp.eq.s32.totalorder %s59, 3
      %p162 = por %p160, %p161
      %p163 = scmp.ne.s32.totalorder %s152, %s153
      %p164 = scmp.eq.s32.totalorder %s59, 0
      %p165 = por %p163, %p164
      %p166 = scmp.ne.s32.totalorder %s152, %s153
      %p167 = scmp.eq.s32.totalorder %s60, 3
      %p168 = por %p166, %p167
      %p170 = scmp.ne.s32.totalorder %s153, %s169
      %p171 = scmp.eq.s32.totalorder %s60, 0
      %p172 = por %p170, %p171
      %s173 = ssub.s32 %s62, %s69
      %p174 = scmp.eq.s32.totalorder %s173, 0
      %s176 = sadd.s32 %s175, 1
      %s177 = scalar_select %p174, %s175, %s176
      %p180 = pneg %p174
      %p181 = scmp.eq.s32.totalorder %s54, 3
      %p182 = por %p180, %p181
      %p183 = scmp.ne.s32.totalorder %s175, %s178
      %p184 = scmp.eq.s32.totalorder %s54, 0
      %p185 = por %p183, %p184
      %p186 = scmp.ne.s32.totalorder %s175, %s178
      %p187 = scmp.eq.s32.totalorder %s59, 3
      %p188 = por %p186, %p187
      %p189 = scmp.ne.s32.totalorder %s178, %s179
      %p190 = scmp.eq.s32.totalorder %s59, 0
      %p191 = por %p189, %p190
      %p192 = scmp.ne.s32.totalorder %s178, %s179
      %p193 = scmp.eq.s32.totalorder %s60, 3
      %p194 = por %p192, %p193
      %p196 = scmp.ne.s32.totalorder %s179, %s195
      %p197 = scmp.eq.s32.totalorder %s60, 0
      %p198 = por %p196, %p197
      %s199 = ssub.s32 %s62, %s69
      %p200 = scmp.eq.s32.totalorder %s199, 0
      %s202 = sadd.s32 %s201, 1
      %s203 = scalar_select %p200, %s201, %s202
      %p206 = pneg %p200
      %p207 = scmp.eq.s32.totalorder %s54, 3
      %p208 = por %p206, %p207
      %p209 = scmp.ne.s32.totalorder %s201, %s204
      %p210 = scmp.eq.s32.totalorder %s54, 0
      %p211 = por %p209, %p210
      %p212 = scmp.ne.s32.totalorder %s201, %s204
      %p213 = scmp.eq.s32.totalorder %s59, 3
      %p214 = por %p212, %p213
      %p215 = scmp.ne.s32.totalorder %s204, %s205
      %p216 = scmp.eq.s32.totalorder %s59, 0
      %p217 = por %p215, %p216
      %p218 = scmp.ne.s32.totalorder %s204, %s205
      %p219 = scmp.eq.s32.totalorder %s60, 3
      %p220 = por %p218, %p219
      %p222 = scmp.ne.s32.totalorder %s205, %s221
      %p223 = scmp.eq.s32.totalorder %s60, 0
      %p224 = por %p222, %p223
      %s225 = ssub.s32 %s62, %s69
      %p226 = scmp.eq.s32.totalorder %s225, 0
      %s228 = sadd.s32 %s227, 1
      %s229 = scalar_select %p226, %s227, %s228
      %p232 = pneg %p226
      %p233 = scmp.eq.s32.totalorder %s54, 3
      %p234 = por %p232, %p233
      %p235 = scmp.ne.s32.totalorder %s227, %s230
      %p236 = scmp.eq.s32.totalorder %s54, 0
      %p237 = por %p235, %p236
      %p238 = scmp.ne.s32.totalorder %s227, %s230
      %p239 = scmp.eq.s32.totalorder %s59, 3
      %p240 = por %p238, %p239
      %p241 = scmp.ne.s32.totalorder %s230, %s231
      %p242 = scmp.eq.s32.totalorder %s59, 0
      %p243 = por %p241, %p242
      %p244 = scmp.ne.s32.totalorder %s230, %s231
      %p245 = scmp.eq.s32.totalorder %s60, 3
      %p246 = por %p244, %p245
      %p248 = scmp.ne.s32.totalorder %s231, %s247
      %p249 = scmp.eq.s32.totalorder %s60, 0
      %p250 = por %p248, %p249
      %s251 = ssub.s32 %s62, %s69
      %p252 = scmp.eq.s32.totalorder %s251, 0
      %s254 = sadd.s32 %s253, 1
      %s255 = scalar_select %p252, %s253, %s254
      %p258 = pneg %p252
      %p259 = scmp.eq.s32.totalorder %s54, 3
      %p260 = por %p258, %p259
      %p261 = scmp.ne.s32.totalorder %s253, %s256
      %p262 = scmp.eq.s32.totalorder %s54, 0
      %p263 = por %p261, %p262
      %p264 = scmp.ne.s32.totalorder %s253, %s256
      %p265 = scmp.eq.s32.totalorder %s59, 3
      %p266 = por %p264, %p265
      %p267 = scmp.ne.s32.totalorder %s256, %s257
      %p268 = scmp.eq.s32.totalorder %s59, 0
      %p269 = por %p267, %p268
      %p270 = scmp.ne.s32.totalorder %s256, %s257
      %p271 = scmp.eq.s32.totalorder %s60, 3
      %p272 = por %p270, %p271
      %p274 = scmp.ne.s32.totalorder %s257, %s273
      %p275 = scmp.eq.s32.totalorder %s60, 0
      %p276 = por %p274, %p275
      %s277 = ssub.s32 %s62, %s69
      %p278 = scmp.eq.s32.totalorder %s277, 0
      %s280 = sadd.s32 %s279, 1
      %s281 = scalar_select %p278, %s279, %s280
      %p284 = pneg %p278
      %p285 = scmp.eq.s32.totalorder %s54, 3
      %p286 = por %p284, %p285
      %p287 = scmp.ne.s32.totalorder %s279, %s282
      %p288 = scmp.eq.s32.totalorder %s54, 0
      %p289 = por %p287, %p288
      %p290 = scmp.ne.s32.totalorder %s279, %s282
      %p291 = scmp.eq.s32.totalorder %s59, 3
      %p292 = por %p290, %p291
      %p293 = scmp.ne.s32.totalorder %s282, %s283
      %p294 = scmp.eq.s32.totalorder %s59, 0
      %p295 = por %p293, %p294
      %p296 = scmp.ne.s32.totalorder %s282, %s283
      %p297 = scmp.eq.s32.totalorder %s60, 3
      %p298 = por %p296, %p297
      %p300 = scmp.ne.s32.totalorder %s283, %s299
      %p301 = scmp.eq.s32.totalorder %s60, 0
      %p302 = por %p300, %p301
      %s303 = ssub.s32 %s62, %s69
      %p304 = scmp.eq.s32.totalorder %s303, 0
      %s306 = sadd.s32 %s305, 1
      %s307 = scalar_select %p304, %s305, %s306
      %p310 = pneg %p304
      %p311 = scmp.eq.s32.totalorder %s54, 3
      %p312 = por %p310, %p311
      %p313 = scmp.ne.s32.totalorder %s305, %s308
      %p314 = scmp.eq.s32.totalorder %s54, 0
      %p315 = por %p313, %p314
      %p316 = scmp.ne.s32.totalorder %s305, %s308
      %p317 = scmp.eq.s32.totalorder %s59, 3
      %p318 = por %p316, %p317
      %p319 = scmp.ne.s32.totalorder %s308, %s309
      %p320 = scmp.eq.s32.totalorder %s59, 0
      %p321 = por %p319, %p320
      %p322 = scmp.ne.s32.totalorder %s308, %s309
      %p323 = scmp.eq.s32.totalorder %s60, 3
      %p324 = por %p322, %p323
      %p326 = scmp.ne.s32.totalorder %s309, %s325
      %p327 = scmp.eq.s32.totalorder %s60, 0
      %p328 = por %p326, %p327
      %s329 = ssub.s32 %s62, %s69
      %p330 = scmp.eq.s32.totalorder %s329, 0
      %s332 = sadd.s32 %s331, 1
      %s333 = scalar_select %p330, %s331, %s332
      %p336 = pneg %p330
      %p337 = scmp.eq.s32.totalorder %s54, 3
      %p338 = por %p336, %p337
      %p339 = scmp.ne.s32.totalorder %s331, %s334
      %p340 = scmp.eq.s32.totalorder %s54, 0
      %p341 = por %p339, %p340
      %p342 = scmp.ne.s32.totalorder %s331, %s334
      %p343 = scmp.eq.s32.totalorder %s59, 3
      %p344 = por %p342, %p343
      %p345 = scmp.ne.s32.totalorder %s334, %s335
      %p346 = scmp.eq.s32.totalorder %s59, 0
      %p347 = por %p345, %p346
      %p348 = scmp.ne.s32.totalorder %s334, %s335
      %p349 = scmp.eq.s32.totalorder %s60, 3
      %p350 = por %p348, %p349
      %p352 = scmp.ne.s32.totalorder %s335, %s351
      %p353 = scmp.eq.s32.totalorder %s60, 0
      %p354 = por %p352, %p353
      %s355 = ssub.s32 %s62, %s69
      %p356 = scmp.eq.s32.totalorder %s355, 0
      %s358 = sadd.s32 %s357, 1
      %s359 = scalar_select %p356, %s357, %s358
      %p362 = pneg %p356
      %p363 = scmp.eq.s32.totalorder %s54, 3
      %p364 = por %p362, %p363
      %p365 = scmp.ne.s32.totalorder %s357, %s360
      %p366 = scmp.eq.s32.totalorder %s54, 0
      %p367 = por %p365, %p366
      %p368 = scmp.ne.s32.totalorder %s357, %s360
      %p369 = scmp.eq.s32.totalorder %s59, 3
      %p370 = por %p368, %p369
      %p371 = scmp.ne.s32.totalorder %s360, %s361
      %p372 = scmp.eq.s32.totalorder %s59, 0
      %p373 = por %p371, %p372
      %p374 = scmp.ne.s32.totalorder %s360, %s361
      %p375 = scmp.eq.s32.totalorder %s60, 3
      %p376 = por %p374, %p375
      %p378 = scmp.ne.s32.totalorder %s361, %s377
      %p379 = scmp.eq.s32.totalorder %s60, 0
      %p380 = por %p378, %p379
      %s381 = ssub.s32 %s62, %s69
      %p382 = scmp.eq.s32.totalorder %s381, 0
      %s384 = sadd.s32 %s383, 1
      %s385 = scalar_select %p382, %s383, %s384
      %p388 = pneg %p382
      %p389 = scmp.eq.s32.totalorder %s54, 3
      %p390 = por %p388, %p389
      %p391 = scmp.ne.s32.totalorder %s383, %s386
      %p392 = scmp.eq.s32.totalorder %s54, 0
      %p393 = por %p391, %p392
      %p394 = scmp.ne.s32.totalorder %s383, %s386
      %p395 = scmp.eq.s32.totalorder %s59, 3
      %p396 = por %p394, %p395
      %p397 = scmp.ne.s32.totalorder %s386, %s387
      %p398 = scmp.eq.s32.totalorder %s59, 0
      %p399 = por %p397, %p398
      %p400 = scmp.ne.s32.totalorder %s386, %s387
      %p401 = scmp.eq.s32.totalorder %s60, 3
      %p402 = por %p400, %p401
      %p404 = scmp.ne.s32.totalorder %s387, %s403
      %p405 = scmp.eq.s32.totalorder %s60, 0
      %p406 = por %p404, %p405
      %s407 = ssub.s32 %s62, %s69
      %p408 = scmp.eq.s32.totalorder %s407, 0
      %s410 = sadd.s32 %s409, 1
      %s411 = scalar_select %p408, %s409, %s410
      %p414 = pneg %p408
      %p415 = scmp.eq.s32.totalorder %s54, 3
      %p416 = por %p414, %p415
      %p417 = scmp.ne.s32.totalorder %s409, %s412
      %p418 = scmp.eq.s32.totalorder %s54, 0
      %p419 = por %p417, %p418
      %p420 = scmp.ne.s32.totalorder %s409, %s412
      %p421 = scmp.eq.s32.totalorder %s59, 3
      %p422 = por %p420, %p421
      %p423 = scmp.ne.s32.totalorder %s412, %s413
      %p424 = scmp.eq.s32.totalorder %s59, 0
      %p425 = por %p423, %p424
      %p426 = scmp.ne.s32.totalorder %s412, %s413
      %p427 = scmp.eq.s32.totalorder %s60, 3
      %p428 = por %p426, %p427
      %p430 = scmp.ne.s32.totalorder %s413, %s429
      %p431 = scmp.eq.s32.totalorder %s60, 0
      %p432 = por %p430, %p431
      %s433 = ssub.s32 %s62, %s69
      %p434 = scmp.eq.s32.totalorder %s433, 0
      %s436 = sadd.s32 %s435, 1
      %s437 = scalar_select %p434, %s435, %s436
      %p440 = pneg %p434
      %p441 = scmp.eq.s32.totalorder %s54, 3
      %p442 = por %p440, %p441
      %p443 = scmp.ne.s32.totalorder %s435, %s438
      %p444 = scmp.eq.s32.totalorder %s54, 0
      %p445 = por %p443, %p444
      %p446 = scmp.ne.s32.totalorder %s435, %s438
      %p447 = scmp.eq.s32.totalorder %s59, 3
      %p448 = por %p446, %p447
      %p449 = scmp.ne.s32.totalorder %s438, %s439
      %p450 = scmp.eq.s32.totalorder %s59, 0
      %p451 = por %p449, %p450
      %p452 = scmp.ne.s32.totalorder %s438, %s439
      %p453 = scmp.eq.s32.totalorder %s60, 3
      %p454 = por %p452, %p453
      %p456 = scmp.ne.s32.totalorder %s439, %s455
      %p457 = scmp.eq.s32.totalorder %s60, 0
      %p458 = por %p456, %p457
      %s459 = ssub.s32 %s62, %s69
      %p460 = scmp.eq.s32.totalorder %s459, 0
      %s462 = sadd.s32 %s461, 1
      %s463 = scalar_select %p460, %s461, %s462
      %p466 = pneg %p460
      %p467 = scmp.eq.s32.totalorder %s54, 3
      %p468 = por %p466, %p467
      %p469 = scmp.ne.s32.totalorder %s461, %s464
      %p470 = scmp.eq.s32.totalorder %s54, 0
      %p471 = por %p469, %p470
      %p472 = scmp.ne.s32.totalorder %s461, %s464
      %p473 = scmp.eq.s32.totalorder %s59, 3
      %p474 = por %p472, %p473
      %p475 = scmp.ne.s32.totalorder %s464, %s465
      %p476 = scmp.eq.s32.totalorder %s59, 0
      %p477 = por %p475, %p476
      %p478 = scmp.ne.s32.totalorder %s464, %s465
      %p479 = scmp.eq.s32.totalorder %s60, 3
      %p480 = por %p478, %p479
      %p482 = scmp.ne.s32.totalorder %s465, %s481
      %p483 = scmp.eq.s32.totalorder %s60, 0
      %p484 = por %p482, %p483
      %s485 = ssub.s32 %s62, %s69
      %p486 = scmp.eq.s32.totalorder %s485, 0
      %s488 = sadd.s32 %s487, 1
      %s489 = scalar_select %p486, %s487, %s488
      %p492 = pneg %p486
      %p493 = scmp.eq.s32.totalorder %s54, 3
      %p494 = por %p492, %p493
      %p495 = scmp.ne.s32.totalorder %s487, %s490
      %p496 = scmp.eq.s32.totalorder %s54, 0
      %p497 = por %p495, %p496
      %p498 = scmp.ne.s32.totalorder %s487, %s490
      %p499 = scmp.eq.s32.totalorder %s59, 3
      %p500 = por %p498, %p499
      %p501 = scmp.ne.s32.totalorder %s490, %s491
      %p502 = scmp.eq.s32.totalorder %s59, 0
      %p503 = por %p501, %p502
      %p504 = scmp.ne.s32.totalorder %s490, %s491
      %p505 = scmp.eq.s32.totalorder %s60, 3
      %p506 = por %p504, %p505
      %p508 = scmp.ne.s32.totalorder %s491, %s507
      %p509 = scmp.eq.s32.totalorder %s60, 0
      %p510 = por %p508, %p509
      %s511 = ssub.s32 %s62, %s69
      %p512 = scmp.eq.s32.totalorder %s511, 0
      %s514 = sadd.s32 %s513, 1
      %s515 = scalar_select %p512, %s513, %s514
      %p518 = pneg %p512
      %p519 = scmp.eq.s32.totalorder %s54, 3
      %p520 = por %p518, %p519
      %p521 = scmp.ne.s32.totalorder %s513, %s516
      %p522 = scmp.eq.s32.totalorder %s54, 0
      %p523 = por %p521, %p522
      %p524 = scmp.ne.s32.totalorder %s513, %s516
      %p525 = scmp.eq.s32.totalorder %s59, 3
      %p526 = por %p524, %p525
      %p527 = scmp.ne.s32.totalorder %s516, %s517
      %p528 = scmp.eq.s32.totalorder %s59, 0
      %p529 = por %p527, %p528
      %p530 = scmp.ne.s32.totalorder %s516, %s517
      %p531 = scmp.eq.s32.totalorder %s60, 3
      %p532 = por %p530, %p531
      %p534 = scmp.ne.s32.totalorder %s517, %s533
      %p535 = scmp.eq.s32.totalorder %s60, 0
      %p536 = por %p534, %p535
      %s537 = ssub.s32 %s62, %s69
      %p538 = scmp.eq.s32.totalorder %s537, 0
      %s540 = sadd.s32 %s539, 1
      %s541 = scalar_select %p538, %s539, %s540
      %p544 = pneg %p538
      %p545 = scmp.eq.s32.totalorder %s54, 3
      %p546 = por %p544, %p545
      %p547 = scmp.ne.s32.totalorder %s539, %s542
      %p548 = scmp.eq.s32.totalorder %s54, 0
      %p549 = por %p547, %p548
      %p550 = scmp.ne.s32.totalorder %s539, %s542
      %p551 = scmp.eq.s32.totalorder %s59, 3
      %p552 = por %p550, %p551
      %p553 = scmp.ne.s32.totalorder %s542, %s543
      %p554 = scmp.eq.s32.totalorder %s59, 0
      %p555 = por %p553, %p554
      %p556 = scmp.ne.s32.totalorder %s542, %s543
      %p557 = scmp.eq.s32.totalorder %s60, 3
      %p558 = por %p556, %p557
      %p560 = scmp.ne.s32.totalorder %s543, %s559
      %p561 = scmp.eq.s32.totalorder %s60, 0
      %p562 = por %p560, %p561
      %s564 = sadd.s32 %s563, 1
      %p567 = scmp.eq.s32.totalorder %s54, 3
      %p568 = scmp.ne.s32.totalorder %s563, %s565
      %p569 = scmp.eq.s32.totalorder %s54, 0
      %p570 = por %p568, %p569
      %p571 = scmp.ne.s32.totalorder %s563, %s565
      %p572 = scmp.eq.s32.totalorder %s59, 3
      %p573 = por %p571, %p572
      %p574 = scmp.ne.s32.totalorder %s565, %s566
      %p575 = scmp.eq.s32.totalorder %s59, 0
      %p576 = por %p574, %p575
      %p577 = scmp.ne.s32.totalorder %s565, %s566
      %p578 = scmp.eq.s32.totalorder %s60, 3
      %p579 = por %p577, %p578
      %p581 = scmp.ne.s32.totalorder %s566, %s580
      %p582 = scmp.eq.s32.totalorder %s60, 0
      %p583 = por %p581, %p582
      %s585 = sadd.s32 %s584, 1
      %p588 = scmp.eq.s32.totalorder %s54, 3
      %p589 = scmp.ne.s32.totalorder %s584, %s586
      %p590 = scmp.eq.s32.totalorder %s54, 0
      %p591 = por %p589, %p590
      %p592 = scmp.ne.s32.totalorder %s584, %s586
      %p593 = scmp.eq.s32.totalorder %s59, 3
      %p594 = por %p592, %p593
      %p595 = scmp.ne.s32.totalorder %s586, %s587
      %p596 = scmp.eq.s32.totalorder %s59, 0
      %p597 = por %p595, %p596
      %p598 = scmp.ne.s32.totalorder %s586, %s587
      %p599 = scmp.eq.s32.totalorder %s60, 3
      %p600 = por %p598, %p599
      %p602 = scmp.ne.s32.totalorder %s587, %s601
      %p603 = scmp.eq.s32.totalorder %s60, 0
      %p604 = por %p602, %p603
      %s605 = ssub.s32 %s61, %s73
      %p606 = scmp.eq.s32.totalorder %s605, 0
      %s608 = sadd.s32 %s607, 1
      %s609 = scalar_select %p606, %s607, %s608
      %p612 = pneg %p606
      %p613 = scmp.eq.s32.totalorder %s54, 3
      %p614 = por %p612, %p613
      %p615 = scmp.ne.s32.totalorder %s607, %s610
      %p616 = scmp.eq.s32.totalorder %s54, 0
      %p617 = por %p615, %p616
      %p618 = scmp.ne.s32.totalorder %s607, %s610
      %p619 = scmp.eq.s32.totalorder %s59, 3
      %p620 = por %p618, %p619
      %p621 = scmp.ne.s32.totalorder %s610, %s611
      %p622 = scmp.eq.s32.totalorder %s59, 0
      %p623 = por %p621, %p622
      %p624 = scmp.ne.s32.totalorder %s610, %s611
      %p625 = scmp.eq.s32.totalorder %s60, 3
      %p626 = por %p624, %p625
      %p628 = scmp.ne.s32.totalorder %s611, %s627
      %p629 = scmp.eq.s32.totalorder %s60, 0
      %p630 = por %p628, %p629
      %p631 = scmp.le.s32.totalorder 1, %s54
      %p632 = scmp.lt.s32.totalorder %s54, 5
      %p633 = pnand %p631, %p632
      %p634 = pneg %p633
      // Predicated region
      $region9: #{tpu_custom_call.1} parent=5 // pred_check
        _
      $region10: #{tpu_custom_call.1} parent=5 // pred_check_branch
        %636 = sbr.rel (%p633) target = $region12
      $region11: #{tpu_custom_call.1} parent=5 // pred_region
        %s637 = ssub.s32 %s54, 1
        // Predicated region
        $region13: #{tpu_custom_call.1} parent=11 // pred_check
          %p638 = pneg %p139
        $region14: #{tpu_custom_call.1} parent=11 // pred_check_branch
          %640 = sbr.rel (%p638) target = $region16
        $region15: #{tpu_custom_call.1} parent=11 // pred_region
          %s642 = ssub.s32 128, 128
          %643 = vsyncadd [#allocation7], %s642
          %s645 = sshll.u32 [#allocation8], 4
          %s646 = int_to_ptr.vmem [resolvable:$true] %s645
          %648 = dma.hbm_to_vmem [thread:$0]  %s2, 128, %s646, [#allocation7]
        $region16: #{tpu_custom_call.1} parent=11 // pred_fallthru
          _
        // Predicated region
        $region17: #{tpu_custom_call.1} parent=11 // pred_check
          %p649 = pneg %p576
        $region18: #{tpu_custom_call.1} parent=11 // pred_check_branch
          %651 = sbr.rel (%p649) target = $region20
        $region19: #{tpu_custom_call.1} parent=11 // pred_region
          _
        $region20: #{tpu_custom_call.1} parent=11 // pred_fallthru
          _
        // Predicated region
        $region21: #{tpu_custom_call.1} parent=11 // pred_check
          %p652 = pneg %p597
        $region22: #{tpu_custom_call.1} parent=11 // pred_check_branch
          %654 = sbr.rel (%p652) target = $region24
        $region23: #{tpu_custom_call.1} parent=11 // pred_region
          _
        $region24: #{tpu_custom_call.1} parent=11 // pred_fallthru
          _
      $region12: #{tpu_custom_call.1} parent=5 // pred_fallthru
        _
      %p655 = scmp.lt.s32.totalorder %s54, 4
      // Predicated region
      $region25: #{tpu_custom_call.1} parent=5 // pred_check
        %p656 = pneg %p655
      $region26: #{tpu_custom_call.1} parent=5 // pred_check_branch
        %658 = sbr.rel (%p656) target = $region28
      $region27: #{tpu_custom_call.1} parent=5 // pred_region
        // Predicated region
        $region29: #{tpu_custom_call.1} parent=27 // pred_check
          %p659 = pneg %p86
        $region30: #{tpu_custom_call.1} parent=27 // pred_check_branch
          %661 = sbr.rel (%p659) target = $region32
        $region31: #{tpu_custom_call.1} parent=27 // pred_region
          %s662 = sand.u32 %s76, 1
          %s663 = scalar_lea.sflag [#allocation4], %s662
          %s664 = sand.u32 %s76, 1
          %s665 = scalar_lea.vmem [#allocation3], %s664
          %s667 = ssub.s32 16, 16
          %668 = vsyncadd %s663, %s667
          %s669 = smul.addr %s61, 16
          %s670 = scalar_lea.hbm %s0, %s669
          %s672 = sshll.u32 %s665, 4
          %s673 = int_to_ptr.vmem [resolvable:$true] %s672
          %675 = dma.hbm_to_vmem [thread:$0]  %s670, 16, %s673, %s663
        $region32: #{tpu_custom_call.1} parent=27 // pred_fallthru
          _
        // Predicated region
        $region33: #{tpu_custom_call.1} parent=27 // pred_check
          %p676 = pneg %p112
        $region34: #{tpu_custom_call.1} parent=27 // pred_check_branch
          %678 = sbr.rel (%p676) target = $region36
        $region35: #{tpu_custom_call.1} parent=27 // pred_region
          %s679 = sand.u32 %s54, 1
          %s680 = scalar_lea.sflag [#allocation7], %s679
          %s681 = sand.u32 %s102, 1
          %s682 = smul.addr %s681, 8
          %s683 = scalar_lea.vmem [#allocation6], %s682
          %s685 = ssub.s32 128, 128
          %686 = vsyncadd %s680, %s685
          %s687 = smul.addr %s61, 128
          %s688 = scalar_lea.hbm %s1, %s687
          %s690 = sshll.u32 %s683, 4
          %s691 = int_to_ptr.vmem [resolvable:$true] %s690
          %693 = dma.hbm_to_vmem [thread:$0]  %s688, 128, %s691, %s680
        $region36: #{tpu_custom_call.1} parent=27 // pred_fallthru
          _
        // Predicated region
        $region37: #{tpu_custom_call.1} parent=27 // pred_check
          %p694 = pneg %p159
        $region38: #{tpu_custom_call.1} parent=27 // pred_check_branch
          %696 = sbr.rel (%p694) target = $region40
        $region39: #{tpu_custom_call.1} parent=27 // pred_region
          %s697 = sand.u32 %s54, 1
          %s698 = scalar_lea.sflag [#allocation10], %s697
          %s699 = sand.u32 %s149, 1
          %s700 = scalar_lea.vmem [#allocation9], %s699
          %s702 = ssub.s32 16, 16
          %703 = vsyncadd %s698, %s702
          %s704 = smul.addr %s62, 16
          %s705 = scalar_lea.hbm %s3, %s704
          %s707 = sshll.u32 %s700, 4
          %s708 = int_to_ptr.vmem [resolvable:$true] %s707
          %710 = dma.hbm_to_vmem [thread:$0]  %s705, 16, %s708, %s698
        $region40: #{tpu_custom_call.1} parent=27 // pred_fallthru
          _
        // Predicated region
        $region41: #{tpu_custom_call.1} parent=27 // pred_check
          %p711 = pneg %p185
        $region42: #{tpu_custom_call.1} parent=27 // pred_check_branch
          %713 = sbr.rel (%p711) target = $region44
        $region43: #{tpu_custom_call.1} parent=27 // pred_region
          %s714 = sand.u32 %s54, 1
          %s715 = scalar_lea.sflag [#allocation10], %s714
          %s716 = sand.u32 %s175, 1
          %s717 = scalar_lea.vmem [#allocation11], %s716
          %s719 = ssub.s32 16, 16
          %720 = vsyncadd %s715, %s719
          %s721 = smul.addr %s62, 16
          %s722 = scalar_lea.hbm %s4, %s721
          %s724 = sshll.u32 %s717, 4
          %s725 = int_to_ptr.vmem [resolvable:$true] %s724
          %727 = dma.hbm_to_vmem [thread:$0]  %s722, 16, %s725, %s715
        $region44: #{tpu_custom_call.1} parent=27 // pred_fallthru
          _
        // Predicated region
        $region45: #{tpu_custom_call.1} parent=27 // pred_check
          %p728 = pneg %p211
        $region46: #{tpu_custom_call.1} parent=27 // pred_check_branch
          %730 = sbr.rel (%p728) target = $region48
        $region47: #{tpu_custom_call.1} parent=27 // pred_region
          %p731 = scmp.lt.s32.totalorder %s62, 1
          %s732 = scalar_select %p731, %s62, 1
          %s733 = smul.addr %s732, 4
          %s734 = smul.addr %s733, 8
          %s735 = scalar_lea.vmem %s5, %s734
        $region48: #{tpu_custom_call.1} parent=27 // pred_fallthru
          _
        // Predicated region
        $region49: #{tpu_custom_call.1} parent=27 // pred_check
          %p736 = pneg %p237
        $region50: #{tpu_custom_call.1} parent=27 // pred_check_branch
          %738 = sbr.rel (%p736) target = $region52
        $region51: #{tpu_custom_call.1} parent=27 // pred_region
          %s739 = sand.u32 %s54, 1
          %s740 = scalar_lea.sflag [#allocation13], %s739
          %s741 = sand.u32 %s227, 1
          %s742 = scalar_lea.vmem [#allocation12], %s741
          %s744 = ssub.s32 16, 16
          %745 = vsyncadd %s740, %s744
          %s746 = smul.addr %s62, 16
          %s747 = scalar_lea.hbm %s6, %s746
          %s749 = sshll.u32 %s742, 4
          %s750 = int_to_ptr.vmem [resolvable:$true] %s749
          %752 = dma.hbm_to_vmem [thread:$0]  %s747, 16, %s750, %s740
        $region52: #{tpu_custom_call.1} parent=27 // pred_fallthru
          _
        // Predicated region
        $region53: #{tpu_custom_call.1} parent=27 // pred_check
          %p753 = pneg %p263
        $region54: #{tpu_custom_call.1} parent=27 // pred_check_branch
          %755 = sbr.rel (%p753) target = $region56
        $region55: #{tpu_custom_call.1} parent=27 // pred_region
          %p756 = scmp.lt.s32.totalorder %s62, 1
          %s757 = scalar_select %p756, %s62, 1
          %s758 = smul.addr %s757, 4
          %s759 = smul.addr %s758, 8
          %s760 = scalar_lea.vmem %s7, %s759
        $region56: #{tpu_custom_call.1} parent=27 // pred_fallthru
          _
        // Predicated region
        $region57: #{tpu_custom_call.1} parent=27 // pred_check
          %p761 = pneg %p289
        $region58: #{tpu_custom_call.1} parent=27 // pred_check_branch
          %763 = sbr.rel (%p761) target = $region60
        $region59: #{tpu_custom_call.1} parent=27 // pred_region
          %s764 = sand.u32 %s54, 1
          %s765 = scalar_lea.sflag [#allocation13], %s764
          %s766 = sand.u32 %s279, 1
          %s767 = scalar_lea.vmem [#allocation14], %s766
          %s769 = ssub.s32 16, 16
          %770 = vsyncadd %s765, %s769
          %s771 = smul.addr %s62, 16
          %s772 = scalar_lea.hbm %s8, %s771
          %s774 = sshll.u32 %s767, 4
          %s775 = int_to_ptr.vmem [resolvable:$true] %s774
          %777 = dma.hbm_to_vmem [thread:$0]  %s772, 16, %s775, %s765
        $region60: #{tpu_custom_call.1} parent=27 // pred_fallthru
          _
        // Predicated region
        $region61: #{tpu_custom_call.1} parent=27 // pred_check
          %p778 = pneg %p315
        $region62: #{tpu_custom_call.1} parent=27 // pred_check_branch
          %780 = sbr.rel (%p778) target = $region64
        $region63: #{tpu_custom_call.1} parent=27 // pred_region
          %p781 = scmp.lt.s32.totalorder %s62, 1
          %s782 = scalar_select %p781, %s62, 1
          %s783 = smul.addr %s782, 4
          %s784 = smul.addr %s783, 8
          %s785 = scalar_lea.vmem %s9, %s784
        $region64: #{tpu_custom_call.1} parent=27 // pred_fallthru
          _
        // Predicated region
        $region65: #{tpu_custom_call.1} parent=27 // pred_check
          %p786 = pneg %p341
        $region66: #{tpu_custom_call.1} parent=27 // pred_check_branch
          %788 = sbr.rel (%p786) target = $region68
        $region67: #{tpu_custom_call.1} parent=27 // pred_region
          %s789 = sand.u32 %s54, 1
          %s790 = scalar_lea.sflag [#allocation16], %s789
          %s791 = sand.u32 %s331, 1
          %s792 = scalar_lea.vmem [#allocation15], %s791
          %s794 = ssub.s32 16, 16
          %795 = vsyncadd %s790, %s794
          %s796 = smul.addr %s62, 16
          %s797 = scalar_lea.hbm %s10, %s796
          %s799 = sshll.u32 %s792, 4
          %s800 = int_to_ptr.vmem [resolvable:$true] %s799
          %802 = dma.hbm_to_vmem [thread:$0]  %s797, 16, %s800, %s790
        $region68: #{tpu_custom_call.1} parent=27 // pred_fallthru
          _
        // Predicated region
        $region69: #{tpu_custom_call.1} parent=27 // pred_check
          %p803 = pneg %p367
        $region70: #{tpu_custom_call.1} parent=27 // pred_check_branch
          %805 = sbr.rel (%p803) target = $region72
        $region71: #{tpu_custom_call.1} parent=27 // pred_region
          %s806 = sand.u32 %s54, 1
          %s807 = scalar_lea.sflag [#allocation16], %s806
          %s808 = sand.u32 %s357, 1
          %s809 = smul.addr %s808, 32
          %s810 = scalar_lea.vmem [#allocation17], %s809
          %s812 = ssub.s32 512, 512
          %813 = vsyncadd %s807, %s812
          %s814 = smul.addr %s62, 4
          %s815 = smul.addr %s814, 128
          %s816 = scalar_lea.hbm %s11, %s815
          %s817 = sshll.u32 %s810, 4
          %s818 = int_to_ptr.vmem [resolvable:$true] %s817
          %823 = dma.hbm_to_vmem [thread:$0]  %s816, 512, %s818, %s807, 128, 128, 8
        $region72: #{tpu_custom_call.1} parent=27 // pred_fallthru
          _
        // Predicated region
        $region73: #{tpu_custom_call.1} parent=27 // pred_check
          %p824 = pneg %p393
        $region74: #{tpu_custom_call.1} parent=27 // pred_check_branch
          %826 = sbr.rel (%p824) target = $region76
        $region75: #{tpu_custom_call.1} parent=27 // pred_region
          %s827 = sand.u32 %s54, 1
          %s828 = scalar_lea.sflag [#allocation19], %s827
          %s829 = sand.u32 %s383, 1
          %s830 = scalar_lea.vmem [#allocation18], %s829
          %s832 = ssub.s32 16, 16
          %833 = vsyncadd %s828, %s832
          %s834 = smul.addr %s62, 16
          %s835 = scalar_lea.hbm %s12, %s834
          %s837 = sshll.u32 %s830, 4
          %s838 = int_to_ptr.vmem [resolvable:$true] %s837
          %840 = dma.hbm_to_vmem [thread:$0]  %s835, 16, %s838, %s828
        $region76: #{tpu_custom_call.1} parent=27 // pred_fallthru
          _
        // Predicated region
        $region77: #{tpu_custom_call.1} parent=27 // pred_check
          %p841 = pneg %p419
        $region78: #{tpu_custom_call.1} parent=27 // pred_check_branch
          %843 = sbr.rel (%p841) target = $region80
        $region79: #{tpu_custom_call.1} parent=27 // pred_region
          %s844 = sand.u32 %s54, 1
          %s845 = scalar_lea.sflag [#allocation19], %s844
          %s846 = sand.u32 %s409, 1
          %s847 = scalar_lea.vmem [#allocation20], %s846
          %s849 = ssub.s32 16, 16
          %850 = vsyncadd %s845, %s849
          %s851 = smul.addr %s62, 16
          %s852 = scalar_lea.hbm %s13, %s851
          %s854 = sshll.u32 %s847, 4
          %s855 = int_to_ptr.vmem [resolvable:$true] %s854
          %857 = dma.hbm_to_vmem [thread:$0]  %s852, 16, %s855, %s845
        $region80: #{tpu_custom_call.1} parent=27 // pred_fallthru
          _
        // Predicated region
        $region81: #{tpu_custom_call.1} parent=27 // pred_check
          %p858 = pneg %p445
        $region82: #{tpu_custom_call.1} parent=27 // pred_check_branch
          %860 = sbr.rel (%p858) target = $region84
        $region83: #{tpu_custom_call.1} parent=27 // pred_region
          %s861 = sand.u32 %s54, 1
          %s862 = scalar_lea.sflag [#allocation22], %s861
          %s863 = sand.u32 %s435, 1
          %s864 = scalar_lea.vmem [#allocation21], %s863
          %s866 = ssub.s32 16, 16
          %867 = vsyncadd %s862, %s866
          %s868 = smul.addr %s62, 16
          %s869 = scalar_lea.hbm %s14, %s868
          %s871 = sshll.u32 %s864, 4
          %s872 = int_to_ptr.vmem [resolvable:$true] %s871
          %874 = dma.hbm_to_vmem [thread:$0]  %s869, 16, %s872, %s862
        $region84: #{tpu_custom_call.1} parent=27 // pred_fallthru
          _
        // Predicated region
        $region85: #{tpu_custom_call.1} parent=27 // pred_check
          %p875 = pneg %p471
        $region86: #{tpu_custom_call.1} parent=27 // pred_check_branch
          %877 = sbr.rel (%p875) target = $region88
        $region87: #{tpu_custom_call.1} parent=27 // pred_region
          %s878 = sand.u32 %s54, 1
          %s879 = scalar_lea.sflag [#allocation22], %s878
          %s880 = sand.u32 %s461, 1
          %s881 = smul.addr %s880, 32
          %s882 = scalar_lea.vmem [#allocation23], %s881
          %s884 = ssub.s32 512, 512
          %885 = vsyncadd %s879, %s884
          %s886 = smul.addr %s62, 4
          %s887 = smul.addr %s886, 128
          %s888 = scalar_lea.hbm %s15, %s887
          %s889 = sshll.u32 %s882, 4
          %s890 = int_to_ptr.vmem [resolvable:$true] %s889
          %895 = dma.hbm_to_vmem [thread:$0]  %s888, 512, %s890, %s879, 128, 128, 8
        $region88: #{tpu_custom_call.1} parent=27 // pred_fallthru
          _
        // Predicated region
        $region89: #{tpu_custom_call.1} parent=27 // pred_check
          %p896 = pneg %p497
        $region90: #{tpu_custom_call.1} parent=27 // pred_check_branch
          %898 = sbr.rel (%p896) target = $region92
        $region91: #{tpu_custom_call.1} parent=27 // pred_region
          %s899 = sand.u32 %s487, 1
          %s900 = scalar_lea.sflag [#allocation25], %s899
          %s901 = sand.u32 %s487, 1
          %s902 = scalar_lea.vmem [#allocation24], %s901
          %s904 = ssub.s32 16, 16
          %905 = vsyncadd %s900, %s904
          %s906 = smul.addr %s62, 16
          %s907 = scalar_lea.hbm %s16, %s906
          %s909 = sshll.u32 %s902, 4
          %s910 = int_to_ptr.vmem [resolvable:$true] %s909
          %912 = dma.hbm_to_vmem [thread:$0]  %s907, 16, %s910, %s900
        $region92: #{tpu_custom_call.1} parent=27 // pred_fallthru
          _
        // Predicated region
        $region93: #{tpu_custom_call.1} parent=27 // pred_check
          %p913 = pneg %p523
        $region94: #{tpu_custom_call.1} parent=27 // pred_check_branch
          %915 = sbr.rel (%p913) target = $region96
        $region95: #{tpu_custom_call.1} parent=27 // pred_region
          %p916 = scmp.lt.s32.totalorder %s62, 1
          %s917 = scalar_select %p916, %s62, 1
          %s918 = smul.addr %s917, 8
          %s919 = smul.addr %s918, 8
          %s920 = scalar_lea.vmem %s17, %s919
        $region96: #{tpu_custom_call.1} parent=27 // pred_fallthru
          _
        // Predicated region
        $region97: #{tpu_custom_call.1} parent=27 // pred_check
          %p921 = pneg %p549
        $region98: #{tpu_custom_call.1} parent=27 // pred_check_branch
          %923 = sbr.rel (%p921) target = $region100
        $region99: #{tpu_custom_call.1} parent=27 // pred_region
          %p924 = scmp.lt.s32.totalorder %s62, 1
          %s925 = scalar_select %p924, %s62, 1
          %s926 = scalar_lea.vmem %s18, %s925
        $region100: #{tpu_custom_call.1} parent=27 // pred_fallthru
          _
      $region28: #{tpu_custom_call.1} parent=5 // pred_fallthru
        _
      %p927 = scmp.le.s32.totalorder 1, %s54
      %p928 = scmp.lt.s32.totalorder %s54, 5
      %p929 = pnand %p927, %p928
      %p930 = pneg %p929
      // Predicated region
      $region101: #{tpu_custom_call.1} parent=5 // pred_check
        _
      $region102: #{tpu_custom_call.1} parent=5 // pred_check_branch
        %932 = sbr.rel (%p929) target = $region104
      $region103: #{tpu_custom_call.1} parent=5 // pred_region
        %s933 = ssub.s32 %s54, 1
        %s934 = sand.u32 %s79, 1
        %s935 = scalar_lea.sflag [#allocation4], %s934
        %s936 = sand.u32 %s79, 1
        %s937 = scalar_lea.vmem [#allocation3], %s936
        // Predicated region
        $region105: #{tpu_custom_call.1} parent=103 // pred_check
          %p938 = pneg %p92
        $region106: #{tpu_custom_call.1} parent=103 // pred_check_branch
          %940 = sbr.rel (%p938) target = $region108
        $region107: #{tpu_custom_call.1} parent=103 // pred_region
          %941 = dma.done %s935, 16
        $region108: #{tpu_custom_call.1} parent=103 // pred_fallthru
          _
        %s942 = sand.u32 %s59, 1
        %s943 = scalar_lea.sflag [#allocation7], %s942
        %s944 = sand.u32 %s105, 1
        %s945 = smul.addr %s944, 8
        %s946 = scalar_lea.vmem [#allocation6], %s945
        // Predicated region
        $region109: #{tpu_custom_call.1} parent=103 // pred_check
          %p947 = pneg %p118
        $region110: #{tpu_custom_call.1} parent=103 // pred_check_branch
          %949 = sbr.rel (%p947) target = $region112
        $region111: #{tpu_custom_call.1} parent=103 // pred_region
          %950 = dma.done %s943, 128
        $region112: #{tpu_custom_call.1} parent=103 // pred_fallthru
          _
        // Predicated region
        $region113: #{tpu_custom_call.1} parent=103 // pred_check
          %p951 = pneg %p139
        $region114: #{tpu_custom_call.1} parent=103 // pred_check_branch
          %953 = sbr.rel (%p951) target = $region116
        $region115: #{tpu_custom_call.1} parent=103 // pred_region
          %954 = dma.done [#allocation7], 128
        $region116: #{tpu_custom_call.1} parent=103 // pred_fallthru
          _
        %s955 = sand.u32 %s59, 1
        %s956 = scalar_lea.sflag [#allocation10], %s955
        %s957 = sand.u32 %s152, 1
        %s958 = scalar_lea.vmem [#allocation9], %s957
        // Predicated region
        $region117: #{tpu_custom_call.1} parent=103 // pred_check
          %p959 = pneg %p165
        $region118: #{tpu_custom_call.1} parent=103 // pred_check_branch
          %961 = sbr.rel (%p959) target = $region120
        $region119: #{tpu_custom_call.1} parent=103 // pred_region
          %962 = dma.done %s956, 16
        $region120: #{tpu_custom_call.1} parent=103 // pred_fallthru
          _
        %s963 = sand.u32 %s59, 1
        %s964 = scalar_lea.sflag [#allocation10], %s963
        %s965 = sand.u32 %s178, 1
        %s966 = scalar_lea.vmem [#allocation11], %s965
        // Predicated region
        $region121: #{tpu_custom_call.1} parent=103 // pred_check
          %p967 = pneg %p191
        $region122: #{tpu_custom_call.1} parent=103 // pred_check_branch
          %969 = sbr.rel (%p967) target = $region124
        $region123: #{tpu_custom_call.1} parent=103 // pred_region
          %970 = dma.done %s964, 16
        $region124: #{tpu_custom_call.1} parent=103 // pred_fallthru
          _
        %s971 = sand.u32 %s59, 1
        %s972 = scalar_lea.sflag [#allocation13], %s971
        %s973 = sand.u32 %s230, 1
        %s974 = scalar_lea.vmem [#allocation12], %s973
        // Predicated region
        $region125: #{tpu_custom_call.1} parent=103 // pred_check
          %p975 = pneg %p243
        $region126: #{tpu_custom_call.1} parent=103 // pred_check_branch
          %977 = sbr.rel (%p975) target = $region128
        $region127: #{tpu_custom_call.1} parent=103 // pred_region
          %978 = dma.done %s972, 16
        $region128: #{tpu_custom_call.1} parent=103 // pred_fallthru
          _
        %s979 = sand.u32 %s59, 1
        %s980 = scalar_lea.sflag [#allocation13], %s979
        %s981 = sand.u32 %s282, 1
        %s982 = scalar_lea.vmem [#allocation14], %s981
        // Predicated region
        $region129: #{tpu_custom_call.1} parent=103 // pred_check
          %p983 = pneg %p295
        $region130: #{tpu_custom_call.1} parent=103 // pred_check_branch
          %985 = sbr.rel (%p983) target = $region132
        $region131: #{tpu_custom_call.1} parent=103 // pred_region
          %986 = dma.done %s980, 16
        $region132: #{tpu_custom_call.1} parent=103 // pred_fallthru
          _
        %s987 = sand.u32 %s59, 1
        %s988 = scalar_lea.sflag [#allocation16], %s987
        %s989 = sand.u32 %s334, 1
        %s990 = scalar_lea.vmem [#allocation15], %s989
        // Predicated region
        $region133: #{tpu_custom_call.1} parent=103 // pred_check
          %p991 = pneg %p347
        $region134: #{tpu_custom_call.1} parent=103 // pred_check_branch
          %993 = sbr.rel (%p991) target = $region136
        $region135: #{tpu_custom_call.1} parent=103 // pred_region
          %994 = dma.done %s988, 16
        $region136: #{tpu_custom_call.1} parent=103 // pred_fallthru
          _
        %s995 = sand.u32 %s59, 1
        %s996 = scalar_lea.sflag [#allocation16], %s995
        %s997 = sand.u32 %s360, 1
        %s998 = smul.addr %s997, 32
        %s999 = scalar_lea.vmem [#allocation17], %s998
        // Predicated region
        $region137: #{tpu_custom_call.1} parent=103 // pred_check
          %p1000 = pneg %p373
        $region138: #{tpu_custom_call.1} parent=103 // pred_check_branch
          %1002 = sbr.rel (%p1000) target = $region140
        $region139: #{tpu_custom_call.1} parent=103 // pred_region
          %1003 = dma.done %s996, 512
        $region140: #{tpu_custom_call.1} parent=103 // pred_fallthru
          _
        %s1004 = sand.u32 %s59, 1
        %s1005 = scalar_lea.sflag [#allocation19], %s1004
        %s1006 = sand.u32 %s386, 1
        %s1007 = scalar_lea.vmem [#allocation18], %s1006
        // Predicated region
        $region141: #{tpu_custom_call.1} parent=103 // pred_check
          %p1008 = pneg %p399
        $region142: #{tpu_custom_call.1} parent=103 // pred_check_branch
          %1010 = sbr.rel (%p1008) target = $region144
        $region143: #{tpu_custom_call.1} parent=103 // pred_region
          %1011 = dma.done %s1005, 16
        $region144: #{tpu_custom_call.1} parent=103 // pred_fallthru
          _
        %s1012 = sand.u32 %s59, 1
        %s1013 = scalar_lea.sflag [#allocation19], %s1012
        %s1014 = sand.u32 %s412, 1
        %s1015 = scalar_lea.vmem [#allocation20], %s1014
        // Predicated region
        $region145: #{tpu_custom_call.1} parent=103 // pred_check
          %p1016 = pneg %p425
        $region146: #{tpu_custom_call.1} parent=103 // pred_check_branch
          %1018 = sbr.rel (%p1016) target = $region148
        $region147: #{tpu_custom_call.1} parent=103 // pred_region
          %1019 = dma.done %s1013, 16
        $region148: #{tpu_custom_call.1} parent=103 // pred_fallthru
          _
        %s1020 = sand.u32 %s59, 1
        %s1021 = scalar_lea.sflag [#allocation22], %s1020
        %s1022 = sand.u32 %s438, 1
        %s1023 = scalar_lea.vmem [#allocation21], %s1022
        // Predicated region
        $region149: #{tpu_custom_call.1} parent=103 // pred_check
          %p1024 = pneg %p451
        $region150: #{tpu_custom_call.1} parent=103 // pred_check_branch
          %1026 = sbr.rel (%p1024) target = $region152
        $region151: #{tpu_custom_call.1} parent=103 // pred_region
          %1027 = dma.done %s1021, 16
        $region152: #{tpu_custom_call.1} parent=103 // pred_fallthru
          _
        %s1028 = sand.u32 %s59, 1
        %s1029 = scalar_lea.sflag [#allocation22], %s1028
        %s1030 = sand.u32 %s464, 1
        %s1031 = smul.addr %s1030, 32
        %s1032 = scalar_lea.vmem [#allocation23], %s1031
        // Predicated region
        $region153: #{tpu_custom_call.1} parent=103 // pred_check
          %p1033 = pneg %p477
        $region154: #{tpu_custom_call.1} parent=103 // pred_check_branch
          %1035 = sbr.rel (%p1033) target = $region156
        $region155: #{tpu_custom_call.1} parent=103 // pred_region
          %1036 = dma.done %s1029, 512
        $region156: #{tpu_custom_call.1} parent=103 // pred_fallthru
          _
        %s1037 = sand.u32 %s490, 1
        %s1038 = scalar_lea.sflag [#allocation25], %s1037
        %s1039 = sand.u32 %s490, 1
        %s1040 = scalar_lea.vmem [#allocation24], %s1039
        // Predicated region
        $region157: #{tpu_custom_call.1} parent=103 // pred_check
          %p1041 = pneg %p503
        $region158: #{tpu_custom_call.1} parent=103 // pred_check_branch
          %1043 = sbr.rel (%p1041) target = $region160
        $region159: #{tpu_custom_call.1} parent=103 // pred_region
          %1044 = dma.done %s1038, 16
        $region160: #{tpu_custom_call.1} parent=103 // pred_fallthru
          _
        %s1045 = sand.u32 %s79, 1
        %s1046 = scalar_lea.sflag [#allocation4], %s1045
        %s1047 = sand.u32 %s79, 1
        %s1048 = scalar_lea.vmem [#allocation3], %s1047
        %p1049 = pneg %p92
        %p1050 = pneg %p89
        %s1051 = sand.u32 %s59, 1
        %s1052 = scalar_lea.sflag [#allocation7], %s1051
        %s1053 = sand.u32 %s105, 1
        %s1054 = smul.addr %s1053, 8
        %s1055 = scalar_lea.vmem [#allocation6], %s1054
        %p1056 = pneg %p118
        %p1057 = pneg %p115
        %p1058 = pneg %p139
        %p1059 = pneg %p136
        %s1060 = sand.u32 %s59, 1
        %s1061 = scalar_lea.sflag [#allocation10], %s1060
        %s1062 = sand.u32 %s152, 1
        %s1063 = scalar_lea.vmem [#allocation9], %s1062
        %p1064 = pneg %p165
        %p1065 = pneg %p162
        %s1066 = sand.u32 %s59, 1
        %s1067 = scalar_lea.sflag [#allocation10], %s1066
        %s1068 = sand.u32 %s178, 1
        %s1069 = scalar_lea.vmem [#allocation11], %s1068
        %p1070 = pneg %p191
        %p1071 = pneg %p188
        %p1072 = scmp.lt.s32.totalorder %s64, 1
        %s1073 = scalar_select %p1072, %s64, 1
        %s1074 = smul.addr %s1073, 4
        %s1075 = smul.addr %s1074, 8
        %s1076 = scalar_lea.vmem %s5, %s1075
        %p1077 = pneg %p217
        %p1078 = pneg %p214
        %s1079 = sand.u32 %s59, 1
        %s1080 = scalar_lea.sflag [#allocation13], %s1079
        %s1081 = sand.u32 %s230, 1
        %s1082 = scalar_lea.vmem [#allocation12], %s1081
        %p1083 = pneg %p243
        %p1084 = pneg %p240
        %p1085 = scmp.lt.s32.totalorder %s64, 1
        %s1086 = scalar_select %p1085, %s64, 1
        %s1087 = smul.addr %s1086, 4
        %s1088 = smul.addr %s1087, 8
        %s1089 = scalar_lea.vmem %s7, %s1088
        %p1090 = pneg %p269
        %p1091 = pneg %p266
        %s1092 = sand.u32 %s59, 1
        %s1093 = scalar_lea.sflag [#allocation13], %s1092
        %s1094 = sand.u32 %s282, 1
        %s1095 = scalar_lea.vmem [#allocation14], %s1094
        %p1096 = pneg %p295
        %p1097 = pneg %p292
        %p1098 = scmp.lt.s32.totalorder %s64, 1
        %s1099 = scalar_select %p1098, %s64, 1
        %s1100 = smul.addr %s1099, 4
        %s1101 = smul.addr %s1100, 8
        %s1102 = scalar_lea.vmem %s9, %s1101
        %p1103 = pneg %p321
        %p1104 = pneg %p318
        %s1105 = sand.u32 %s59, 1
        %s1106 = scalar_lea.sflag [#allocation16], %s1105
        %s1107 = sand.u32 %s334, 1
        %s1108 = scalar_lea.vmem [#allocation15], %s1107
        %p1109 = pneg %p347
        %p1110 = pneg %p344
        %s1111 = sand.u32 %s59, 1
        %s1112 = scalar_lea.sflag [#allocation16], %s1111
        %s1113 = sand.u32 %s360, 1
        %s1114 = smul.addr %s1113, 32
        %s1115 = scalar_lea.vmem [#allocation17], %s1114
        %p1116 = pneg %p373
        %p1117 = pneg %p370
        %s1118 = sand.u32 %s59, 1
        %s1119 = scalar_lea.sflag [#allocation19], %s1118
        %s1120 = sand.u32 %s386, 1
        %s1121 = scalar_lea.vmem [#allocation18], %s1120
        %p1122 = pneg %p399
        %p1123 = pneg %p396
        %s1124 = sand.u32 %s59, 1
        %s1125 = scalar_lea.sflag [#allocation19], %s1124
        %s1126 = sand.u32 %s412, 1
        %s1127 = scalar_lea.vmem [#allocation20], %s1126
        %p1128 = pneg %p425
        %p1129 = pneg %p422
        %s1130 = sand.u32 %s59, 1
        %s1131 = scalar_lea.sflag [#allocation22], %s1130
        %s1132 = sand.u32 %s438, 1
        %s1133 = scalar_lea.vmem [#allocation21], %s1132
        %p1134 = pneg %p451
        %p1135 = pneg %p448
        %s1136 = sand.u32 %s59, 1
        %s1137 = scalar_lea.sflag [#allocation22], %s1136
        %s1138 = sand.u32 %s464, 1
        %s1139 = smul.addr %s1138, 32
        %s1140 = scalar_lea.vmem [#allocation23], %s1139
        %p1141 = pneg %p477
        %p1142 = pneg %p474
        %s1143 = sand.u32 %s490, 1
        %s1144 = scalar_lea.sflag [#allocation25], %s1143
        %s1145 = sand.u32 %s490, 1
        %s1146 = scalar_lea.vmem [#allocation24], %s1145
        %p1147 = pneg %p503
        %p1148 = pneg %p500
        %p1149 = scmp.lt.s32.totalorder %s64, 1
        %s1150 = scalar_select %p1149, %s64, 1
        %s1151 = smul.addr %s1150, 8
        %s1152 = smul.addr %s1151, 8
        %s1153 = scalar_lea.vmem %s17, %s1152
        %p1154 = pneg %p529
        %p1155 = pneg %p526
        %p1156 = scmp.lt.s32.totalorder %s64, 1
        %s1157 = scalar_select %p1156, %s64, 1
        %s1158 = scalar_lea.vmem %s18, %s1157
        %p1159 = pneg %p555
        %p1160 = pneg %p552
        %p1161 = pneg %p576
        %p1162 = pneg %p573
        %p1163 = pneg %p597
        %p1164 = pneg %p594
        %p1165 = pneg %p623
        %p1166 = pneg %p620
        %s1167 = sand.u32 %s610, 1
        %s1168 = scalar_lea.sflag [#allocation5], %s1167
        %s1169 = sand.u32 %s610, 1
        %s1170 = smul.addr %s1169, 8
        %s1171 = scalar_lea.vmem [#allocation26], %s1170
        %p1172 = scmp.lt.s32.totalorder %s64, 1
        %s1173 = scalar_select %p1172, %s64, 1
        %s1174 = smul.addr %s1173, 4
        %s1175 = smul.addr %s1174, 8
        %s1176 = scalar_lea.vmem %s5, %s1175
        %p1177 = scmp.lt.s32.totalorder %s64, 1
        %s1178 = scalar_select %p1177, %s64, 1
        %s1179 = smul.addr %s1178, 4
        %s1180 = smul.addr %s1179, 8
        %s1181 = scalar_lea.vmem %s7, %s1180
        %p1182 = scmp.lt.s32.totalorder %s64, 1
        %s1183 = scalar_select %p1182, %s64, 1
        %s1184 = smul.addr %s1183, 4
        %s1185 = smul.addr %s1184, 8
        %s1186 = scalar_lea.vmem %s9, %s1185
        %p1187 = scmp.lt.s32.totalorder %s64, 1
        %s1188 = scalar_select %p1187, %s64, 1
        %s1189 = smul.addr %s1188, 8
        %s1190 = smul.addr %s1189, 8
        %s1191 = scalar_lea.vmem %s17, %s1190
        %p1192 = scmp.lt.s32.totalorder %s64, 1
        %s1193 = scalar_select %p1192, %s64, 1
        %s1194 = scalar_lea.vmem %s18, %s1193
        %p1195 = scmp.eq.s32.totalorder %s64, 0
        // Predicated region
        $region161: #{tpu_custom_call.1} parent=103 // pred_check
          %p1196 = pneg %p1195
        $region162: #{tpu_custom_call.1} parent=103 // pred_check_branch
          %1198 = sbr.rel (%p1196) target = $region164
        $region163: #{tpu_custom_call.1} parent=103 // pred_region
          %v1199 = vld [vmem:[%s946] sm:$0xff]
          %v1200 = vld [vmem:[#allocation8] sm:$0xff]
          %v1201 = vadd.f32 %v1199, %v1200
          %vm1202 = vcmask 261120
          %1203 = vst.msk [vmem:[#allocation2] sm:$0xff] %vm1202, %v1201
        $region164: #{tpu_custom_call.1} parent=103 // pred_fallthru
          _
        %v1204 = vlaneseq
        %v1205 = vand.u32 %v1204, 127
        %v1206 = vlaneseq
        %v1207 = vshrl.u32 %v1206, 7
        %v1208 = vld [vmem:[%s937] sm:$0x1]
        %vm1209 = vcmp.eq.s32.totalorder %v1208, 0
        %vm1210 = vcmp.le.s32.totalorder %v1205, %v1207
        %v1211 = vsel %vm1209, 1, 0
        %v1212 = vlaneseq
        %v1213 = vshrl.u32 %v1212, 7
        %v1214 = vsub.s32 0, %v1213
        %v1215 = vrot.slane %v1211, %v1214
        %vm1216 = vcmp.eq.s32.totalorder %v1215, 1
        %vm1217 = vmand %vm1216, %vm1210
        %v1218 = vld [vmem:[#allocation2] sm:$0xff]
        %v1219 = vld [vmem:[%s958] sm:$0x1]
        %v1220 = vld [vmem:[%s966] sm:$0x1]
        %vm1221 = vcmask 261120
        %v1222 = vsel %vm1221, %v1218, 0.0
        %1223 = vadd.xlane.f32.xlu0 %v1222
        %v1224 = vpop.xlane.xlu0 %1223
        %v1225 = vrcp.pop 32.0
        %v1226 = vmul.f32 %v1224, %v1225
        %v1227 = vsub.f32 %v1218, %v1226
        %v1228 = vmul.f32 %v1227, %v1227
        %v1229 = vsel %vm1221, %v1228, 0.0
        %1230 = vadd.xlane.f32.xlu0 %v1229
        %v1231 = vpop.xlane.xlu0 %1230
        %v1232 = vmul.f32 %v1231, 0.032258064
        %v1233 = vrsqrt.pop %v1232
        %v1234 = vmul.f32 %v1232, %v1233
        %vm1235 = vcmp.eq.f32.partialorder %v1232, inf
        %v1236 = vsel %vm1235, %v1232, %v1234
        %vm1237 = vcmp.eq.f32.partialorder %v1232, 0.0
        %v1238 = vand.u32 %v1232, 2147483648
        %v1239 = vsel %vm1237, %v1238, %v1236
        %v1241 = vlaneseq
        %v1242 = vshrl.u32 %v1241, 7
        %v1243 = vsub.s32 0, %v1242
        %v1244 = vrot.slane %v1219, %v1243
        %v1246 = vmul.f32 %v1244, %v1227
        %v1247 = vadd.f32 %v1239, 1e-06
        %v1248 = vrcp.pop %v1247
        %v1249 = vmul.f32 %v1246, %v1248
        %v1251 = vlaneseq
        %v1252 = vshrl.u32 %v1251, 7
        %v1253 = vsub.s32 0, %v1252
        %v1254 = vrot.slane %v1220, %v1253
        %v1256 = vadd.f32 %v1249, %v1254
        %v1257 = vld [vmem:[%s1176] sm:$0xff]
        %v1258 = vld [vmem:[%s1176 + $0x8] sm:$0xff]
        %v1259 = vld [vmem:[%s1176 + $0x10] sm:$0xff]
        %v1260 = vld [vmem:[%s1176 + $0x18] sm:$0xff]
        %v1261 = vld [vmem:[%s974] sm:$0x1]
        %v1263 = vlaneseq
        %v1264 = vshrl.u32 %v1263, 7
        %v1265 = vsub.s32 0, %v1264
        %v1266 = vrot.slane %v1261, %v1265
        %v1269 = vsel %vm1221, %v1256, 0
        %1271 = vmatprep.subr.mxu0 0.0
        %1272 = vmatpush1.msra.mxu0 %v1257
        %1273 = vmatprep.subr.mxu0 0.0
        %1274 = vmatpush1.msra.mxu0 %v1258
        %1275 = vmatprep.subr.mxu0 0.0
        %1276 = vmatpush1.msra.mxu0 %v1259
        %1277 = vmatprep.subr.mxu0 0.0
        %1278 = vmatpush1.msra.mxu0 %v1260
        %1279 = vmatprep.subr.mxu0 0.0
        %1280 = vmatpush1.msra.mxu0 0.0
        %1281 = vmatprep.subr.mxu0 0.0
        %1282 = vmatpush1.msra.mxu0 0.0
        %1283 = vmatprep.subr.mxu0 0.0
        %1284 = vmatpush1.msra.mxu0 0.0
        %1285 = vmatprep.subr.mxu0 0.0
        %1286 = vmatpush1.msra.mxu0 0.0
        %1287 = vmatprep.subr.mxu0 0.0
        %1288 = vmatpush1.msra.mxu0 0.0
        %1289 = vmatprep.subr.mxu0 0.0
        %1290 = vmatpush1.msra.mxu0 0.0
        %1291 = vmatprep.subr.mxu0 0.0
        %1292 = vmatpush1.msra.mxu0 0.0
        %1293 = vmatprep.subr.mxu0 0.0
        %1294 = vmatpush1.msra.mxu0 0.0
        %1295 = vmatprep.subr.mxu0 0.0
        %1296 = vmatpush1.msra.mxu0 0.0
        %1297 = vmatprep.subr.mxu0 0.0
        %1298 = vmatpush1.msra.mxu0 0.0
        %1299 = vmatprep.subr.mxu0 0.0
        %1300 = vmatpush1.msra.mxu0 0.0
        %1301 = vmatprep.subr.mxu0 0.0
        %1302 = vmatpush1.msra.mxu0 0.0
        %1303 = vmatprep.subr.mxu0 0.0
        %1304 = vmatpush1.msra.mxu0 0.0
        %1305 = vmatprep.subr.mxu0 0.0
        %1306 = vmatpush1.msra.mxu0 0.0
        %1307 = vmatprep.subr.mxu0 0.0
        %1308 = vmatpush1.msra.mxu0 0.0
        %1309 = vmatprep.subr.mxu0 0.0
        %1310 = vmatpush1.msra.mxu0 0.0
        %1311 = vmatprep.subr.mxu0 0.0
        %1312 = vmatpush1.msra.mxu0 0.0
        %1313 = vmatprep.subr.mxu0 0.0
        %1314 = vmatpush1.msra.mxu0 0.0
        %1315 = vmatprep.subr.mxu0 0.0
        %1316 = vmatpush1.msra.mxu0 0.0
        %1317 = vmatprep.subr.mxu0 0.0
        %1318 = vmatpush1.msra.mxu0 0.0
        %1319 = vmatprep.subr.mxu0 0.0
        %1320 = vmatpush1.msra.mxu0 0.0
        %1321 = vmatprep.subr.mxu0 0.0
        %1322 = vmatpush1.msra.mxu0 0.0
        %1323 = vmatprep.subr.mxu0 0.0
        %1324 = vmatpush1.msra.mxu0 0.0
        %1325 = vmatprep.subr.mxu0 0.0
        %1326 = vmatpush1.msra.mxu0 0.0
        %1327 = vmatprep.subr.mxu0 0.0
        %1328 = vmatpush1.msra.mxu0 0.0
        %1329 = vmatprep.subr.mxu0 0.0
        %1330 = vmatpush1.msra.mxu0 0.0
        %1331 = vmatprep.subr.mxu0 0.0
        %1332 = vmatpush1.msra.mxu0 0.0
        %1333 = vmatprep.subr.mxu0 0.0
        %1334 = vmatpush1.msra.mxu0 0.0
        %1335 = vmatprep.mubr.f32.mxu0 0.0
        %1336 = vmatmul.mubr.f32.gmra.mrb[0].mxu0 %v1269
        %v1337 = vpop.f32.mrb[0].mxu0
        %v1338 = vadd.f32 %v1266, %v1337
        %v1339 = vpop.f32.mrb[0].mxu0
        %1340 = vdwg.mxu0
        %v1341 = vld [vmem:[%s1181] sm:$0xff]
        %v1342 = vld [vmem:[%s1181 + $0x8] sm:$0xff]
        %v1343 = vld [vmem:[%s1181 + $0x10] sm:$0xff]
        %v1344 = vld [vmem:[%s1181 + $0x18] sm:$0xff]
        %v1345 = vld [vmem:[%s982] sm:$0x1]
        %v1347 = vlaneseq
        %v1348 = vshrl.u32 %v1347, 7
        %v1349 = vsub.s32 0, %v1348
        %v1350 = vrot.slane %v1345, %v1349
        %1352 = vmatprep.subr.mxu0 0.0
        %1353 = vmatpush1.msra.mxu0 %v1341
        %1354 = vmatprep.subr.mxu0 0.0
        %1355 = vmatpush1.msra.mxu0 %v1342
        %1356 = vmatprep.subr.mxu0 0.0
        %1357 = vmatpush1.msra.mxu0 %v1343
        %1358 = vmatprep.subr.mxu0 0.0
        %1359 = vmatpush1.msra.mxu0 %v1344
        %1360 = vmatprep.subr.mxu0 0.0
        %1361 = vmatpush1.msra.mxu0 0.0
        %1362 = vmatprep.subr.mxu0 0.0
        %1363 = vmatpush1.msra.mxu0 0.0
        %1364 = vmatprep.subr.mxu0 0.0
        %1365 = vmatpush1.msra.mxu0 0.0
        %1366 = vmatprep.subr.mxu0 0.0
        %1367 = vmatpush1.msra.mxu0 0.0
        %1368 = vmatprep.subr.mxu0 0.0
        %1369 = vmatpush1.msra.mxu0 0.0
        %1370 = vmatprep.subr.mxu0 0.0
        %1371 = vmatpush1.msra.mxu0 0.0
        %1372 = vmatprep.subr.mxu0 0.0
        %1373 = vmatpush1.msra.mxu0 0.0
        %1374 = vmatprep.subr.mxu0 0.0
        %1375 = vmatpush1.msra.mxu0 0.0
        %1376 = vmatprep.subr.mxu0 0.0
        %1377 = vmatpush1.msra.mxu0 0.0
        %1378 = vmatprep.subr.mxu0 0.0
        %1379 = vmatpush1.msra.mxu0 0.0
        %1380 = vmatprep.subr.mxu0 0.0
        %1381 = vmatpush1.msra.mxu0 0.0
        %1382 = vmatprep.subr.mxu0 0.0
        %1383 = vmatpush1.msra.mxu0 0.0
        %1384 = vmatprep.subr.mxu0 0.0
        %1385 = vmatpush1.msra.mxu0 0.0
        %1386 = vmatprep.subr.mxu0 0.0
        %1387 = vmatpush1.msra.mxu0 0.0
        %1388 = vmatprep.subr.mxu0 0.0
        %1389 = vmatpush1.msra.mxu0 0.0
        %1390 = vmatprep.subr.mxu0 0.0
        %1391 = vmatpush1.msra.mxu0 0.0
        %1392 = vmatprep.subr.mxu0 0.0
        %1393 = vmatpush1.msra.mxu0 0.0
        %1394 = vmatprep.subr.mxu0 0.0
        %1395 = vmatpush1.msra.mxu0 0.0
        %1396 = vmatprep.subr.mxu0 0.0
        %1397 = vmatpush1.msra.mxu0 0.0
        %1398 = vmatprep.subr.mxu0 0.0
        %1399 = vmatpush1.msra.mxu0 0.0
        %1400 = vmatprep.subr.mxu0 0.0
        %1401 = vmatpush1.msra.mxu0 0.0
        %1402 = vmatprep.subr.mxu0 0.0
        %1403 = vmatpush1.msra.mxu0 0.0
        %1404 = vmatprep.subr.mxu0 0.0
        %1405 = vmatpush1.msra.mxu0 0.0
        %1406 = vmatprep.subr.mxu0 0.0
        %1407 = vmatpush1.msra.mxu0 0.0
        %1408 = vmatprep.subr.mxu0 0.0
        %1409 = vmatpush1.msra.mxu0 0.0
        %1410 = vmatprep.subr.mxu0 0.0
        %1411 = vmatpush1.msra.mxu0 0.0
        %1412 = vmatprep.subr.mxu0 0.0
        %1413 = vmatpush1.msra.mxu0 0.0
        %1414 = vmatprep.subr.mxu0 0.0
        %1415 = vmatpush1.msra.mxu0 0.0
        %1416 = vmatprep.mubr.f32.mxu0 0.0
        %1417 = vmatmul.mubr.f32.gmra.mrb[0].mxu0 %v1269
        %v1418 = vpop.f32.mrb[0].mxu0
        %v1419 = vadd.f32 %v1350, %v1418
        %v1420 = vpop.f32.mrb[0].mxu0
        %1421 = vdwg.mxu0
        %v1422 = vld [vmem:[%s1186] sm:$0xff]
        %v1423 = vld [vmem:[%s1186 + $0x8] sm:$0xff]
        %v1424 = vld [vmem:[%s1186 + $0x10] sm:$0xff]
        %v1425 = vld [vmem:[%s1186 + $0x18] sm:$0xff]
        %v1426 = vld [vmem:[%s990] sm:$0x1]
        %v1428 = vlaneseq
        %v1429 = vshrl.u32 %v1428, 7
        %v1430 = vsub.s32 0, %v1429
        %v1431 = vrot.slane %v1426, %v1430
        %1433 = vmatprep.subr.mxu0 0.0
        %1434 = vmatpush1.msra.mxu0 %v1422
        %1435 = vmatprep.subr.mxu0 0.0
        %1436 = vmatpush1.msra.mxu0 %v1423
        %1437 = vmatprep.subr.mxu0 0.0
        %1438 = vmatpush1.msra.mxu0 %v1424
        %1439 = vmatprep.subr.mxu0 0.0
        %1440 = vmatpush1.msra.mxu0 %v1425
        %1441 = vmatprep.subr.mxu0 0.0
        %1442 = vmatpush1.msra.mxu0 0.0
        %1443 = vmatprep.subr.mxu0 0.0
        %1444 = vmatpush1.msra.mxu0 0.0
        %1445 = vmatprep.subr.mxu0 0.0
        %1446 = vmatpush1.msra.mxu0 0.0
        %1447 = vmatprep.subr.mxu0 0.0
        %1448 = vmatpush1.msra.mxu0 0.0
        %1449 = vmatprep.subr.mxu0 0.0
        %1450 = vmatpush1.msra.mxu0 0.0
        %1451 = vmatprep.subr.mxu0 0.0
        %1452 = vmatpush1.msra.mxu0 0.0
        %1453 = vmatprep.subr.mxu0 0.0
        %1454 = vmatpush1.msra.mxu0 0.0
        %1455 = vmatprep.subr.mxu0 0.0
        %1456 = vmatpush1.msra.mxu0 0.0
        %1457 = vmatprep.subr.mxu0 0.0
        %1458 = vmatpush1.msra.mxu0 0.0
        %1459 = vmatprep.subr.mxu0 0.0
        %1460 = vmatpush1.msra.mxu0 0.0
        %1461 = vmatprep.subr.mxu0 0.0
        %1462 = vmatpush1.msra.mxu0 0.0
        %1463 = vmatprep.subr.mxu0 0.0
        %1464 = vmatpush1.msra.mxu0 0.0
        %1465 = vmatprep.subr.mxu0 0.0
        %1466 = vmatpush1.msra.mxu0 0.0
        %1467 = vmatprep.subr.mxu0 0.0
        %1468 = vmatpush1.msra.mxu0 0.0
        %1469 = vmatprep.subr.mxu0 0.0
        %1470 = vmatpush1.msra.mxu0 0.0
        %1471 = vmatprep.subr.mxu0 0.0
        %1472 = vmatpush1.msra.mxu0 0.0
        %1473 = vmatprep.subr.mxu0 0.0
        %1474 = vmatpush1.msra.mxu0 0.0
        %1475 = vmatprep.subr.mxu0 0.0
        %1476 = vmatpush1.msra.mxu0 0.0
        %1477 = vmatprep.subr.mxu0 0.0
        %1478 = vmatpush1.msra.mxu0 0.0
        %1479 = vmatprep.subr.mxu0 0.0
        %1480 = vmatpush1.msra.mxu0 0.0
        %1481 = vmatprep.subr.mxu0 0.0
        %1482 = vmatpush1.msra.mxu0 0.0
        %1483 = vmatprep.subr.mxu0 0.0
        %1484 = vmatpush1.msra.mxu0 0.0
        %1485 = vmatprep.subr.mxu0 0.0
        %1486 = vmatpush1.msra.mxu0 0.0
        %1487 = vmatprep.subr.mxu0 0.0
        %1488 = vmatpush1.msra.mxu0 0.0
        %1489 = vmatprep.subr.mxu0 0.0
        %1490 = vmatpush1.msra.mxu0 0.0
        %1491 = vmatprep.subr.mxu0 0.0
        %1492 = vmatpush1.msra.mxu0 0.0
        %1493 = vmatprep.subr.mxu0 0.0
        %1494 = vmatpush1.msra.mxu0 0.0
        %1495 = vmatprep.subr.mxu0 0.0
        %1496 = vmatpush1.msra.mxu0 0.0
        %1497 = vmatprep.mubr.f32.mxu0 0.0
        %1498 = vmatmul.mubr.f32.gmra.mrb[0].mxu0 %v1269
        %v1499 = vpop.f32.mrb[0].mxu0
        %v1500 = vadd.f32 %v1431, %v1499
        %v1501 = vpop.f32.mrb[0].mxu0
        %1502 = vdwg.mxu0
        %vm1503 = vcmask 64512
        %v1505 = vsel %vm1503, %v1338, 0
        %v1508 = vsel %vm1503, %v1419, 0
        %1510 = vmatprep.subr.mxu0 0.0
        %1511 = vmatpush1.xpose.msra.mxu0 %v1508
        %1512 = vmatprep.subr.mxu0 0.0
        %1513 = vmatpush1.xpose.msra.mxu0 0.0
        %1514 = vmatprep.subr.mxu0 0.0
        %1515 = vmatpush1.xpose.msra.mxu0 0.0
        %1516 = vmatprep.subr.mxu0 0.0
        %1517 = vmatpush1.xpose.msra.mxu0 0.0
        %1518 = vmatprep.subr.mxu0 0.0
        %1519 = vmatpush1.xpose.msra.mxu0 0.0
        %1520 = vmatprep.subr.mxu0 0.0
        %1521 = vmatpush1.xpose.msra.mxu0 0.0
        %1522 = vmatprep.subr.mxu0 0.0
        %1523 = vmatpush1.xpose.msra.mxu0 0.0
        %1524 = vmatprep.subr.mxu0 0.0
        %1525 = vmatpush1.xpose.msra.mxu0 0.0
        %1526 = vmatprep.subr.mxu0 0.0
        %1527 = vmatpush1.xpose.msra.mxu0 0.0
        %1528 = vmatprep.subr.mxu0 0.0
        %1529 = vmatpush1.xpose.msra.mxu0 0.0
        %1530 = vmatprep.subr.mxu0 0.0
        %1531 = vmatpush1.xpose.msra.mxu0 0.0
        %1532 = vmatprep.subr.mxu0 0.0
        %1533 = vmatpush1.xpose.msra.mxu0 0.0
        %1534 = vmatprep.subr.mxu0 0.0
        %1535 = vmatpush1.xpose.msra.mxu0 0.0
        %1536 = vmatprep.subr.mxu0 0.0
        %1537 = vmatpush1.xpose.msra.mxu0 0.0
        %1538 = vmatprep.subr.mxu0 0.0
        %1539 = vmatpush1.xpose.msra.mxu0 0.0
        %1540 = vmatprep.subr.mxu0 0.0
        %1541 = vmatpush1.xpose.msra.mxu0 0.0
        %1542 = vmatprep.subr.mxu0 0.0
        %1543 = vmatpush1.xpose.msra.mxu0 0.0
        %1544 = vmatprep.subr.mxu0 0.0
        %1545 = vmatpush1.xpose.msra.mxu0 0.0
        %1546 = vmatprep.subr.mxu0 0.0
        %1547 = vmatpush1.xpose.msra.mxu0 0.0
        %1548 = vmatprep.subr.mxu0 0.0
        %1549 = vmatpush1.xpose.msra.mxu0 0.0
        %1550 = vmatprep.subr.mxu0 0.0
        %1551 = vmatpush1.xpose.msra.mxu0 0.0
        %1552 = vmatprep.subr.mxu0 0.0
        %1553 = vmatpush1.xpose.msra.mxu0 0.0
        %1554 = vmatprep.subr.mxu0 0.0
        %1555 = vmatpush1.xpose.msra.mxu0 0.0
        %1556 = vmatprep.subr.mxu0 0.0
        %1557 = vmatpush1.xpose.msra.mxu0 0.0
        %1558 = vmatprep.subr.mxu0 0.0
        %1559 = vmatpush1.xpose.msra.mxu0 0.0
        %1560 = vmatprep.subr.mxu0 0.0
        %1561 = vmatpush1.xpose.msra.mxu0 0.0
        %1562 = vmatprep.subr.mxu0 0.0
        %1563 = vmatpush1.xpose.msra.mxu0 0.0
        %1564 = vmatprep.subr.mxu0 0.0
        %1565 = vmatpush1.xpose.msra.mxu0 0.0
        %1566 = vmatprep.subr.mxu0 0.0
        %1567 = vmatpush1.xpose.msra.mxu0 0.0
        %1568 = vmatprep.subr.mxu0 0.0
        %1569 = vmatpush1.xpose.msra.mxu0 0.0
        %1570 = vmatprep.subr.mxu0 0.0
        %1571 = vmatpush1.xpose.msra.mxu0 0.0
        %1572 = vmatprep.subr.mxu0 0.0
        %1573 = vmatpush1.xpose.msra.mxu0 0.0
        %1574 = vmatprep.mubr.f32.mxu0 0.0
        %1575 = vmatmul.mubr.f32.gmra.mrb[0].mxu0 %v1505
        %v1576 = vpop.f32.mrb[0].mxu0
        %v1577 = vadd.f32 0.0, %v1576
        %v1578 = vpop.f32.mrb[0].mxu0
        %1579 = vdwg.mxu0
        %v1580 = vsel %vm1217, -1e+09, %v1577
        %v1581 = vsel %vm1503, %v1580, -inf
        %1582 = vmax.xlane.f32.xlu0 %v1581
        %v1583 = vpop.xlane.xlu0 %1582
        %v1584 = vsub.f32 %v1580, %v1583
        %v1585 = vmul.f32 %v1584, 1.442695
        %v1586 = vpow.pop %v1585
        %v1587 = vsel %vm1503, %v1586, 0.0
        %1588 = vadd.xlane.f32.xlu0 %v1587
        %v1589 = vpop.xlane.xlu0 %1588
        %v1590 = vrcp.pop %v1589
        %v1591 = vmul.f32 %v1586, %v1590
        %v1593 = vsel %vm1503, %v1591, 0
        %1595 = vmatprep.subr.mxu0 0.0
        %1596 = vmatpush1.msra.mxu0 %v1500
        %1597 = vmatprep.subr.mxu0 0.0
        %1598 = vmatpush1.msra.mxu0 0.0
        %1599 = vmatprep.subr.mxu0 0.0
        %1600 = vmatpush1.msra.mxu0 0.0
        %1601 = vmatprep.subr.mxu0 0.0
        %1602 = vmatpush1.msra.mxu0 0.0
        %1603 = vmatprep.subr.mxu0 0.0
        %1604 = vmatpush1.msra.mxu0 0.0
        %1605 = vmatprep.subr.mxu0 0.0
        %1606 = vmatpush1.msra.mxu0 0.0
        %1607 = vmatprep.subr.mxu0 0.0
        %1608 = vmatpush1.msra.mxu0 0.0
        %1609 = vmatprep.subr.mxu0 0.0
        %1610 = vmatpush1.msra.mxu0 0.0
        %1611 = vmatprep.subr.mxu0 0.0
        %1612 = vmatpush1.msra.mxu0 0.0
        %1613 = vmatprep.subr.mxu0 0.0
        %1614 = vmatpush1.msra.mxu0 0.0
        %1615 = vmatprep.subr.mxu0 0.0
        %1616 = vmatpush1.msra.mxu0 0.0
        %1617 = vmatprep.subr.mxu0 0.0
        %1618 = vmatpush1.msra.mxu0 0.0
        %1619 = vmatprep.subr.mxu0 0.0
        %1620 = vmatpush1.msra.mxu0 0.0
        %1621 = vmatprep.subr.mxu0 0.0
        %1622 = vmatpush1.msra.mxu0 0.0
        %1623 = vmatprep.subr.mxu0 0.0
        %1624 = vmatpush1.msra.mxu0 0.0
        %1625 = vmatprep.subr.mxu0 0.0
        %1626 = vmatpush1.msra.mxu0 0.0
        %1627 = vmatprep.subr.mxu0 0.0
        %1628 = vmatpush1.msra.mxu0 0.0
        %1629 = vmatprep.subr.mxu0 0.0
        %1630 = vmatpush1.msra.mxu0 0.0
        %1631 = vmatprep.subr.mxu0 0.0
        %1632 = vmatpush1.msra.mxu0 0.0
        %1633 = vmatprep.subr.mxu0 0.0
        %1634 = vmatpush1.msra.mxu0 0.0
        %1635 = vmatprep.subr.mxu0 0.0
        %1636 = vmatpush1.msra.mxu0 0.0
        %1637 = vmatprep.subr.mxu0 0.0
        %1638 = vmatpush1.msra.mxu0 0.0
        %1639 = vmatprep.subr.mxu0 0.0
        %1640 = vmatpush1.msra.mxu0 0.0
        %1641 = vmatprep.subr.mxu0 0.0
        %1642 = vmatpush1.msra.mxu0 0.0
        %1643 = vmatprep.subr.mxu0 0.0
        %1644 = vmatpush1.msra.mxu0 0.0
        %1645 = vmatprep.subr.mxu0 0.0
        %1646 = vmatpush1.msra.mxu0 0.0
        %1647 = vmatprep.subr.mxu0 0.0
        %1648 = vmatpush1.msra.mxu0 0.0
        %1649 = vmatprep.subr.mxu0 0.0
        %1650 = vmatpush1.msra.mxu0 0.0
        %1651 = vmatprep.subr.mxu0 0.0
        %1652 = vmatpush1.msra.mxu0 0.0
        %1653 = vmatprep.subr.mxu0 0.0
        %1654 = vmatpush1.msra.mxu0 0.0
        %1655 = vmatprep.subr.mxu0 0.0
        %1656 = vmatpush1.msra.mxu0 0.0
        %1657 = vmatprep.subr.mxu0 0.0
        %1658 = vmatpush1.msra.mxu0 0.0
        %1659 = vmatprep.mubr.f32.mxu0 0.0
        %1660 = vmatmul.mubr.f32.gmra.mrb[0].mxu0 %v1593
        %v1661 = vpop.f32.mrb[0].mxu0
        %v1662 = vadd.f32 0.0, %v1661
        %v1663 = vpop.f32.mrb[0].mxu0
        %1664 = vdwg.mxu0
        %1665 = vrot.lane.b32.xlu0 %v1338, 120
        %v1666 = vpop.permute.xlu0 %1665
        %1667 = vrot.lane.b32.xlu0 %v1419, 120
        %v1668 = vpop.permute.xlu0 %1667
        %v1669 = vsel %vm1503, %v1666, 0
        %v1671 = vsel %vm1503, %v1668, 0
        %1673 = vmatprep.subr.mxu0 0.0
        %1674 = vmatpush1.xpose.msra.mxu0 %v1671
        %1675 = vmatprep.subr.mxu0 0.0
        %1676 = vmatpush1.xpose.msra.mxu0 0.0
        %1677 = vmatprep.subr.mxu0 0.0
        %1678 = vmatpush1.xpose.msra.mxu0 0.0
        %1679 = vmatprep.subr.mxu0 0.0
        %1680 = vmatpush1.xpose.msra.mxu0 0.0
        %1681 = vmatprep.subr.mxu0 0.0
        %1682 = vmatpush1.xpose.msra.mxu0 0.0
        %1683 = vmatprep.subr.mxu0 0.0
        %1684 = vmatpush1.xpose.msra.mxu0 0.0
        %1685 = vmatprep.subr.mxu0 0.0
        %1686 = vmatpush1.xpose.msra.mxu0 0.0
        %1687 = vmatprep.subr.mxu0 0.0
        %1688 = vmatpush1.xpose.msra.mxu0 0.0
        %1689 = vmatprep.subr.mxu0 0.0
        %1690 = vmatpush1.xpose.msra.mxu0 0.0
        %1691 = vmatprep.subr.mxu0 0.0
        %1692 = vmatpush1.xpose.msra.mxu0 0.0
        %1693 = vmatprep.subr.mxu0 0.0
        %1694 = vmatpush1.xpose.msra.mxu0 0.0
        %1695 = vmatprep.subr.mxu0 0.0
        %1696 = vmatpush1.xpose.msra.mxu0 0.0
        %1697 = vmatprep.subr.mxu0 0.0
        %1698 = vmatpush1.xpose.msra.mxu0 0.0
        %1699 = vmatprep.subr.mxu0 0.0
        %1700 = vmatpush1.xpose.msra.mxu0 0.0
        %1701 = vmatprep.subr.mxu0 0.0
        %1702 = vmatpush1.xpose.msra.mxu0 0.0
        %1703 = vmatprep.subr.mxu0 0.0
        %1704 = vmatpush1.xpose.msra.mxu0 0.0
        %1705 = vmatprep.subr.mxu0 0.0
        %1706 = vmatpush1.xpose.msra.mxu0 0.0
        %1707 = vmatprep.subr.mxu0 0.0
        %1708 = vmatpush1.xpose.msra.mxu0 0.0
        %1709 = vmatprep.subr.mxu0 0.0
        %1710 = vmatpush1.xpose.msra.mxu0 0.0
        %1711 = vmatprep.subr.mxu0 0.0
        %1712 = vmatpush1.xpose.msra.mxu0 0.0
        %1713 = vmatprep.subr.mxu0 0.0
        %1714 = vmatpush1.xpose.msra.mxu0 0.0
        %1715 = vmatprep.subr.mxu0 0.0
        %1716 = vmatpush1.xpose.msra.mxu0 0.0
        %1717 = vmatprep.subr.mxu0 0.0
        %1718 = vmatpush1.xpose.msra.mxu0 0.0
        %1719 = vmatprep.subr.mxu0 0.0
        %1720 = vmatpush1.xpose.msra.mxu0 0.0
        %1721 = vmatprep.subr.mxu0 0.0
        %1722 = vmatpush1.xpose.msra.mxu0 0.0
        %1723 = vmatprep.subr.mxu0 0.0
        %1724 = vmatpush1.xpose.msra.mxu0 0.0
        %1725 = vmatprep.subr.mxu0 0.0
        %1726 = vmatpush1.xpose.msra.mxu0 0.0
        %1727 = vmatprep.subr.mxu0 0.0
        %1728 = vmatpush1.xpose.msra.mxu0 0.0
        %1729 = vmatprep.subr.mxu0 0.0
        %1730 = vmatpush1.xpose.msra.mxu0 0.0
        %1731 = vmatprep.subr.mxu0 0.0
        %1732 = vmatpush1.xpose.msra.mxu0 0.0
        %1733 = vmatprep.subr.mxu0 0.0
        %1734 = vmatpush1.xpose.msra.mxu0 0.0
        %1735 = vmatprep.subr.mxu0 0.0
        %1736 = vmatpush1.xpose.msra.mxu0 0.0
        %1737 = vmatprep.mubr.f32.mxu0 0.0
        %1738 = vmatmul.mubr.f32.gmra.mrb[0].mxu0 %v1669
        %v1739 = vpop.f32.mrb[0].mxu0
        %v1740 = vadd.f32 0.0, %v1739
        %v1741 = vpop.f32.mrb[0].mxu0
        %1742 = vdwg.mxu0
        %v1743 = vsel %vm1217, -1e+09, %v1740
        %v1744 = vsel %vm1503, %v1743, -inf
        %1745 = vmax.xlane.f32.xlu0 %v1744
        %v1746 = vpop.xlane.xlu0 %1745
        %v1747 = vsub.f32 %v1743, %v1746
        %v1748 = vmul.f32 %v1747, 1.442695
        %v1749 = vpow.pop %v1748
        %v1750 = vsel %vm1503, %v1749, 0.0
        %1751 = vadd.xlane.f32.xlu0 %v1750
        %v1752 = vpop.xlane.xlu0 %1751
        %v1753 = vrcp.pop %v1752
        %v1754 = vmul.f32 %v1749, %v1753
        %1756 = vrot.lane.b32.xlu0 %v1500, 120
        %v1757 = vpop.permute.xlu0 %1756
        %v1760 = vsel %vm1503, %v1754, 0
        %1762 = vmatprep.subr.mxu0 0.0
        %1763 = vmatpush1.msra.mxu0 %v1757
        %1764 = vmatprep.subr.mxu0 0.0
        %1765 = vmatpush1.msra.mxu0 0.0
        %1766 = vmatprep.subr.mxu0 0.0
        %1767 = vmatpush1.msra.mxu0 0.0
        %1768 = vmatprep.subr.mxu0 0.0
        %1769 = vmatpush1.msra.mxu0 0.0
        %1770 = vmatprep.subr.mxu0 0.0
        %1771 = vmatpush1.msra.mxu0 0.0
        %1772 = vmatprep.subr.mxu0 0.0
        %1773 = vmatpush1.msra.mxu0 0.0
        %1774 = vmatprep.subr.mxu0 0.0
        %1775 = vmatpush1.msra.mxu0 0.0
        %1776 = vmatprep.subr.mxu0 0.0
        %1777 = vmatpush1.msra.mxu0 0.0
        %1778 = vmatprep.subr.mxu0 0.0
        %1779 = vmatpush1.msra.mxu0 0.0
        %1780 = vmatprep.subr.mxu0 0.0
        %1781 = vmatpush1.msra.mxu0 0.0
        %1782 = vmatprep.subr.mxu0 0.0
        %1783 = vmatpush1.msra.mxu0 0.0
        %1784 = vmatprep.subr.mxu0 0.0
        %1785 = vmatpush1.msra.mxu0 0.0
        %1786 = vmatprep.subr.mxu0 0.0
        %1787 = vmatpush1.msra.mxu0 0.0
        %1788 = vmatprep.subr.mxu0 0.0
        %1789 = vmatpush1.msra.mxu0 0.0
        %1790 = vmatprep.subr.mxu0 0.0
        %1791 = vmatpush1.msra.mxu0 0.0
        %1792 = vmatprep.subr.mxu0 0.0
        %1793 = vmatpush1.msra.mxu0 0.0
        %1794 = vmatprep.subr.mxu0 0.0
        %1795 = vmatpush1.msra.mxu0 0.0
        %1796 = vmatprep.subr.mxu0 0.0
        %1797 = vmatpush1.msra.mxu0 0.0
        %1798 = vmatprep.subr.mxu0 0.0
        %1799 = vmatpush1.msra.mxu0 0.0
        %1800 = vmatprep.subr.mxu0 0.0
        %1801 = vmatpush1.msra.mxu0 0.0
        %1802 = vmatprep.subr.mxu0 0.0
        %1803 = vmatpush1.msra.mxu0 0.0
        %1804 = vmatprep.subr.mxu0 0.0
        %1805 = vmatpush1.msra.mxu0 0.0
        %1806 = vmatprep.subr.mxu0 0.0
        %1807 = vmatpush1.msra.mxu0 0.0
        %1808 = vmatprep.subr.mxu0 0.0
        %1809 = vmatpush1.msra.mxu0 0.0
        %1810 = vmatprep.subr.mxu0 0.0
        %1811 = vmatpush1.msra.mxu0 0.0
        %1812 = vmatprep.subr.mxu0 0.0
        %1813 = vmatpush1.msra.mxu0 0.0
        %1814 = vmatprep.subr.mxu0 0.0
        %1815 = vmatpush1.msra.mxu0 0.0
        %1816 = vmatprep.subr.mxu0 0.0
        %1817 = vmatpush1.msra.mxu0 0.0
        %1818 = vmatprep.subr.mxu0 0.0
        %1819 = vmatpush1.msra.mxu0 0.0
        %1820 = vmatprep.subr.mxu0 0.0
        %1821 = vmatpush1.msra.mxu0 0.0
        %1822 = vmatprep.subr.mxu0 0.0
        %1823 = vmatpush1.msra.mxu0 0.0
        %1824 = vmatprep.subr.mxu0 0.0
        %1825 = vmatpush1.msra.mxu0 0.0
        %1826 = vmatprep.mubr.f32.mxu0 0.0
        %1827 = vmatmul.mubr.f32.gmra.mrb[0].mxu0 %v1760
        %v1828 = vpop.f32.mrb[0].mxu0
        %v1829 = vadd.f32 0.0, %v1828
        %v1830 = vpop.f32.mrb[0].mxu0
        %1831 = vdwg.mxu0
        %1832 = vrot.lane.b32.xlu0 %v1338, 112
        %v1833 = vpop.permute.xlu0 %1832
        %1834 = vrot.lane.b32.xlu0 %v1419, 112
        %v1835 = vpop.permute.xlu0 %1834
        %v1836 = vsel %vm1503, %v1833, 0
        %v1838 = vsel %vm1503, %v1835, 0
        %1840 = vmatprep.subr.mxu0 0.0
        %1841 = vmatpush1.xpose.msra.mxu0 %v1838
        %1842 = vmatprep.subr.mxu0 0.0
        %1843 = vmatpush1.xpose.msra.mxu0 0.0
        %1844 = vmatprep.subr.mxu0 0.0
        %1845 = vmatpush1.xpose.msra.mxu0 0.0
        %1846 = vmatprep.subr.mxu0 0.0
        %1847 = vmatpush1.xpose.msra.mxu0 0.0
        %1848 = vmatprep.subr.mxu0 0.0
        %1849 = vmatpush1.xpose.msra.mxu0 0.0
        %1850 = vmatprep.subr.mxu0 0.0
        %1851 = vmatpush1.xpose.msra.mxu0 0.0
        %1852 = vmatprep.subr.mxu0 0.0
        %1853 = vmatpush1.xpose.msra.mxu0 0.0
        %1854 = vmatprep.subr.mxu0 0.0
        %1855 = vmatpush1.xpose.msra.mxu0 0.0
        %1856 = vmatprep.subr.mxu0 0.0
        %1857 = vmatpush1.xpose.msra.mxu0 0.0
        %1858 = vmatprep.subr.mxu0 0.0
        %1859 = vmatpush1.xpose.msra.mxu0 0.0
        %1860 = vmatprep.subr.mxu0 0.0
        %1861 = vmatpush1.xpose.msra.mxu0 0.0
        %1862 = vmatprep.subr.mxu0 0.0
        %1863 = vmatpush1.xpose.msra.mxu0 0.0
        %1864 = vmatprep.subr.mxu0 0.0
        %1865 = vmatpush1.xpose.msra.mxu0 0.0
        %1866 = vmatprep.subr.mxu0 0.0
        %1867 = vmatpush1.xpose.msra.mxu0 0.0
        %1868 = vmatprep.subr.mxu0 0.0
        %1869 = vmatpush1.xpose.msra.mxu0 0.0
        %1870 = vmatprep.subr.mxu0 0.0
        %1871 = vmatpush1.xpose.msra.mxu0 0.0
        %1872 = vmatprep.subr.mxu0 0.0
        %1873 = vmatpush1.xpose.msra.mxu0 0.0
        %1874 = vmatprep.subr.mxu0 0.0
        %1875 = vmatpush1.xpose.msra.mxu0 0.0
        %1876 = vmatprep.subr.mxu0 0.0
        %1877 = vmatpush1.xpose.msra.mxu0 0.0
        %1878 = vmatprep.subr.mxu0 0.0
        %1879 = vmatpush1.xpose.msra.mxu0 0.0
        %1880 = vmatprep.subr.mxu0 0.0
        %1881 = vmatpush1.xpose.msra.mxu0 0.0
        %1882 = vmatprep.subr.mxu0 0.0
        %1883 = vmatpush1.xpose.msra.mxu0 0.0
        %1884 = vmatprep.subr.mxu0 0.0
        %1885 = vmatpush1.xpose.msra.mxu0 0.0
        %1886 = vmatprep.subr.mxu0 0.0
        %1887 = vmatpush1.xpose.msra.mxu0 0.0
        %1888 = vmatprep.subr.mxu0 0.0
        %1889 = vmatpush1.xpose.msra.mxu0 0.0
        %1890 = vmatprep.subr.mxu0 0.0
        %1891 = vmatpush1.xpose.msra.mxu0 0.0
        %1892 = vmatprep.subr.mxu0 0.0
        %1893 = vmatpush1.xpose.msra.mxu0 0.0
        %1894 = vmatprep.subr.mxu0 0.0
        %1895 = vmatpush1.xpose.msra.mxu0 0.0
        %1896 = vmatprep.subr.mxu0 0.0
        %1897 = vmatpush1.xpose.msra.mxu0 0.0
        %1898 = vmatprep.subr.mxu0 0.0
        %1899 = vmatpush1.xpose.msra.mxu0 0.0
        %1900 = vmatprep.subr.mxu0 0.0
        %1901 = vmatpush1.xpose.msra.mxu0 0.0
        %1902 = vmatprep.subr.mxu0 0.0
        %1903 = vmatpush1.xpose.msra.mxu0 0.0
        %1904 = vmatprep.mubr.f32.mxu0 0.0
        %1905 = vmatmul.mubr.f32.gmra.mrb[0].mxu0 %v1836
        %v1906 = vpop.f32.mrb[0].mxu0
        %v1907 = vadd.f32 0.0, %v1906
        %v1908 = vpop.f32.mrb[0].mxu0
        %1909 = vdwg.mxu0
        %v1910 = vsel %vm1217, -1e+09, %v1907
        %v1911 = vsel %vm1503, %v1910, -inf
        %1912 = vmax.xlane.f32.xlu0 %v1911
        %v1913 = vpop.xlane.xlu0 %1912
        %v1914 = vsub.f32 %v1910, %v1913
        %v1915 = vmul.f32 %v1914, 1.442695
        %v1916 = vpow.pop %v1915
        %v1917 = vsel %vm1503, %v1916, 0.0
        %1918 = vadd.xlane.f32.xlu0 %v1917
        %v1919 = vpop.xlane.xlu0 %1918
        %v1920 = vrcp.pop %v1919
        %v1921 = vmul.f32 %v1916, %v1920
        %1922 = vrot.lane.b32.xlu0 %v1500, 112
        %v1923 = vpop.permute.xlu0 %1922
        %v1926 = vsel %vm1503, %v1921, 0
        %1928 = vmatprep.subr.mxu0 0.0
        %1929 = vmatpush1.msra.mxu0 %v1923
        %1930 = vmatprep.subr.mxu0 0.0
        %1931 = vmatpush1.msra.mxu0 0.0
        %1932 = vmatprep.subr.mxu0 0.0
        %1933 = vmatpush1.msra.mxu0 0.0
        %1934 = vmatprep.subr.mxu0 0.0
        %1935 = vmatpush1.msra.mxu0 0.0
        %1936 = vmatprep.subr.mxu0 0.0
        %1937 = vmatpush1.msra.mxu0 0.0
        %1938 = vmatprep.subr.mxu0 0.0
        %1939 = vmatpush1.msra.mxu0 0.0
        %1940 = vmatprep.subr.mxu0 0.0
        %1941 = vmatpush1.msra.mxu0 0.0
        %1942 = vmatprep.subr.mxu0 0.0
        %1943 = vmatpush1.msra.mxu0 0.0
        %1944 = vmatprep.subr.mxu0 0.0
        %1945 = vmatpush1.msra.mxu0 0.0
        %1946 = vmatprep.subr.mxu0 0.0
        %1947 = vmatpush1.msra.mxu0 0.0
        %1948 = vmatprep.subr.mxu0 0.0
        %1949 = vmatpush1.msra.mxu0 0.0
        %1950 = vmatprep.subr.mxu0 0.0
        %1951 = vmatpush1.msra.mxu0 0.0
        %1952 = vmatprep.subr.mxu0 0.0
        %1953 = vmatpush1.msra.mxu0 0.0
        %1954 = vmatprep.subr.mxu0 0.0
        %1955 = vmatpush1.msra.mxu0 0.0
        %1956 = vmatprep.subr.mxu0 0.0
        %1957 = vmatpush1.msra.mxu0 0.0
        %1958 = vmatprep.subr.mxu0 0.0
        %1959 = vmatpush1.msra.mxu0 0.0
        %1960 = vmatprep.subr.mxu0 0.0
        %1961 = vmatpush1.msra.mxu0 0.0
        %1962 = vmatprep.subr.mxu0 0.0
        %1963 = vmatpush1.msra.mxu0 0.0
        %1964 = vmatprep.subr.mxu0 0.0
        %1965 = vmatpush1.msra.mxu0 0.0
        %1966 = vmatprep.subr.mxu0 0.0
        %1967 = vmatpush1.msra.mxu0 0.0
        %1968 = vmatprep.subr.mxu0 0.0
        %1969 = vmatpush1.msra.mxu0 0.0
        %1970 = vmatprep.subr.mxu0 0.0
        %1971 = vmatpush1.msra.mxu0 0.0
        %1972 = vmatprep.subr.mxu0 0.0
        %1973 = vmatpush1.msra.mxu0 0.0
        %1974 = vmatprep.subr.mxu0 0.0
        %1975 = vmatpush1.msra.mxu0 0.0
        %1976 = vmatprep.subr.mxu0 0.0
        %1977 = vmatpush1.msra.mxu0 0.0
        %1978 = vmatprep.subr.mxu0 0.0
        %1979 = vmatpush1.msra.mxu0 0.0
        %1980 = vmatprep.subr.mxu0 0.0
        %1981 = vmatpush1.msra.mxu0 0.0
        %1982 = vmatprep.subr.mxu0 0.0
        %1983 = vmatpush1.msra.mxu0 0.0
        %1984 = vmatprep.subr.mxu0 0.0
        %1985 = vmatpush1.msra.mxu0 0.0
        %1986 = vmatprep.subr.mxu0 0.0
        %1987 = vmatpush1.msra.mxu0 0.0
        %1988 = vmatprep.subr.mxu0 0.0
        %1989 = vmatpush1.msra.mxu0 0.0
        %1990 = vmatprep.subr.mxu0 0.0
        %1991 = vmatpush1.msra.mxu0 0.0
        %1992 = vmatprep.mubr.f32.mxu0 0.0
        %1993 = vmatmul.mubr.f32.gmra.mrb[0].mxu0 %v1926
        %v1994 = vpop.f32.mrb[0].mxu0
        %v1995 = vadd.f32 0.0, %v1994
        %v1996 = vpop.f32.mrb[0].mxu0
        %1997 = vdwg.mxu0
        %1998 = vrot.lane.b32.xlu0 %v1338, 104
        %v1999 = vpop.permute.xlu0 %1998
        %2000 = vrot.lane.b32.xlu0 %v1419, 104
        %v2001 = vpop.permute.xlu0 %2000
        %v2002 = vsel %vm1503, %v1999, 0
        %v2004 = vsel %vm1503, %v2001, 0
        %2006 = vmatprep.subr.mxu0 0.0
        %2007 = vmatpush1.xpose.msra.mxu0 %v2004
        %2008 = vmatprep.subr.mxu0 0.0
        %2009 = vmatpush1.xpose.msra.mxu0 0.0
        %2010 = vmatprep.subr.mxu0 0.0
        %2011 = vmatpush1.xpose.msra.mxu0 0.0
        %2012 = vmatprep.subr.mxu0 0.0
        %2013 = vmatpush1.xpose.msra.mxu0 0.0
        %2014 = vmatprep.subr.mxu0 0.0
        %2015 = vmatpush1.xpose.msra.mxu0 0.0
        %2016 = vmatprep.subr.mxu0 0.0
        %2017 = vmatpush1.xpose.msra.mxu0 0.0
        %2018 = vmatprep.subr.mxu0 0.0
        %2019 = vmatpush1.xpose.msra.mxu0 0.0
        %2020 = vmatprep.subr.mxu0 0.0
        %2021 = vmatpush1.xpose.msra.mxu0 0.0
        %2022 = vmatprep.subr.mxu0 0.0
        %2023 = vmatpush1.xpose.msra.mxu0 0.0
        %2024 = vmatprep.subr.mxu0 0.0
        %2025 = vmatpush1.xpose.msra.mxu0 0.0
        %2026 = vmatprep.subr.mxu0 0.0
        %2027 = vmatpush1.xpose.msra.mxu0 0.0
        %2028 = vmatprep.subr.mxu0 0.0
        %2029 = vmatpush1.xpose.msra.mxu0 0.0
        %2030 = vmatprep.subr.mxu0 0.0
        %2031 = vmatpush1.xpose.msra.mxu0 0.0
        %2032 = vmatprep.subr.mxu0 0.0
        %2033 = vmatpush1.xpose.msra.mxu0 0.0
        %2034 = vmatprep.subr.mxu0 0.0
        %2035 = vmatpush1.xpose.msra.mxu0 0.0
        %2036 = vmatprep.subr.mxu0 0.0
        %2037 = vmatpush1.xpose.msra.mxu0 0.0
        %2038 = vmatprep.subr.mxu0 0.0
        %2039 = vmatpush1.xpose.msra.mxu0 0.0
        %2040 = vmatprep.subr.mxu0 0.0
        %2041 = vmatpush1.xpose.msra.mxu0 0.0
        %2042 = vmatprep.subr.mxu0 0.0
        %2043 = vmatpush1.xpose.msra.mxu0 0.0
        %2044 = vmatprep.subr.mxu0 0.0
        %2045 = vmatpush1.xpose.msra.mxu0 0.0
        %2046 = vmatprep.subr.mxu0 0.0
        %2047 = vmatpush1.xpose.msra.mxu0 0.0
        %2048 = vmatprep.subr.mxu0 0.0
        %2049 = vmatpush1.xpose.msra.mxu0 0.0
        %2050 = vmatprep.subr.mxu0 0.0
        %2051 = vmatpush1.xpose.msra.mxu0 0.0
        %2052 = vmatprep.subr.mxu0 0.0
        %2053 = vmatpush1.xpose.msra.mxu0 0.0
        %2054 = vmatprep.subr.mxu0 0.0
        %2055 = vmatpush1.xpose.msra.mxu0 0.0
        %2056 = vmatprep.subr.mxu0 0.0
        %2057 = vmatpush1.xpose.msra.mxu0 0.0
        %2058 = vmatprep.subr.mxu0 0.0
        %2059 = vmatpush1.xpose.msra.mxu0 0.0
        %2060 = vmatprep.subr.mxu0 0.0
        %2061 = vmatpush1.xpose.msra.mxu0 0.0
        %2062 = vmatprep.subr.mxu0 0.0
        %2063 = vmatpush1.xpose.msra.mxu0 0.0
        %2064 = vmatprep.subr.mxu0 0.0
        %2065 = vmatpush1.xpose.msra.mxu0 0.0
        %2066 = vmatprep.subr.mxu0 0.0
        %2067 = vmatpush1.xpose.msra.mxu0 0.0
        %2068 = vmatprep.subr.mxu0 0.0
        %2069 = vmatpush1.xpose.msra.mxu0 0.0
        %2070 = vmatprep.mubr.f32.mxu0 0.0
        %2071 = vmatmul.mubr.f32.gmra.mrb[0].mxu0 %v2002
        %v2072 = vpop.f32.mrb[0].mxu0
        %v2073 = vadd.f32 0.0, %v2072
        %v2074 = vpop.f32.mrb[0].mxu0
        %2075 = vdwg.mxu0
        %v2076 = vsel %vm1217, -1e+09, %v2073
        %v2077 = vsel %vm1503, %v2076, -inf
        %2078 = vmax.xlane.f32.xlu0 %v2077
        %v2079 = vpop.xlane.xlu0 %2078
        %v2080 = vsub.f32 %v2076, %v2079
        %v2081 = vmul.f32 %v2080, 1.442695
        %v2082 = vpow.pop %v2081
        %v2083 = vsel %vm1503, %v2082, 0.0
        %2084 = vadd.xlane.f32.xlu0 %v2083
        %v2085 = vpop.xlane.xlu0 %2084
        %v2086 = vrcp.pop %v2085
        %v2087 = vmul.f32 %v2082, %v2086
        %2088 = vrot.lane.b32.xlu0 %v1500, 104
        %v2089 = vpop.permute.xlu0 %2088
        %v2092 = vsel %vm1503, %v2087, 0
        %2094 = vmatprep.subr.mxu0 0.0
        %2095 = vmatpush1.msra.mxu0 %v2089
        %2096 = vmatprep.subr.mxu0 0.0
        %2097 = vmatpush1.msra.mxu0 0.0
        %2098 = vmatprep.subr.mxu0 0.0
        %2099 = vmatpush1.msra.mxu0 0.0
        %2100 = vmatprep.subr.mxu0 0.0
        %2101 = vmatpush1.msra.mxu0 0.0
        %2102 = vmatprep.subr.mxu0 0.0
        %2103 = vmatpush1.msra.mxu0 0.0
        %2104 = vmatprep.subr.mxu0 0.0
        %2105 = vmatpush1.msra.mxu0 0.0
        %2106 = vmatprep.subr.mxu0 0.0
        %2107 = vmatpush1.msra.mxu0 0.0
        %2108 = vmatprep.subr.mxu0 0.0
        %2109 = vmatpush1.msra.mxu0 0.0
        %2110 = vmatprep.subr.mxu0 0.0
        %2111 = vmatpush1.msra.mxu0 0.0
        %2112 = vmatprep.subr.mxu0 0.0
        %2113 = vmatpush1.msra.mxu0 0.0
        %2114 = vmatprep.subr.mxu0 0.0
        %2115 = vmatpush1.msra.mxu0 0.0
        %2116 = vmatprep.subr.mxu0 0.0
        %2117 = vmatpush1.msra.mxu0 0.0
        %2118 = vmatprep.subr.mxu0 0.0
        %2119 = vmatpush1.msra.mxu0 0.0
        %2120 = vmatprep.subr.mxu0 0.0
        %2121 = vmatpush1.msra.mxu0 0.0
        %2122 = vmatprep.subr.mxu0 0.0
        %2123 = vmatpush1.msra.mxu0 0.0
        %2124 = vmatprep.subr.mxu0 0.0
        %2125 = vmatpush1.msra.mxu0 0.0
        %2126 = vmatprep.subr.mxu0 0.0
        %2127 = vmatpush1.msra.mxu0 0.0
        %2128 = vmatprep.subr.mxu0 0.0
        %2129 = vmatpush1.msra.mxu0 0.0
        %2130 = vmatprep.subr.mxu0 0.0
        %2131 = vmatpush1.msra.mxu0 0.0
        %2132 = vmatprep.subr.mxu0 0.0
        %2133 = vmatpush1.msra.mxu0 0.0
        %2134 = vmatprep.subr.mxu0 0.0
        %2135 = vmatpush1.msra.mxu0 0.0
        %2136 = vmatprep.subr.mxu0 0.0
        %2137 = vmatpush1.msra.mxu0 0.0
        %2138 = vmatprep.subr.mxu0 0.0
        %2139 = vmatpush1.msra.mxu0 0.0
        %2140 = vmatprep.subr.mxu0 0.0
        %2141 = vmatpush1.msra.mxu0 0.0
        %2142 = vmatprep.subr.mxu0 0.0
        %2143 = vmatpush1.msra.mxu0 0.0
        %2144 = vmatprep.subr.mxu0 0.0
        %2145 = vmatpush1.msra.mxu0 0.0
        %2146 = vmatprep.subr.mxu0 0.0
        %2147 = vmatpush1.msra.mxu0 0.0
        %2148 = vmatprep.subr.mxu0 0.0
        %2149 = vmatpush1.msra.mxu0 0.0
        %2150 = vmatprep.subr.mxu0 0.0
        %2151 = vmatpush1.msra.mxu0 0.0
        %2152 = vmatprep.subr.mxu0 0.0
        %2153 = vmatpush1.msra.mxu0 0.0
        %2154 = vmatprep.subr.mxu0 0.0
        %2155 = vmatpush1.msra.mxu0 0.0
        %2156 = vmatprep.subr.mxu0 0.0
        %2157 = vmatpush1.msra.mxu0 0.0
        %2158 = vmatprep.mubr.f32.mxu0 0.0
        %2159 = vmatmul.mubr.f32.gmra.mrb[0].mxu0 %v2092
        %v2160 = vpop.f32.mrb[0].mxu0
        %v2161 = vadd.f32 0.0, %v2160
        %v2162 = vpop.f32.mrb[0].mxu0
        %2163 = vdwg.mxu0
        %2165 = vrot.lane.b32.xlu0 %v1829, 8
        %v2166 = vpop.permute.xlu0 %2165
        %2169 = vrot.lane.b32.xlu0 %v1995, 16
        %v2170 = vpop.permute.xlu0 %2169
        %2173 = vrot.lane.b32.xlu0 %v2161, 24
        %v2174 = vpop.permute.xlu0 %2173
        %v2176 = vsel %vm1503, %v1662, %v2166
        %vm2177 = vcmask 130048
        %v2178 = vsel %vm2177, %v2176, %v2170
        %vm2179 = vcmask 195584
        %v2180 = vsel %vm2179, %v2178, %v2174
        %v2181 = vld [vmem:[%s999] sm:$0xff]
        %v2182 = vld [vmem:[%s999 + $0x8] sm:$0xff]
        %v2183 = vld [vmem:[%s999 + $0x10] sm:$0xff]
        %v2184 = vld [vmem:[%s999 + $0x18] sm:$0xff]
        %v2186 = vsel %vm1221, %v2180, 0
        %2188 = vmatprep.subr.mxu0 0.0
        %2189 = vmatpush1.msra.mxu0 %v2181
        %2190 = vmatprep.subr.mxu0 0.0
        %2191 = vmatpush1.msra.mxu0 %v2182
        %2192 = vmatprep.subr.mxu0 0.0
        %2193 = vmatpush1.msra.mxu0 %v2183
        %2194 = vmatprep.subr.mxu0 0.0
        %2195 = vmatpush1.msra.mxu0 %v2184
        %2196 = vmatprep.subr.mxu0 0.0
        %2197 = vmatpush1.msra.mxu0 0.0
        %2198 = vmatprep.subr.mxu0 0.0
        %2199 = vmatpush1.msra.mxu0 0.0
        %2200 = vmatprep.subr.mxu0 0.0
        %2201 = vmatpush1.msra.mxu0 0.0
        %2202 = vmatprep.subr.mxu0 0.0
        %2203 = vmatpush1.msra.mxu0 0.0
        %2204 = vmatprep.subr.mxu0 0.0
        %2205 = vmatpush1.msra.mxu0 0.0
        %2206 = vmatprep.subr.mxu0 0.0
        %2207 = vmatpush1.msra.mxu0 0.0
        %2208 = vmatprep.subr.mxu0 0.0
        %2209 = vmatpush1.msra.mxu0 0.0
        %2210 = vmatprep.subr.mxu0 0.0
        %2211 = vmatpush1.msra.mxu0 0.0
        %2212 = vmatprep.subr.mxu0 0.0
        %2213 = vmatpush1.msra.mxu0 0.0
        %2214 = vmatprep.subr.mxu0 0.0
        %2215 = vmatpush1.msra.mxu0 0.0
        %2216 = vmatprep.subr.mxu0 0.0
        %2217 = vmatpush1.msra.mxu0 0.0
        %2218 = vmatprep.subr.mxu0 0.0
        %2219 = vmatpush1.msra.mxu0 0.0
        %2220 = vmatprep.subr.mxu0 0.0
        %2221 = vmatpush1.msra.mxu0 0.0
        %2222 = vmatprep.subr.mxu0 0.0
        %2223 = vmatpush1.msra.mxu0 0.0
        %2224 = vmatprep.subr.mxu0 0.0
        %2225 = vmatpush1.msra.mxu0 0.0
        %2226 = vmatprep.subr.mxu0 0.0
        %2227 = vmatpush1.msra.mxu0 0.0
        %2228 = vmatprep.subr.mxu0 0.0
        %2229 = vmatpush1.msra.mxu0 0.0
        %2230 = vmatprep.subr.mxu0 0.0
        %2231 = vmatpush1.msra.mxu0 0.0
        %2232 = vmatprep.subr.mxu0 0.0
        %2233 = vmatpush1.msra.mxu0 0.0
        %2234 = vmatprep.subr.mxu0 0.0
        %2235 = vmatpush1.msra.mxu0 0.0
        %2236 = vmatprep.subr.mxu0 0.0
        %2237 = vmatpush1.msra.mxu0 0.0
        %2238 = vmatprep.subr.mxu0 0.0
        %2239 = vmatpush1.msra.mxu0 0.0
        %2240 = vmatprep.subr.mxu0 0.0
        %2241 = vmatpush1.msra.mxu0 0.0
        %2242 = vmatprep.subr.mxu0 0.0
        %2243 = vmatpush1.msra.mxu0 0.0
        %2244 = vmatprep.subr.mxu0 0.0
        %2245 = vmatpush1.msra.mxu0 0.0
        %2246 = vmatprep.subr.mxu0 0.0
        %2247 = vmatpush1.msra.mxu0 0.0
        %2248 = vmatprep.subr.mxu0 0.0
        %2249 = vmatpush1.msra.mxu0 0.0
        %2250 = vmatprep.subr.mxu0 0.0
        %2251 = vmatpush1.msra.mxu0 0.0
        %2252 = vmatprep.mubr.f32.mxu0 0.0
        %2253 = vmatmul.mubr.f32.gmra.mrb[0].mxu0 %v2186
        %v2254 = vpop.f32.mrb[0].mxu0
        %v2255 = vadd.f32 0.0, %v2254
        %v2256 = vpop.f32.mrb[0].mxu0
        %2257 = vdwg.mxu0
        %v2258 = vadd.f32 %v1218, %v2255
        %v2259 = vld [vmem:[%s1007] sm:$0x1]
        %v2261 = vlaneseq
        %v2262 = vshrl.u32 %v2261, 7
        %v2263 = vsub.s32 0, %v2262
        %v2264 = vrot.slane %v2259, %v2263
        %v2266 = vadd.f32 %v2258, %v2264
        %v2267 = vld [vmem:[%s1015] sm:$0x1]
        %v2268 = vld [vmem:[%s1023] sm:$0x1]
        %v2269 = vsel %vm1221, %v2266, 0.0
        %2270 = vadd.xlane.f32.xlu0 %v2269
        %v2271 = vpop.xlane.xlu0 %2270
        %v2272 = vmul.f32 %v2271, %v1225
        %v2273 = vsub.f32 %v2266, %v2272
        %v2274 = vmul.f32 %v2273, %v2273
        %v2275 = vsel %vm1221, %v2274, 0.0
        %2276 = vadd.xlane.f32.xlu0 %v2275
        %v2277 = vpop.xlane.xlu0 %2276
        %v2278 = vmul.f32 %v2277, 0.032258064
        %v2279 = vrsqrt.pop %v2278
        %v2280 = vmul.f32 %v2278, %v2279
        %vm2281 = vcmp.eq.f32.partialorder %v2278, inf
        %v2282 = vsel %vm2281, %v2278, %v2280
        %vm2283 = vcmp.eq.f32.partialorder %v2278, 0.0
        %v2284 = vand.u32 %v2278, 2147483648
        %v2285 = vsel %vm2283, %v2284, %v2282
        %v2287 = vlaneseq
        %v2288 = vshrl.u32 %v2287, 7
        %v2289 = vsub.s32 0, %v2288
        %v2290 = vrot.slane %v2267, %v2289
        %v2292 = vmul.f32 %v2290, %v2273
        %v2293 = vadd.f32 %v2285, 1e-06
        %v2294 = vrcp.pop %v2293
        %v2295 = vmul.f32 %v2292, %v2294
        %v2297 = vlaneseq
        %v2298 = vshrl.u32 %v2297, 7
        %v2299 = vsub.s32 0, %v2298
        %v2300 = vrot.slane %v2268, %v2299
        %v2302 = vadd.f32 %v2295, %v2300
        %v2303 = vld [vmem:[%s1032] sm:$0xff]
        %v2304 = vld [vmem:[%s1032 + $0x8] sm:$0xff]
        %v2305 = vld [vmem:[%s1032 + $0x10] sm:$0xff]
        %v2306 = vld [vmem:[%s1032 + $0x18] sm:$0xff]
        %v2307 = vld [vmem:[%s1040] sm:$0x1]
        %v2309 = vlaneseq
        %v2310 = vshrl.u32 %v2309, 7
        %v2311 = vsub.s32 0, %v2310
        %v2312 = vrot.slane %v2307, %v2311
        %v2315 = vsel %vm1221, %v2302, 0
        %2317 = vmatprep.subr.mxu0 0.0
        %2318 = vmatpush1.msra.mxu0 %v2303
        %2319 = vmatprep.subr.mxu0 0.0
        %2320 = vmatpush1.msra.mxu0 %v2304
        %2321 = vmatprep.subr.mxu0 0.0
        %2322 = vmatpush1.msra.mxu0 %v2305
        %2323 = vmatprep.subr.mxu0 0.0
        %2324 = vmatpush1.msra.mxu0 %v2306
        %2325 = vmatprep.subr.mxu0 0.0
        %2326 = vmatpush1.msra.mxu0 0.0
        %2327 = vmatprep.subr.mxu0 0.0
        %2328 = vmatpush1.msra.mxu0 0.0
        %2329 = vmatprep.subr.mxu0 0.0
        %2330 = vmatpush1.msra.mxu0 0.0
        %2331 = vmatprep.subr.mxu0 0.0
        %2332 = vmatpush1.msra.mxu0 0.0
        %2333 = vmatprep.subr.mxu0 0.0
        %2334 = vmatpush1.msra.mxu0 0.0
        %2335 = vmatprep.subr.mxu0 0.0
        %2336 = vmatpush1.msra.mxu0 0.0
        %2337 = vmatprep.subr.mxu0 0.0
        %2338 = vmatpush1.msra.mxu0 0.0
        %2339 = vmatprep.subr.mxu0 0.0
        %2340 = vmatpush1.msra.mxu0 0.0
        %2341 = vmatprep.subr.mxu0 0.0
        %2342 = vmatpush1.msra.mxu0 0.0
        %2343 = vmatprep.subr.mxu0 0.0
        %2344 = vmatpush1.msra.mxu0 0.0
        %2345 = vmatprep.subr.mxu0 0.0
        %2346 = vmatpush1.msra.mxu0 0.0
        %2347 = vmatprep.subr.mxu0 0.0
        %2348 = vmatpush1.msra.mxu0 0.0
        %2349 = vmatprep.subr.mxu0 0.0
        %2350 = vmatpush1.msra.mxu0 0.0
        %2351 = vmatprep.subr.mxu0 0.0
        %2352 = vmatpush1.msra.mxu0 0.0
        %2353 = vmatprep.subr.mxu0 0.0
        %2354 = vmatpush1.msra.mxu0 0.0
        %2355 = vmatprep.subr.mxu0 0.0
        %2356 = vmatpush1.msra.mxu0 0.0
        %2357 = vmatprep.subr.mxu0 0.0
        %2358 = vmatpush1.msra.mxu0 0.0
        %2359 = vmatprep.subr.mxu0 0.0
        %2360 = vmatpush1.msra.mxu0 0.0
        %2361 = vmatprep.subr.mxu0 0.0
        %2362 = vmatpush1.msra.mxu0 0.0
        %2363 = vmatprep.subr.mxu0 0.0
        %2364 = vmatpush1.msra.mxu0 0.0
        %2365 = vmatprep.subr.mxu0 0.0
        %2366 = vmatpush1.msra.mxu0 0.0
        %2367 = vmatprep.subr.mxu0 0.0
        %2368 = vmatpush1.msra.mxu0 0.0
        %2369 = vmatprep.subr.mxu0 0.0
        %2370 = vmatpush1.msra.mxu0 0.0
        %2371 = vmatprep.subr.mxu0 0.0
        %2372 = vmatpush1.msra.mxu0 0.0
        %2373 = vmatprep.subr.mxu0 0.0
        %2374 = vmatpush1.msra.mxu0 0.0
        %2375 = vmatprep.subr.mxu0 0.0
        %2376 = vmatpush1.msra.mxu0 0.0
        %2377 = vmatprep.subr.mxu0 0.0
        %2378 = vmatpush1.msra.mxu0 0.0
        %2379 = vmatprep.subr.mxu0 0.0
        %2380 = vmatpush1.msra.mxu0 0.0
        %2381 = vmatprep.mubr.f32.mxu0 0.0
        %2382 = vmatmul.mubr.f32.gmra.mrb[0].mxu0 %v2315
        %v2383 = vpop.f32.mrb[0].mxu0
        %v2384 = vadd.f32 %v2312, %v2383
        %v2385 = vpop.f32.mrb[0].mxu0
        %2386 = vdwg.mxu0
        %v2387 = vmax.f32 %v2384, 0.0
        %v2388 = vld [vmem:[%s1191] sm:$0xff]
        %v2389 = vld [vmem:[%s1191 + $0x8] sm:$0xff]
        %v2390 = vld [vmem:[%s1191 + $0x10] sm:$0xff]
        %v2391 = vld [vmem:[%s1191 + $0x18] sm:$0xff]
        %v2392 = vld [vmem:[%s1191 + $0x20] sm:$0xff]
        %v2393 = vld [vmem:[%s1191 + $0x28] sm:$0xff]
        %v2394 = vld [vmem:[%s1191 + $0x30] sm:$0xff]
        %v2395 = vld [vmem:[%s1191 + $0x38] sm:$0xff]
        %vm2396 = vcmask 523264
        %v2398 = vsel %vm2396, %v2387, 0
        %2400 = vmatprep.subr.mxu0 0.0
        %2401 = vmatpush1.msra.mxu0 %v2388
        %2402 = vmatprep.subr.mxu0 0.0
        %2403 = vmatpush1.msra.mxu0 %v2389
        %2404 = vmatprep.subr.mxu0 0.0
        %2405 = vmatpush1.msra.mxu0 %v2390
        %2406 = vmatprep.subr.mxu0 0.0
        %2407 = vmatpush1.msra.mxu0 %v2391
        %2408 = vmatprep.subr.mxu0 0.0
        %2409 = vmatpush1.msra.mxu0 %v2392
        %2410 = vmatprep.subr.mxu0 0.0
        %2411 = vmatpush1.msra.mxu0 %v2393
        %2412 = vmatprep.subr.mxu0 0.0
        %2413 = vmatpush1.msra.mxu0 %v2394
        %2414 = vmatprep.subr.mxu0 0.0
        %2415 = vmatpush1.msra.mxu0 %v2395
        %2416 = vmatprep.subr.mxu0 0.0
        %2417 = vmatpush1.msra.mxu0 0.0
        %2418 = vmatprep.subr.mxu0 0.0
        %2419 = vmatpush1.msra.mxu0 0.0
        %2420 = vmatprep.subr.mxu0 0.0
        %2421 = vmatpush1.msra.mxu0 0.0
        %2422 = vmatprep.subr.mxu0 0.0
        %2423 = vmatpush1.msra.mxu0 0.0
        %2424 = vmatprep.subr.mxu0 0.0
        %2425 = vmatpush1.msra.mxu0 0.0
        %2426 = vmatprep.subr.mxu0 0.0
        %2427 = vmatpush1.msra.mxu0 0.0
        %2428 = vmatprep.subr.mxu0 0.0
        %2429 = vmatpush1.msra.mxu0 0.0
        %2430 = vmatprep.subr.mxu0 0.0
        %2431 = vmatpush1.msra.mxu0 0.0
        %2432 = vmatprep.subr.mxu0 0.0
        %2433 = vmatpush1.msra.mxu0 0.0
        %2434 = vmatprep.subr.mxu0 0.0
        %2435 = vmatpush1.msra.mxu0 0.0
        %2436 = vmatprep.subr.mxu0 0.0
        %2437 = vmatpush1.msra.mxu0 0.0
        %2438 = vmatprep.subr.mxu0 0.0
        %2439 = vmatpush1.msra.mxu0 0.0
        %2440 = vmatprep.subr.mxu0 0.0
        %2441 = vmatpush1.msra.mxu0 0.0
        %2442 = vmatprep.subr.mxu0 0.0
        %2443 = vmatpush1.msra.mxu0 0.0
        %2444 = vmatprep.subr.mxu0 0.0
        %2445 = vmatpush1.msra.mxu0 0.0
        %2446 = vmatprep.subr.mxu0 0.0
        %2447 = vmatpush1.msra.mxu0 0.0
        %2448 = vmatprep.subr.mxu0 0.0
        %2449 = vmatpush1.msra.mxu0 0.0
        %2450 = vmatprep.subr.mxu0 0.0
        %2451 = vmatpush1.msra.mxu0 0.0
        %2452 = vmatprep.subr.mxu0 0.0
        %2453 = vmatpush1.msra.mxu0 0.0
        %2454 = vmatprep.subr.mxu0 0.0
        %2455 = vmatpush1.msra.mxu0 0.0
        %2456 = vmatprep.subr.mxu0 0.0
        %2457 = vmatpush1.msra.mxu0 0.0
        %2458 = vmatprep.subr.mxu0 0.0
        %2459 = vmatpush1.msra.mxu0 0.0
        %2460 = vmatprep.subr.mxu0 0.0
        %2461 = vmatpush1.msra.mxu0 0.0
        %2462 = vmatprep.subr.mxu0 0.0
        %2463 = vmatpush1.msra.mxu0 0.0
        %2464 = vmatprep.mubr.f32.mxu0 0.0
        %2465 = vmatmul.mubr.f32.gmra.mrb[0].mxu0 %v2398
        %v2466 = vpop.f32.mrb[0].mxu0
        %v2467 = vadd.f32 0.0, %v2466
        %v2468 = vpop.f32.mrb[0].mxu0
        %2469 = vdwg.mxu0
        %v2470 = vadd.f32 %v2266, %v2467
        %v2471 = vld [vmem:[%s1194] sm:$0x1]
        %v2473 = vlaneseq
        %v2474 = vshrl.u32 %v2473, 7
        %v2475 = vsub.s32 0, %v2474
        %v2476 = vrot.slane %v2471, %v2475
        %v2478 = vadd.f32 %v2470, %v2476
        %2479 = vst.msk [vmem:[#allocation2] sm:$0xff] %vm1221, %v2478
        %p2480 = scmp.eq.s32.totalorder %s64, 1
        // Predicated region
        $region165: #{tpu_custom_call.1} parent=103 // pred_check
          %p2481 = pneg %p2480
        $region166: #{tpu_custom_call.1} parent=103 // pred_check_branch
          %2483 = sbr.rel (%p2481) target = $region168
        $region167: #{tpu_custom_call.1} parent=103 // pred_region
          %v2484 = vld [vmem:[%s19] sm:$0x1]
          %v2485 = vld [vmem:[%s20] sm:$0x1]
          %v2486 = vsel %vm1221, %v2478, 0.0
          %2487 = vadd.xlane.f32.xlu0 %v2486
          %v2488 = vpop.xlane.xlu0 %2487
          %v2489 = vmul.f32 %v2488, %v1225
          %v2490 = vsub.f32 %v2478, %v2489
          %v2491 = vmul.f32 %v2490, %v2490
          %v2492 = vsel %vm1221, %v2491, 0.0
          %2493 = vadd.xlane.f32.xlu0 %v2492
          %v2494 = vpop.xlane.xlu0 %2493
          %v2495 = vmul.f32 %v2494, 0.032258064
          %v2496 = vrsqrt.pop %v2495
          %v2497 = vmul.f32 %v2495, %v2496
          %vm2498 = vcmp.eq.f32.partialorder %v2495, inf
          %v2499 = vsel %vm2498, %v2495, %v2497
          %vm2500 = vcmp.eq.f32.partialorder %v2495, 0.0
          %v2501 = vand.u32 %v2495, 2147483648
          %v2502 = vsel %vm2500, %v2501, %v2499
          %v2504 = vlaneseq
          %v2505 = vshrl.u32 %v2504, 7
          %v2506 = vsub.s32 0, %v2505
          %v2507 = vrot.slane %v2484, %v2506
          %v2509 = vmul.f32 %v2507, %v2490
          %v2510 = vadd.f32 %v2502, 1e-06
          %v2511 = vrcp.pop %v2510
          %v2512 = vmul.f32 %v2509, %v2511
          %v2514 = vlaneseq
          %v2515 = vshrl.u32 %v2514, 7
          %v2516 = vsub.s32 0, %v2515
          %v2517 = vrot.slane %v2485, %v2516
          %v2519 = vadd.f32 %v2512, %v2517
          %2520 = vst.msk [vmem:[%s1171] sm:$0xff] %vm1221, %v2519
        $region168: #{tpu_custom_call.1} parent=103 // pred_fallthru
          _
        %s2521 = sand.u32 %s610, 1
        %s2522 = scalar_lea.sflag [#allocation5], %s2521
        %s2523 = sand.u32 %s610, 1
        %s2524 = smul.addr %s2523, 8
        %s2525 = scalar_lea.vmem [#allocation26], %s2524
        // Predicated region
        $region169: #{tpu_custom_call.1} parent=103 // pred_check
          %p2526 = pneg %p620
        $region170: #{tpu_custom_call.1} parent=103 // pred_check_branch
          %2528 = sbr.rel (%p2526) target = $region172
        $region171: #{tpu_custom_call.1} parent=103 // pred_region
          %s2530 = ssub.s32 128, 128
          %2531 = vsyncadd %s2522, %s2530
          %s2532 = smul.addr %s63, 128
          %s2533 = scalar_lea.hbm %s21, %s2532
          %s2535 = sshll.u32 %s2525, 4
          %s2536 = int_to_ptr.vmem [resolvable:$true] %s2535
          %2538 = dma.vmem_to_hbm [thread:$0]  %s2536, 128, %s2533, %s2522
        $region172: #{tpu_custom_call.1} parent=103 // pred_fallthru
          _
      $region104: #{tpu_custom_call.1} parent=5 // pred_fallthru
        _
      %p2539 = scmp.le.s32.totalorder 2, %s54
      // Predicated region
      $region173: #{tpu_custom_call.1} parent=5 // pred_check
        %p2540 = pneg %p2539
      $region174: #{tpu_custom_call.1} parent=5 // pred_check_branch
        %2542 = sbr.rel (%p2540) target = $region176
      $region175: #{tpu_custom_call.1} parent=5 // pred_region
        %s2543 = ssub.s32 %s54, 2
        // Predicated region
        $region177: #{tpu_custom_call.1} parent=175 // pred_check
          %p2544 = pneg %p626
        $region178: #{tpu_custom_call.1} parent=175 // pred_check_branch
          %2546 = sbr.rel (%p2544) target = $region180
        $region179: #{tpu_custom_call.1} parent=175 // pred_region
          %s2547 = sand.u32 %s611, 1
          %s2548 = scalar_lea.sflag [#allocation5], %s2547
          %s2549 = sand.u32 %s611, 1
          %s2550 = smul.addr %s2549, 8
          %s2551 = scalar_lea.vmem [#allocation26], %s2550
          %2552 = dma.done %s2548, 128
        $region180: #{tpu_custom_call.1} parent=175 // pred_fallthru
          _
      $region176: #{tpu_custom_call.1} parent=5 // pred_fallthru
        _
    $region6: #{tpu_custom_call.1} parent=1 // loop_footer
      %s58 = sadd.s32 1, %s54
    $region7: #{tpu_custom_call.1} parent=1 // loop_footer_branch
      %53 = sbr.rel target = $region3
    $region8: #{tpu_custom_call.1} parent=1 // loop_exit
      _
    %2553 = vsyncpa [#allocation4], 1
    %s2554 = scalar_lea.sflag [#allocation4], 1
    %2555 = vsyncpa %s2554, 1
    %2556 = vsyncpa [#allocation7], 1
    %s2557 = scalar_lea.sflag [#allocation7], 1
    %2558 = vsyncpa %s2557, 1
    %2559 = vsyncpa [#allocation10], 1
    %s2560 = scalar_lea.sflag [#allocation10], 1
    %2561 = vsyncpa %s2560, 1
    %2562 = vsyncpa [#allocation13], 1
    %s2563 = scalar_lea.sflag [#allocation13], 1
    %2564 = vsyncpa %s2563, 1
    %2565 = vsyncpa [#allocation16], 1
    %s2566 = scalar_lea.sflag [#allocation16], 1
    %2567 = vsyncpa %s2566, 1
    %2568 = vsyncpa [#allocation19], 1
    %s2569 = scalar_lea.sflag [#allocation19], 1
    %2570 = vsyncpa %s2569, 1
    %2571 = vsyncpa [#allocation22], 1
    %s2572 = scalar_lea.sflag [#allocation22], 1
    %2573 = vsyncpa %s2572, 1
    %2574 = vsyncpa [#allocation25], 1
    %s2575 = scalar_lea.sflag [#allocation25], 1
    %2576 = vsyncpa %s2575, 1
    %2577 = vsyncpa [#allocation5], 1
    %s2578 = scalar_lea.sflag [#allocation5], 1
    %2579 = vsyncpa %s2578, 1

</llo_original>
